<compile_context>
chip_gen: v5e
topology: v5e:2x2
jax: 0.10.0
libtpu: 0.0.40
codegen_flags: <defaults>
</compile_context>

<pallas_src>
import functools

import jax
import jax.numpy as jnp
from jax.experimental import pallas as pl
from jax.experimental.pallas import tpu as pltpu

KERNEL_LEN = 41
STRIDE = 4
PAD = 20
NEG_SLOPE = 0.2

# Storage of each activation inside the fused kernel ("block decomposition"):
#   storage[n, r*C + c] = h[B*n + r - O, c]   (zero outside [0, len(h)))
# (block B, origin O) for x, h1, h2, h3.  The origin supplies the conv's left padding and is a
# multiple of B for h1..h3 so each layer can write its output at whole-row offsets.
_STORAGE = ((256, 20), (64, 64), (16, 32), (4, 20))
_CORE_ROW = (1, 2, 5)    # = O/B for h1, h2, h3: first storage block that holds real data
_ACC_BYTES = 128 * 1024  # f32 accumulator budget per dot (half the vector register file)


def _round_up(x, n):
    return -(-x // n) * n


def _fold_weight(w, scale, b_in, o_in, b_out):
    """Fold (C_out, C_in, 41) conv taps (+ BN scale) into per-slab dense matrices.

    Returns Wf of shape (A, b_in*C_in, b_out*C_out) such that, with the block-decomposed
    storage above,
        conv_out[b_out*s + u, c'] = sum_a  S_in[s + a, :] @ Wf[a][:, u*C_out + c'].
    """
    c_out, c_in, klen = w.shape
    w = (w * scale[:, None, None]).astype(jnp.float32)
    a_max = (STRIDE * (b_out - 1) + (klen - 1) - PAD + o_in) // b_in
    a_idx = jnp.arange(a_max + 1)[:, None, None]                 # (A, 1, 1)
    r_idx = jnp.arange(b_in)[None, :, None]                      # (1, b_in, 1)
    u_idx = jnp.arange(b_out)[None, None, :]                     # (1, 1, b_out)
    k = b_in * a_idx + r_idx + PAD - o_in - STRIDE * u_idx       # (A, b_in, b_out)
    valid = (k >= 0) & (k < klen)
    taps = w[:, :, jnp.clip(k, 0, klen - 1)]                     # (C_out, C_in, A, b_in, b_out)
    taps = jnp.where(valid[None, None], taps, 0.0)
    taps = jnp.transpose(taps, (2, 3, 1, 4, 0))                  # (A, b_in, C_in, b_out, C_out)
    return taps.reshape(a_max + 1, b_in * c_in, b_out * c_out)


def prepare_fused_params(params):
    """params: 4 x (w (C_out, C_in, 41), scale (C_out,), shift (C_out,)) -> fused kernel params."""
    folded, shifts = [], []
    for i, (w, scale, shift) in enumerate(params):
        b_in, o_in = _STORAGE[i]
        b_out = _STORAGE[i + 1][0] if i + 1 < len(_STORAGE) else 1
        folded.append(_fold_weight(w, scale, b_in, o_in, b_out).astype(jnp.bfloat16))
        shifts.append(jnp.tile(shift.astype(jnp.float32), b_out).reshape(1, -1))
    return tuple(folded), tuple(shifts[1:])  # layer 1 has no BN -> no shift needed


def _encode_rir_kernel(x_ref, w1_ref, w2_ref, w3_ref, w4_ref,
                       sh2_ref, sh3_ref, sh4_ref,
                       o_ref, s1_ref, s2_ref, s3_ref, *, bb, m):
    """One grid step = one block of `bb` batch elements; rows ordered (signal-block, batch)."""
    mb = m * bb  # core rows per layer (= output rows per grid step)

    def zero_guard_rows(s_ref, core_block):
        # Guard rows realise the conv zero-padding; core rows [core, core+m) are fully
        # overwritten below, so only the guards need (re)writing each step.
        rows, lanes = s_ref.shape
        head = core_block * bb
        tail_start = (core_block + m) * bb
        s_ref[pl.ds(0, head), :] = jnp.zeros((head, lanes), s_ref.dtype)
        s_ref[pl.ds(tail_start, rows - tail_start), :] = jnp.zeros(
            (rows - tail_start, lanes), s_ref.dtype)

    zero_guard_rows(s1_ref, _CORE_ROW[0])
    zero_guard_rows(s2_ref, _CORE_ROW[1])
    zero_guard_rows(s3_ref, _CORE_ROW[2])

    def conv_layer(in_ref, w_ref, shift, out_ref, out_row0):
        taps, _, n = w_ref.shape
        # M tiling: keep each dot's f32 accumulator bounded so large bb*m never spills vregs.
        tm_cap = max(8, (_ACC_BYTES // (4 * n)) // 8 * 8)
        row = 0
        while row < mb:                      # static Python loop (offsets are compile-time)
            tm = min(tm_cap, mb - row)
            acc = jnp.zeros((tm, n), jnp.float32)
            for a in range(taps):            # 2 / 3 / 5 / 11 contiguous sublane slabs
                acc = acc + jnp.dot(in_ref[pl.ds(a * bb + row, tm), :], w_ref[a],
                                    preferred_element_type=jnp.float32)
            if shift is not None:
                acc = acc + shift            # folded BN shift (scale folded into the weights)
            acc = jnp.where(acc >= 0.0, acc, NEG_SLOPE * acc)
            out_ref[pl.ds(out_row0 + row, tm), :] = acc.astype(out_ref.dtype)
            row += tm

    conv_layer(x_ref, w1_ref, None, s1_ref, _CORE_ROW[0] * bb)           # x  -> h1 (no BN)
    conv_layer(s1_ref, w2_ref, sh2_ref[...], s2_ref, _CORE_ROW[1] * bb)  # h1 -> h2
    conv_layer(s2_ref, w3_ref, sh3_ref[...], s3_ref, _CORE_ROW[2] * bb)  # h2 -> h3
    conv_layer(s3_ref, w4_ref, sh4_ref[...], o_ref, 0)                   # h3 -> embedding


def stage1_d_forward(rirs, fused_params, block_batch=16):
    """rirs: (B, 1, L) f32, L % 256 == 0  ->  RIR embedding (B, 8*ndf, L // 256)."""
    (w1, w2, w3, w4), (sh2, sh3, sh4) = fused_params
    b, c_in, length = rirs.shape
    assert c_in == 1
    assert length > 0 and length % (STRIDE ** 4) == 0, \
        "fused kernel requires the RIR length to be a multiple of 256"
    m = length // 256

    # Lane-dense output: pad layer-4 output channels up to a multiple of 128 (sliced off below).
    c4 = w4.shape[2]
    c4p = _round_up(c4, 128)
    if c4p != c4:
        w4 = jnp.pad(w4, ((0, 0), (0, 0), (0, c4p - c4)))
        sh4 = jnp.pad(sh4, ((0, 0), (0, c4p - c4)))

    # Batch blocking: bb batch elements per grid step (multiple of 8 sublanes).
    bb = min(_round_up(block_batch, 8), _round_up(b, 8))
    g = -(-b // bb)
    b_pad = g * bb

    # Wrapper-side layout work only (fused by XLA into one pass): cast to bf16, place the signal
    # at offset PAD inside a zero buffer, cut it into 256-sample blocks and order the rows
    # (block, batch) so every tap in the kernel reads a single contiguous (bb*m, K) slab.
    total = 256 * (m + 1)
    x = rirs.reshape(b, length).astype(jnp.bfloat16)
    x = jnp.pad(x, ((0, b_pad - b), (PAD, total - length - PAD)))
    x = x.reshape(g, bb, m + 1, 256).transpose(0, 2, 1, 3).reshape(g * (m + 1) * bb, 256)

    out = pl.pallas_call(
        functools.partial(_encode_rir_kernel, bb=bb, m=m),
        out_shape=jax.ShapeDtypeStruct((g * m * bb, c4p), jnp.float32),
        grid=(g,),
        in_specs=[
            pl.BlockSpec(((m + 1) * bb, 256), lambda i: (i, 0)),
            # Folded weights / shifts: constant index_map -> copied to VMEM once, reused.
            pl.BlockSpec(w1.shape, lambda i: (0, 0, 0)),
            pl.BlockSpec(w2.shape, lambda i: (0, 0, 0)),
            pl.BlockSpec(w3.shape, lambda i: (0, 0, 0)),
            pl.BlockSpec(w4.shape, lambda i: (0, 0, 0)),
            pl.BlockSpec(sh2.shape, lambda i: (0, 0)),
            pl.BlockSpec(sh3.shape, lambda i: (0, 0)),
            pl.BlockSpec(sh4.shape, lambda i: (0, 0)),
        ],
        out_specs=pl.BlockSpec((m * bb, c4p), lambda i: (i, 0)),
        scratch_shapes=[
            pltpu.VMEM(((m + w2.shape[0] - 1) * bb, w1.shape[2]), jnp.bfloat16),  # h1 storage
            pltpu.VMEM(((m + w3.shape[0] - 1) * bb, w2.shape[2]), jnp.bfloat16),  # h2 storage
            pltpu.VMEM(((m + w4.shape[0] - 1) * bb, w3.shape[2]), jnp.bfloat16),  # h3 storage
        ],
        compiler_params=pltpu.CompilerParams(dimension_semantics=("parallel",)),
    )(x, w1, w2, w3, w4, sh2, sh3, sh4)

    # rows = (batch-block, signal-block, batch)  ->  (B, 8*ndf, L//256) in PyTorch NCL order.
    out = out.reshape(g, m, bb, c4p)[:, :, :, :c4]
    out = out.transpose(0, 2, 3, 1).reshape(b_pad, c4, m)
    return out[:b]


def init_stage1_d_params(key, ndf=8):
    """Deterministic synthetic parameters matching encode_RIR's shapes."""
    chans = [(1, ndf), (ndf, ndf * 2), (ndf * 2, ndf * 4), (ndf * 4, ndf * 8)]
    params = []
    eps = 1e-5
    for i, (cin, cout) in enumerate(chans):
        key, kw, kg, kb = jax.random.split(key, 4)
        w = jax.random.normal(kw, (cout, cin, KERNEL_LEN), jnp.float32)
        w = w * (1.0 / jnp.sqrt(cin * KERNEL_LEN))
        if i == 0:
            scale = jnp.ones((cout,), jnp.float32)      # first block has no BatchNorm
            shift = jnp.zeros((cout,), jnp.float32)
        else:
            gamma = 1.0 + 0.1 * jax.random.normal(kg, (cout,), jnp.float32)
            beta = 0.1 * jax.random.normal(kb, (cout,), jnp.float32)
            running_mean = jnp.zeros((cout,), jnp.float32)
            running_var = jnp.ones((cout,), jnp.float32)
            scale = gamma / jnp.sqrt(running_var + eps)
            shift = beta - running_mean * scale
        params.append((w, scale, shift))
    return params


def _ref_forward(rirs, params):
    """Pure-XLA reference (Conv1d stride 4 pad 20, folded BN, LeakyReLU 0.2)."""
    h = rirs.astype(jnp.float32)
    for w, scale, shift in params:
        h = jax.lax.conv_general_dilated(
            h, w, window_strides=(STRIDE,), padding=[(PAD, PAD)],
            dimension_numbers=("NCH", "OIH", "NCH"),
            precision=jax.lax.Precision.HIGHEST)
        h = h * scale[None, :, None] + shift[None, :, None]
        h = jnp.where(h >= 0, h, NEG_SLOPE * h)
    return h


if __name__ == "__main__":
    key = jax.random.PRNGKey(0)
    key, kx = jax.random.split(key)

    B, L, NDF = 8, 1024, 8
    rirs = jax.random.normal(kx, (B, 1, L), jnp.float32)

    params = init_stage1_d_params(key, ndf=NDF)
    fused = prepare_fused_params(params)

    fwd = jax.jit(functools.partial(stage1_d_forward, block_batch=8))
    out = jax.block_until_ready(fwd(rirs, fused))

    expected_shape = (B, NDF * 8, L // (STRIDE ** 4))
    assert out.shape == expected_shape, (out.shape, expected_shape)
    assert bool(jnp.all(jnp.isfinite(out)))

    ref = _ref_forward(rirs, params)
    max_err = float(jnp.max(jnp.abs(out - ref)))
    assert max_err < 1e-1, f"max abs error vs reference: {max_err}"

    print("KERNEL_OK")
</pallas_src>

<mosaic_0001>
module attributes {stable_mosaic.version = 11 : i64} {
  func.func @_encode_rir_kernel(%arg0: i32, %arg1: memref<40x256xbf16, #tpu.memory_space<vmem>>, %arg2: memref<2x256x512xbf16, #tpu.memory_space<vmem>>, %arg3: memref<3x512x256xbf16, #tpu.memory_space<vmem>>, %arg4: memref<5x256x128xbf16, #tpu.memory_space<vmem>>, %arg5: memref<11x128x128xbf16, #tpu.memory_space<vmem>>, %arg6: memref<1x256xf32, #tpu.memory_space<vmem>>, %arg7: memref<1x128xf32, #tpu.memory_space<vmem>>, %arg8: memref<1x128xf32, #tpu.memory_space<vmem>>, %arg9: memref<32x128xf32, #tpu.memory_space<vmem>>, %arg10: memref<48x512xbf16, #tpu.memory_space<vmem>>, %arg11: memref<64x256xbf16, #tpu.memory_space<vmem>>, %arg12: memref<112x128xbf16, #tpu.memory_space<vmem>>) attributes {dimension_semantics = [#tpu.dimension_semantics<parallel>], iteration_bounds = array<i64: 1>, scalar_prefetch = 0 : i64, scratch_operands = 3 : i64, tpu.core_type = #tpu.core_type<tc>, window_params = [{transform_indices = @transform_0, window_bounds = array<i64: 40, 256>}, {pipeline_mode = #tpu.pipeline_mode<synchronous>, transform_indices = @transform_1, window_bounds = array<i64: 2, 256, 512>}, {pipeline_mode = #tpu.pipeline_mode<synchronous>, transform_indices = @transform_2, window_bounds = array<i64: 3, 512, 256>}, {pipeline_mode = #tpu.pipeline_mode<synchronous>, transform_indices = @transform_3, window_bounds = array<i64: 5, 256, 128>}, {pipeline_mode = #tpu.pipeline_mode<synchronous>, transform_indices = @transform_4, window_bounds = array<i64: 11, 128, 128>}, {pipeline_mode = #tpu.pipeline_mode<synchronous>, transform_indices = @transform_5, window_bounds = array<i64: 1, 256>}, {pipeline_mode = #tpu.pipeline_mode<synchronous>, transform_indices = @transform_6, window_bounds = array<i64: 1, 128>}, {pipeline_mode = #tpu.pipeline_mode<synchronous>, transform_indices = @transform_7, window_bounds = array<i64: 1, 128>}, {transform_indices = @transform_8, window_bounds = array<i64: 32, 128>}]} {
    %cst = arith.constant 0.000000e+00 : bf16
    %0 = vector.broadcast %cst : bf16 to vector<8x512xbf16>
    %c0 = arith.constant 0 : index
    %c0_0 = arith.constant 0 : index
    %1 = vector.load %arg10[%c0, %c0_0] : memref<48x512xbf16, #tpu.memory_space<vmem>>, vector<8x512xbf16>
    tpu.vector_store %arg10[%c0, %c0_0], %0 {strides = array<i32>} : memref<48x512xbf16, #tpu.memory_space<vmem>>, vector<8x512xbf16>,
    %cst_1 = arith.constant 0.000000e+00 : bf16
    %2 = vector.broadcast %cst_1 : bf16 to vector<8x512xbf16>
    %c40 = arith.constant 40 : index
    %c0_2 = arith.constant 0 : index
    %3 = vector.load %arg10[%c40, %c0_2] : memref<48x512xbf16, #tpu.memory_space<vmem>>, vector<8x512xbf16>
    tpu.vector_store %arg10[%c40, %c0_2], %2 {strides = array<i32>} : memref<48x512xbf16, #tpu.memory_space<vmem>>, vector<8x512xbf16>,
    %cst_3 = arith.constant 0.000000e+00 : bf16
    %4 = vector.broadcast %cst_3 : bf16 to vector<16x256xbf16>
    %c0_4 = arith.constant 0 : index
    %c0_5 = arith.constant 0 : index
    %5 = vector.load %arg11[%c0_4, %c0_5] : memref<64x256xbf16, #tpu.memory_space<vmem>>, vector<16x256xbf16>
    tpu.vector_store %arg11[%c0_4, %c0_5], %4 {strides = array<i32>} : memref<64x256xbf16, #tpu.memory_space<vmem>>, vector<16x256xbf16>,
    %cst_6 = arith.constant 0.000000e+00 : bf16
    %6 = vector.broadcast %cst_6 : bf16 to vector<16x256xbf16>
    %c48 = arith.constant 48 : index
    %c0_7 = arith.constant 0 : index
    %7 = vector.load %arg11[%c48, %c0_7] : memref<64x256xbf16, #tpu.memory_space<vmem>>, vector<16x256xbf16>
    tpu.vector_store %arg11[%c48, %c0_7], %6 {strides = array<i32>} : memref<64x256xbf16, #tpu.memory_space<vmem>>, vector<16x256xbf16>,
    %cst_8 = arith.constant 0.000000e+00 : bf16
    %8 = vector.broadcast %cst_8 : bf16 to vector<40x128xbf16>
    %c0_9 = arith.constant 0 : index
    %c0_10 = arith.constant 0 : index
    %9 = vector.load %arg12[%c0_9, %c0_10] : memref<112x128xbf16, #tpu.memory_space<vmem>>, vector<40x128xbf16>
    tpu.vector_store %arg12[%c0_9, %c0_10], %8 {strides = array<i32>} : memref<112x128xbf16, #tpu.memory_space<vmem>>, vector<40x128xbf16>,
    %cst_11 = arith.constant 0.000000e+00 : bf16
    %10 = vector.broadcast %cst_11 : bf16 to vector<40x128xbf16>
    %c72 = arith.constant 72 : index
    %c0_12 = arith.constant 0 : index
    %11 = vector.load %arg12[%c72, %c0_12] : memref<112x128xbf16, #tpu.memory_space<vmem>>, vector<40x128xbf16>
    tpu.vector_store %arg12[%c72, %c0_12], %10 {strides = array<i32>} : memref<112x128xbf16, #tpu.memory_space<vmem>>, vector<40x128xbf16>,
    %cst_13 = arith.constant 0.000000e+00 : f32
    %12 = vector.broadcast %cst_13 : f32 to vector<32x512xf32>
    %c0_14 = arith.constant 0 : index
    %c0_15 = arith.constant 0 : index
    %13 = vector.load %arg1[%c0_14, %c0_15] : memref<40x256xbf16, #tpu.memory_space<vmem>>, vector<32x256xbf16>
    %c0_16 = arith.constant 0 : index
    %c0_17 = arith.constant 0 : index
    %c0_18 = arith.constant 0 : index
    %14 = vector.load %arg2[%c0_16, %c0_17, %c0_18] : memref<2x256x512xbf16, #tpu.memory_space<vmem>>, vector<1x256x512xbf16>
    %15 = vector.shape_cast %14 : vector<1x256x512xbf16> to vector<256x512xbf16>
    %cst_19 = arith.constant dense<0.000000e+00> : vector<32x512xf32>
    %16 = tpu.matmul %13, %15, %cst_19 {dimension_numbers = #tpu.dot_dimension_numbers<[1], [0], [0], [1], [0, 0, 1, 1], [], []>} : vector<32x256xbf16>, vector<256x512xbf16>, vector<32x512xf32> -> vector<32x512xf32>
    %17 = arith.addf %12, %16 : vector<32x512xf32>
    %c8 = arith.constant 8 : index
    %c0_20 = arith.constant 0 : index
    %18 = vector.load %arg1[%c8, %c0_20] : memref<40x256xbf16, #tpu.memory_space<vmem>>, vector<32x256xbf16>
    %c1 = arith.constant 1 : index
    %c0_21 = arith.constant 0 : index
    %c0_22 = arith.constant 0 : index
    %19 = vector.load %arg2[%c1, %c0_21, %c0_22] : memref<2x256x512xbf16, #tpu.memory_space<vmem>>, vector<1x256x512xbf16>
    %20 = vector.shape_cast %19 : vector<1x256x512xbf16> to vector<256x512xbf16>
    %cst_23 = arith.constant dense<0.000000e+00> : vector<32x512xf32>
    %21 = tpu.matmul %18, %20, %cst_23 {dimension_numbers = #tpu.dot_dimension_numbers<[1], [0], [0], [1], [0, 0, 1, 1], [], []>} : vector<32x256xbf16>, vector<256x512xbf16>, vector<32x512xf32> -> vector<32x512xf32>
    %22 = arith.addf %17, %21 : vector<32x512xf32>
    %cst_24 = arith.constant 0.000000e+00 : f32
    %23 = vector.broadcast %cst_24 : f32 to vector<32x512xf32>
    %24 = arith.cmpf oge, %22, %23 : vector<32x512xf32>
    %cst_25 = arith.constant 2.000000e-01 : f32
    %25 = vector.broadcast %cst_25 : f32 to vector<32x512xf32>
    %26 = arith.mulf %25, %22 : vector<32x512xf32>
    %27 = arith.select %24, %22, %26 : vector<32x512xi1>, vector<32x512xf32>
    %28 = arith.truncf %27 : vector<32x512xf32> to vector<32x512xbf16>
    %c8_26 = arith.constant 8 : index
    %c0_27 = arith.constant 0 : index
    %29 = vector.load %arg10[%c8_26, %c0_27] : memref<48x512xbf16, #tpu.memory_space<vmem>>, vector<32x512xbf16>
    tpu.vector_store %arg10[%c8_26, %c0_27], %28 {strides = array<i32>} : memref<48x512xbf16, #tpu.memory_space<vmem>>, vector<32x512xbf16>,
    %c0_28 = arith.constant 0 : index
    %c0_29 = arith.constant 0 : index
    %30 = vector.load %arg6[%c0_28, %c0_29] : memref<1x256xf32, #tpu.memory_space<vmem>>, vector<1x256xf32>
    %cst_30 = arith.constant 0.000000e+00 : f32
    %31 = vector.broadcast %cst_30 : f32 to vector<32x256xf32>
    %c0_31 = arith.constant 0 : index
    %c0_32 = arith.constant 0 : index
    %32 = vector.load %arg10[%c0_31, %c0_32] : memref<48x512xbf16, #tpu.memory_space<vmem>>, vector<32x512xbf16>
    %c0_33 = arith.constant 0 : index
    %c0_34 = arith.constant 0 : index
    %c0_35 = arith.constant 0 : index
    %33 = vector.load %arg3[%c0_33, %c0_34, %c0_35] : memref<3x512x256xbf16, #tpu.memory_space<vmem>>, vector<1x512x256xbf16>
    %34 = vector.shape_cast %33 : vector<1x512x256xbf16> to vector<512x256xbf16>
    %cst_36 = arith.constant dense<0.000000e+00> : vector<32x256xf32>
    %35 = tpu.matmul %32, %34, %cst_36 {dimension_numbers = #tpu.dot_dimension_numbers<[1], [0], [0], [1], [0, 0, 1, 1], [], []>} : vector<32x512xbf16>, vector<512x256xbf16>, vector<32x256xf32> -> vector<32x256xf32>
    %36 = arith.addf %31, %35 : vector<32x256xf32>
    %c8_37 = arith.constant 8 : index
    %c0_38 = arith.constant 0 : index
    %37 = vector.load %arg10[%c8_37, %c0_38] : memref<48x512xbf16, #tpu.memory_space<vmem>>, vector<32x512xbf16>
    %c1_39 = arith.constant 1 : index
    %c0_40 = arith.constant 0 : index
    %c0_41 = arith.constant 0 : index
    %38 = vector.load %arg3[%c1_39, %c0_40, %c0_41] : memref<3x512x256xbf16, #tpu.memory_space<vmem>>, vector<1x512x256xbf16>
    %39 = vector.shape_cast %38 : vector<1x512x256xbf16> to vector<512x256xbf16>
    %cst_42 = arith.constant dense<0.000000e+00> : vector<32x256xf32>
    %40 = tpu.matmul %37, %39, %cst_42 {dimension_numbers = #tpu.dot_dimension_numbers<[1], [0], [0], [1], [0, 0, 1, 1], [], []>} : vector<32x512xbf16>, vector<512x256xbf16>, vector<32x256xf32> -> vector<32x256xf32>
    %41 = arith.addf %36, %40 : vector<32x256xf32>
    %c16 = arith.constant 16 : index
    %c0_43 = arith.constant 0 : index
    %42 = vector.load %arg10[%c16, %c0_43] : memref<48x512xbf16, #tpu.memory_space<vmem>>, vector<32x512xbf16>
    %c2 = arith.constant 2 : index
    %c0_44 = arith.constant 0 : index
    %c0_45 = arith.constant 0 : index
    %43 = vector.load %arg3[%c2, %c0_44, %c0_45] : memref<3x512x256xbf16, #tpu.memory_space<vmem>>, vector<1x512x256xbf16>
    %44 = vector.shape_cast %43 : vector<1x512x256xbf16> to vector<512x256xbf16>
    %cst_46 = arith.constant dense<0.000000e+00> : vector<32x256xf32>
    %45 = tpu.matmul %42, %44, %cst_46 {dimension_numbers = #tpu.dot_dimension_numbers<[1], [0], [0], [1], [0, 0, 1, 1], [], []>} : vector<32x512xbf16>, vector<512x256xbf16>, vector<32x256xf32> -> vector<32x256xf32>
    %46 = arith.addf %41, %45 : vector<32x256xf32>
    %47 = vector.broadcast %30 : vector<1x256xf32> to vector<32x256xf32>
    %48 = arith.addf %46, %47 : vector<32x256xf32>
    %cst_47 = arith.constant 0.000000e+00 : f32
    %49 = vector.broadcast %cst_47 : f32 to vector<32x256xf32>
    %50 = arith.cmpf oge, %48, %49 : vector<32x256xf32>
    %cst_48 = arith.constant 2.000000e-01 : f32
    %51 = vector.broadcast %cst_48 : f32 to vector<32x256xf32>
    %52 = arith.mulf %51, %48 : vector<32x256xf32>
    %53 = arith.select %50, %48, %52 : vector<32x256xi1>, vector<32x256xf32>
    %54 = arith.truncf %53 : vector<32x256xf32> to vector<32x256xbf16>
    %c16_49 = arith.constant 16 : index
    %c0_50 = arith.constant 0 : index
    %55 = vector.load %arg11[%c16_49, %c0_50] : memref<64x256xbf16, #tpu.memory_space<vmem>>, vector<32x256xbf16>
    tpu.vector_store %arg11[%c16_49, %c0_50], %54 {strides = array<i32>} : memref<64x256xbf16, #tpu.memory_space<vmem>>, vector<32x256xbf16>,
    %c0_51 = arith.constant 0 : index
    %c0_52 = arith.constant 0 : index
    %56 = vector.load %arg7[%c0_51, %c0_52] : memref<1x128xf32, #tpu.memory_space<vmem>>, vector<1x128xf32>
    %cst_53 = arith.constant 0.000000e+00 : f32
    %57 = vector.broadcast %cst_53 : f32 to vector<32x128xf32>
    %c0_54 = arith.constant 0 : index
    %c0_55 = arith.constant 0 : index
    %58 = vector.load %arg11[%c0_54, %c0_55] : memref<64x256xbf16, #tpu.memory_space<vmem>>, vector<32x256xbf16>
    %c0_56 = arith.constant 0 : index
    %c0_57 = arith.constant 0 : index
    %c0_58 = arith.constant 0 : index
    %59 = vector.load %arg4[%c0_56, %c0_57, %c0_58] : memref<5x256x128xbf16, #tpu.memory_space<vmem>>, vector<1x256x128xbf16>
    %60 = vector.shape_cast %59 : vector<1x256x128xbf16> to vector<256x128xbf16>
    %cst_59 = arith.constant dense<0.000000e+00> : vector<32x128xf32>
    %61 = tpu.matmul %58, %60, %cst_59 {dimension_numbers = #tpu.dot_dimension_numbers<[1], [0], [0], [1], [0, 0, 1, 1], [], []>} : vector<32x256xbf16>, vector<256x128xbf16>, vector<32x128xf32> -> vector<32x128xf32>
    %62 = arith.addf %57, %61 : vector<32x128xf32>
    %c8_60 = arith.constant 8 : index
    %c0_61 = arith.constant 0 : index
    %63 = vector.load %arg11[%c8_60, %c0_61] : memref<64x256xbf16, #tpu.memory_space<vmem>>, vector<32x256xbf16>
    %c1_62 = arith.constant 1 : index
    %c0_63 = arith.constant 0 : index
    %c0_64 = arith.constant 0 : index
    %64 = vector.load %arg4[%c1_62, %c0_63, %c0_64] : memref<5x256x128xbf16, #tpu.memory_space<vmem>>, vector<1x256x128xbf16>
    %65 = vector.shape_cast %64 : vector<1x256x128xbf16> to vector<256x128xbf16>
    %cst_65 = arith.constant dense<0.000000e+00> : vector<32x128xf32>
    %66 = tpu.matmul %63, %65, %cst_65 {dimension_numbers = #tpu.dot_dimension_numbers<[1], [0], [0], [1], [0, 0, 1, 1], [], []>} : vector<32x256xbf16>, vector<256x128xbf16>, vector<32x128xf32> -> vector<32x128xf32>
    %67 = arith.addf %62, %66 : vector<32x128xf32>
    %c16_66 = arith.constant 16 : index
    %c0_67 = arith.constant 0 : index
    %68 = vector.load %arg11[%c16_66, %c0_67] : memref<64x256xbf16, #tpu.memory_space<vmem>>, vector<32x256xbf16>
    %c2_68 = arith.constant 2 : index
    %c0_69 = arith.constant 0 : index
    %c0_70 = arith.constant 0 : index
    %69 = vector.load %arg4[%c2_68, %c0_69, %c0_70] : memref<5x256x128xbf16, #tpu.memory_space<vmem>>, vector<1x256x128xbf16>
    %70 = vector.shape_cast %69 : vector<1x256x128xbf16> to vector<256x128xbf16>
    %cst_71 = arith.constant dense<0.000000e+00> : vector<32x128xf32>
    %71 = tpu.matmul %68, %70, %cst_71 {dimension_numbers = #tpu.dot_dimension_numbers<[1], [0], [0], [1], [0, 0, 1, 1], [], []>} : vector<32x256xbf16>, vector<256x128xbf16>, vector<32x128xf32> -> vector<32x128xf32>
    %72 = arith.addf %67, %71 : vector<32x128xf32>
    %c24 = arith.constant 24 : index
    %c0_72 = arith.constant 0 : index
    %73 = vector.load %arg11[%c24, %c0_72] : memref<64x256xbf16, #tpu.memory_space<vmem>>, vector<32x256xbf16>
    %c3 = arith.constant 3 : index
    %c0_73 = arith.constant 0 : index
    %c0_74 = arith.constant 0 : index
    %74 = vector.load %arg4[%c3, %c0_73, %c0_74] : memref<5x256x128xbf16, #tpu.memory_space<vmem>>, vector<1x256x128xbf16>
    %75 = vector.shape_cast %74 : vector<1x256x128xbf16> to vector<256x128xbf16>
    %cst_75 = arith.constant dense<0.000000e+00> : vector<32x128xf32>
    %76 = tpu.matmul %73, %75, %cst_75 {dimension_numbers = #tpu.dot_dimension_numbers<[1], [0], [0], [1], [0, 0, 1, 1], [], []>} : vector<32x256xbf16>, vector<256x128xbf16>, vector<32x128xf32> -> vector<32x128xf32>
    %77 = arith.addf %72, %76 : vector<32x128xf32>
    %c32 = arith.constant 32 : index
    %c0_76 = arith.constant 0 : index
    %78 = vector.load %arg11[%c32, %c0_76] : memref<64x256xbf16, #tpu.memory_space<vmem>>, vector<32x256xbf16>
    %c4 = arith.constant 4 : index
    %c0_77 = arith.constant 0 : index
    %c0_78 = arith.constant 0 : index
    %79 = vector.load %arg4[%c4, %c0_77, %c0_78] : memref<5x256x128xbf16, #tpu.memory_space<vmem>>, vector<1x256x128xbf16>
    %80 = vector.shape_cast %79 : vector<1x256x128xbf16> to vector<256x128xbf16>
    %cst_79 = arith.constant dense<0.000000e+00> : vector<32x128xf32>
    %81 = tpu.matmul %78, %80, %cst_79 {dimension_numbers = #tpu.dot_dimension_numbers<[1], [0], [0], [1], [0, 0, 1, 1], [], []>} : vector<32x256xbf16>, vector<256x128xbf16>, vector<32x128xf32> -> vector<32x128xf32>
    %82 = arith.addf %77, %81 : vector<32x128xf32>
    %83 = vector.broadcast %56 : vector<1x128xf32> to vector<32x128xf32>
    %84 = arith.addf %82, %83 : vector<32x128xf32>
    %cst_80 = arith.constant 0.000000e+00 : f32
    %85 = vector.broadcast %cst_80 : f32 to vector<32x128xf32>
    %86 = arith.cmpf oge, %84, %85 : vector<32x128xf32>
    %cst_81 = arith.constant 2.000000e-01 : f32
    %87 = vector.broadcast %cst_81 : f32 to vector<32x128xf32>
    %88 = arith.mulf %87, %84 : vector<32x128xf32>
    %89 = arith.select %86, %84, %88 : vector<32x128xi1>, vector<32x128xf32>
    %90 = arith.truncf %89 : vector<32x128xf32> to vector<32x128xbf16>
    %c40_82 = arith.constant 40 : index
    %c0_83 = arith.constant 0 : index
    %91 = vector.load %arg12[%c40_82, %c0_83] : memref<112x128xbf16, #tpu.memory_space<vmem>>, vector<32x128xbf16>
    tpu.vector_store %arg12[%c40_82, %c0_83], %90 {strides = array<i32>} : memref<112x128xbf16, #tpu.memory_space<vmem>>, vector<32x128xbf16>,
    %c0_84 = arith.constant 0 : index
    %c0_85 = arith.constant 0 : index
    %92 = vector.load %arg8[%c0_84, %c0_85] : memref<1x128xf32, #tpu.memory_space<vmem>>, vector<1x128xf32>
    %cst_86 = arith.constant 0.000000e+00 : f32
    %93 = vector.broadcast %cst_86 : f32 to vector<32x128xf32>
    %c0_87 = arith.constant 0 : index
    %c0_88 = arith.constant 0 : index
    %94 = vector.load %arg12[%c0_87, %c0_88] : memref<112x128xbf16, #tpu.memory_space<vmem>>, vector<32x128xbf16>
    %c0_89 = arith.constant 0 : index
    %c0_90 = arith.constant 0 : index
    %c0_91 = arith.constant 0 : index
    %95 = vector.load %arg5[%c0_89, %c0_90, %c0_91] : memref<11x128x128xbf16, #tpu.memory_space<vmem>>, vector<1x128x128xbf16>
    %96 = vector.shape_cast %95 : vector<1x128x128xbf16> to vector<128x128xbf16>
    %cst_92 = arith.constant dense<0.000000e+00> : vector<32x128xf32>
    %97 = tpu.matmul %94, %96, %cst_92 {dimension_numbers = #tpu.dot_dimension_numbers<[1], [0], [0], [1], [0, 0, 1, 1], [], []>} : vector<32x128xbf16>, vector<128x128xbf16>, vector<32x128xf32> -> vector<32x128xf32>
    %98 = arith.addf %93, %97 : vector<32x128xf32>
    %c8_93 = arith.constant 8 : index
    %c0_94 = arith.constant 0 : index
    %99 = vector.load %arg12[%c8_93, %c0_94] : memref<112x128xbf16, #tpu.memory_space<vmem>>, vector<32x128xbf16>
    %c1_95 = arith.constant 1 : index
    %c0_96 = arith.constant 0 : index
    %c0_97 = arith.constant 0 : index
    %100 = vector.load %arg5[%c1_95, %c0_96, %c0_97] : memref<11x128x128xbf16, #tpu.memory_space<vmem>>, vector<1x128x128xbf16>
    %101 = vector.shape_cast %100 : vector<1x128x128xbf16> to vector<128x128xbf16>
    %cst_98 = arith.constant dense<0.000000e+00> : vector<32x128xf32>
    %102 = tpu.matmul %99, %101, %cst_98 {dimension_numbers = #tpu.dot_dimension_numbers<[1], [0], [0], [1], [0, 0, 1, 1], [], []>} : vector<32x128xbf16>, vector<128x128xbf16>, vector<32x128xf32> -> vector<32x128xf32>
    %103 = arith.addf %98, %102 : vector<32x128xf32>
    %c16_99 = arith.constant 16 : index
    %c0_100 = arith.constant 0 : index
    %104 = vector.load %arg12[%c16_99, %c0_100] : memref<112x128xbf16, #tpu.memory_space<vmem>>, vector<32x128xbf16>
    %c2_101 = arith.constant 2 : index
    %c0_102 = arith.constant 0 : index
    %c0_103 = arith.constant 0 : index
    %105 = vector.load %arg5[%c2_101, %c0_102, %c0_103] : memref<11x128x128xbf16, #tpu.memory_space<vmem>>, vector<1x128x128xbf16>
    %106 = vector.shape_cast %105 : vector<1x128x128xbf16> to vector<128x128xbf16>
    %cst_104 = arith.constant dense<0.000000e+00> : vector<32x128xf32>
    %107 = tpu.matmul %104, %106, %cst_104 {dimension_numbers = #tpu.dot_dimension_numbers<[1], [0], [0], [1], [0, 0, 1, 1], [], []>} : vector<32x128xbf16>, vector<128x128xbf16>, vector<32x128xf32> -> vector<32x128xf32>
    %108 = arith.addf %103, %107 : vector<32x128xf32>
    %c24_105 = arith.constant 24 : index
    %c0_106 = arith.constant 0 : index
    %109 = vector.load %arg12[%c24_105, %c0_106] : memref<112x128xbf16, #tpu.memory_space<vmem>>, vector<32x128xbf16>
    %c3_107 = arith.constant 3 : index
    %c0_108 = arith.constant 0 : index
    %c0_109 = arith.constant 0 : index
    %110 = vector.load %arg5[%c3_107, %c0_108, %c0_109] : memref<11x128x128xbf16, #tpu.memory_space<vmem>>, vector<1x128x128xbf16>
    %111 = vector.shape_cast %110 : vector<1x128x128xbf16> to vector<128x128xbf16>
    %cst_110 = arith.constant dense<0.000000e+00> : vector<32x128xf32>
    %112 = tpu.matmul %109, %111, %cst_110 {dimension_numbers = #tpu.dot_dimension_numbers<[1], [0], [0], [1], [0, 0, 1, 1], [], []>} : vector<32x128xbf16>, vector<128x128xbf16>, vector<32x128xf32> -> vector<32x128xf32>
    %113 = arith.addf %108, %112 : vector<32x128xf32>
    %c32_111 = arith.constant 32 : index
    %c0_112 = arith.constant 0 : index
    %114 = vector.load %arg12[%c32_111, %c0_112] : memref<112x128xbf16, #tpu.memory_space<vmem>>, vector<32x128xbf16>
    %c4_113 = arith.constant 4 : index
    %c0_114 = arith.constant 0 : index
    %c0_115 = arith.constant 0 : index
    %115 = vector.load %arg5[%c4_113, %c0_114, %c0_115] : memref<11x128x128xbf16, #tpu.memory_space<vmem>>, vector<1x128x128xbf16>
    %116 = vector.shape_cast %115 : vector<1x128x128xbf16> to vector<128x128xbf16>
    %cst_116 = arith.constant dense<0.000000e+00> : vector<32x128xf32>
    %117 = tpu.matmul %114, %116, %cst_116 {dimension_numbers = #tpu.dot_dimension_numbers<[1], [0], [0], [1], [0, 0, 1, 1], [], []>} : vector<32x128xbf16>, vector<128x128xbf16>, vector<32x128xf32> -> vector<32x128xf32>
    %118 = arith.addf %113, %117 : vector<32x128xf32>
    %c40_117 = arith.constant 40 : index
    %c0_118 = arith.constant 0 : index
    %119 = vector.load %arg12[%c40_117, %c0_118] : memref<112x128xbf16, #tpu.memory_space<vmem>>, vector<32x128xbf16>
    %c5 = arith.constant 5 : index
    %c0_119 = arith.constant 0 : index
    %c0_120 = arith.constant 0 : index
    %120 = vector.load %arg5[%c5, %c0_119, %c0_120] : memref<11x128x128xbf16, #tpu.memory_space<vmem>>, vector<1x128x128xbf16>
    %121 = vector.shape_cast %120 : vector<1x128x128xbf16> to vector<128x128xbf16>
    %cst_121 = arith.constant dense<0.000000e+00> : vector<32x128xf32>
    %122 = tpu.matmul %119, %121, %cst_121 {dimension_numbers = #tpu.dot_dimension_numbers<[1], [0], [0], [1], [0, 0, 1, 1], [], []>} : vector<32x128xbf16>, vector<128x128xbf16>, vector<32x128xf32> -> vector<32x128xf32>
    %123 = arith.addf %118, %122 : vector<32x128xf32>
    %c48_122 = arith.constant 48 : index
    %c0_123 = arith.constant 0 : index
    %124 = vector.load %arg12[%c48_122, %c0_123] : memref<112x128xbf16, #tpu.memory_space<vmem>>, vector<32x128xbf16>
    %c6 = arith.constant 6 : index
    %c0_124 = arith.constant 0 : index
    %c0_125 = arith.constant 0 : index
    %125 = vector.load %arg5[%c6, %c0_124, %c0_125] : memref<11x128x128xbf16, #tpu.memory_space<vmem>>, vector<1x128x128xbf16>
    %126 = vector.shape_cast %125 : vector<1x128x128xbf16> to vector<128x128xbf16>
    %cst_126 = arith.constant dense<0.000000e+00> : vector<32x128xf32>
    %127 = tpu.matmul %124, %126, %cst_126 {dimension_numbers = #tpu.dot_dimension_numbers<[1], [0], [0], [1], [0, 0, 1, 1], [], []>} : vector<32x128xbf16>, vector<128x128xbf16>, vector<32x128xf32> -> vector<32x128xf32>
    %128 = arith.addf %123, %127 : vector<32x128xf32>
    %c56 = arith.constant 56 : index
    %c0_127 = arith.constant 0 : index
    %129 = vector.load %arg12[%c56, %c0_127] : memref<112x128xbf16, #tpu.memory_space<vmem>>, vector<32x128xbf16>
    %c7 = arith.constant 7 : index
    %c0_128 = arith.constant 0 : index
    %c0_129 = arith.constant 0 : index
    %130 = vector.load %arg5[%c7, %c0_128, %c0_129] : memref<11x128x128xbf16, #tpu.memory_space<vmem>>, vector<1x128x128xbf16>
    %131 = vector.shape_cast %130 : vector<1x128x128xbf16> to vector<128x128xbf16>
    %cst_130 = arith.constant dense<0.000000e+00> : vector<32x128xf32>
    %132 = tpu.matmul %129, %131, %cst_130 {dimension_numbers = #tpu.dot_dimension_numbers<[1], [0], [0], [1], [0, 0, 1, 1], [], []>} : vector<32x128xbf16>, vector<128x128xbf16>, vector<32x128xf32> -> vector<32x128xf32>
    %133 = arith.addf %128, %132 : vector<32x128xf32>
    %c64 = arith.constant 64 : index
    %c0_131 = arith.constant 0 : index
    %134 = vector.load %arg12[%c64, %c0_131] : memref<112x128xbf16, #tpu.memory_space<vmem>>, vector<32x128xbf16>
    %c8_132 = arith.constant 8 : index
    %c0_133 = arith.constant 0 : index
    %c0_134 = arith.constant 0 : index
    %135 = vector.load %arg5[%c8_132, %c0_133, %c0_134] : memref<11x128x128xbf16, #tpu.memory_space<vmem>>, vector<1x128x128xbf16>
    %136 = vector.shape_cast %135 : vector<1x128x128xbf16> to vector<128x128xbf16>
    %cst_135 = arith.constant dense<0.000000e+00> : vector<32x128xf32>
    %137 = tpu.matmul %134, %136, %cst_135 {dimension_numbers = #tpu.dot_dimension_numbers<[1], [0], [0], [1], [0, 0, 1, 1], [], []>} : vector<32x128xbf16>, vector<128x128xbf16>, vector<32x128xf32> -> vector<32x128xf32>
    %138 = arith.addf %133, %137 : vector<32x128xf32>
    %c72_136 = arith.constant 72 : index
    %c0_137 = arith.constant 0 : index
    %139 = vector.load %arg12[%c72_136, %c0_137] : memref<112x128xbf16, #tpu.memory_space<vmem>>, vector<32x128xbf16>
    %c9 = arith.constant 9 : index
    %c0_138 = arith.constant 0 : index
    %c0_139 = arith.constant 0 : index
    %140 = vector.load %arg5[%c9, %c0_138, %c0_139] : memref<11x128x128xbf16, #tpu.memory_space<vmem>>, vector<1x128x128xbf16>
    %141 = vector.shape_cast %140 : vector<1x128x128xbf16> to vector<128x128xbf16>
    %cst_140 = arith.constant dense<0.000000e+00> : vector<32x128xf32>
    %142 = tpu.matmul %139, %141, %cst_140 {dimension_numbers = #tpu.dot_dimension_numbers<[1], [0], [0], [1], [0, 0, 1, 1], [], []>} : vector<32x128xbf16>, vector<128x128xbf16>, vector<32x128xf32> -> vector<32x128xf32>
    %143 = arith.addf %138, %142 : vector<32x128xf32>
    %c80 = arith.constant 80 : index
    %c0_141 = arith.constant 0 : index
    %144 = vector.load %arg12[%c80, %c0_141] : memref<112x128xbf16, #tpu.memory_space<vmem>>, vector<32x128xbf16>
    %c10 = arith.constant 10 : index
    %c0_142 = arith.constant 0 : index
    %c0_143 = arith.constant 0 : index
    %145 = vector.load %arg5[%c10, %c0_142, %c0_143] : memref<11x128x128xbf16, #tpu.memory_space<vmem>>, vector<1x128x128xbf16>
    %146 = vector.shape_cast %145 : vector<1x128x128xbf16> to vector<128x128xbf16>
    %cst_144 = arith.constant dense<0.000000e+00> : vector<32x128xf32>
    %147 = tpu.matmul %144, %146, %cst_144 {dimension_numbers = #tpu.dot_dimension_numbers<[1], [0], [0], [1], [0, 0, 1, 1], [], []>} : vector<32x128xbf16>, vector<128x128xbf16>, vector<32x128xf32> -> vector<32x128xf32>
    %148 = arith.addf %143, %147 : vector<32x128xf32>
    %149 = vector.broadcast %92 : vector<1x128xf32> to vector<32x128xf32>
    %150 = arith.addf %148, %149 : vector<32x128xf32>
    %cst_145 = arith.constant 0.000000e+00 : f32
    %151 = vector.broadcast %cst_145 : f32 to vector<32x128xf32>
    %152 = arith.cmpf oge, %150, %151 : vector<32x128xf32>
    %cst_146 = arith.constant 2.000000e-01 : f32
    %153 = vector.broadcast %cst_146 : f32 to vector<32x128xf32>
    %154 = arith.mulf %153, %150 : vector<32x128xf32>
    %155 = arith.select %152, %150, %154 : vector<32x128xi1>, vector<32x128xf32>
    %c0_147 = arith.constant 0 : index
    %c0_148 = arith.constant 0 : index
    %156 = vector.load %arg9[%c0_147, %c0_148] : memref<32x128xf32, #tpu.memory_space<vmem>>, vector<32x128xf32>
    tpu.vector_store %arg9[%c0_147, %c0_148], %155 {strides = array<i32>} : memref<32x128xf32, #tpu.memory_space<vmem>>, vector<32x128xf32>,
    return
  }
  func.func @transform_0(%arg0: i32) -> (i32, i32) {
    %c0_i32 = arith.constant 0 : i32
    %c0_i32_0 = arith.constant 0 : i32
    return %arg0, %c0_i32 : i32, i32
  }
  func.func @transform_1(%arg0: i32) -> (i32, i32, i32) {
    %c0_i32 = arith.constant 0 : i32
    %c0_i32_0 = arith.constant 0 : i32
    %c0_i32_1 = arith.constant 0 : i32
    %c0_i32_2 = arith.constant 0 : i32
    return %c0_i32, %c0_i32_0, %c0_i32_1 : i32, i32, i32
  }
  func.func @transform_2(%arg0: i32) -> (i32, i32, i32) {
    %c0_i32 = arith.constant 0 : i32
    %c0_i32_0 = arith.constant 0 : i32
    %c0_i32_1 = arith.constant 0 : i32
    %c0_i32_2 = arith.constant 0 : i32
    return %c0_i32, %c0_i32_0, %c0_i32_1 : i32, i32, i32
  }
  func.func @transform_3(%arg0: i32) -> (i32, i32, i32) {
    %c0_i32 = arith.constant 0 : i32
    %c0_i32_0 = arith.constant 0 : i32
    %c0_i32_1 = arith.constant 0 : i32
    %c0_i32_2 = arith.constant 0 : i32
    return %c0_i32, %c0_i32_0, %c0_i32_1 : i32, i32, i32
  }
  func.func @transform_4(%arg0: i32) -> (i32, i32, i32) {
    %c0_i32 = arith.constant 0 : i32
    %c0_i32_0 = arith.constant 0 : i32
    %c0_i32_1 = arith.constant 0 : i32
    %c0_i32_2 = arith.constant 0 : i32
    return %c0_i32, %c0_i32_0, %c0_i32_1 : i32, i32, i32
  }
  func.func @transform_5(%arg0: i32) -> (i32, i32) {
    %c0_i32 = arith.constant 0 : i32
    %c0_i32_0 = arith.constant 0 : i32
    %c0_i32_1 = arith.constant 0 : i32
    return %c0_i32, %c0_i32_0 : i32, i32
  }
  func.func @transform_6(%arg0: i32) -> (i32, i32) {
    %c0_i32 = arith.constant 0 : i32
    %c0_i32_0 = arith.constant 0 : i32
    %c0_i32_1 = arith.constant 0 : i32
    return %c0_i32, %c0_i32_0 : i32, i32
  }
  func.func @transform_7(%arg0: i32) -> (i32, i32) {
    %c0_i32 = arith.constant 0 : i32
    %c0_i32_0 = arith.constant 0 : i32
    %c0_i32_1 = arith.constant 0 : i32
    return %c0_i32, %c0_i32_0 : i32, i32
  }
  func.func @transform_8(%arg0: i32) -> (i32, i32) {
    %c0_i32 = arith.constant 0 : i32
    %c0_i32_0 = arith.constant 0 : i32
    return %arg0, %c0_i32 : i32, i32
  }
}

</mosaic_0001>

<llo_original>
// kernel: stage1_d_forward.1
$region0: #{stage1_d_forward.1}
  #allocation0 [shape = 'u32[]', space=smem, size = 0x4, offset = 0x4, fixed_abs, tag = 'smem constant byte address 0x4 - core index']
  #allocation1 [shape = 'u32[72,128]{1,0:T(1,128)}', space=vmem, size = 0x9000, scoped, tag = 'internal scratch']
  #allocation2 [shape = 'bf16[48,512]{1,0:T(8,128)(2,1)}', space=vmem, size = 0xc000, scoped, tag = 'scratch operand']
  #allocation3 [shape = 'bf16[64,256]{1,0:T(8,128)(2,1)}', space=vmem, size = 0x8000, scoped, tag = 'scratch operand']
  #allocation4 [shape = 'bf16[112,128]{1,0:T(8,128)(2,1)}', space=vmem, size = 0x7000, scoped, tag = 'scratch operand']
  %s0 = inlined_call_operand.vmem [shape: bf16[40,256], index: 0, kind: input, shape index: {}]
  %s1 = inlined_call_operand.vmem [shape: bf16[2,256,512], index: 1, kind: input, shape index: {}]
  %s2 = inlined_call_operand.vmem [shape: bf16[3,512,256], index: 2, kind: input, shape index: {}]
  %s3 = inlined_call_operand.hbm [shape: bf16[5,256,128], index: 3, kind: input, shape index: {}]
  %s4 = inlined_call_operand.vmem [shape: bf16[11,128,128], index: 4, kind: input, shape index: {}]
  %s5 = inlined_call_operand.vmem [shape: f32[1,256], index: 5, kind: input, shape index: {}]
  %s6 = inlined_call_operand.vmem [shape: f32[1,128], index: 6, kind: input, shape index: {}]
  %s7 = inlined_call_operand.vmem [shape: f32[1,128], index: 7, kind: input, shape index: {}]
  %s8 = inlined_call_operand.vmem [shape: f32[32,128], index: 8, kind: output, shape index: {}]
  %s9 = sld [smem:[#allocation0]]
  $region46: #{stage1_d_forward.1} parent=0
    _
  %s11 = ssub.s32 1, %s9
  %s12 = scalar_select 0, %s11, %s9
  $region1: #{stage1_d_forward.1} parent=0
    #allocation5 [shape = 'u8[327680]{0}', space=vmem, size = 0x50000, scoped, tag = 'input window, operand 3, single buffered']
    #allocation6 [shape = 's32[1]{0}', space=sflag, size = 0x4, scoped, tag = 'scoped memory for stage1_d_forward.1']
    %13 = vsyncpa [#allocation6], 0
    // Predicated region
    $region2: #{stage1_d_forward.1} parent=1 // pred_check
      _
    $region3: #{stage1_d_forward.1} parent=1 // pred_check_branch
      %15 = sbr.rel (0) target = $region5
    $region4: #{stage1_d_forward.1} parent=1 // pred_region
      _
    $region5: #{stage1_d_forward.1} parent=1 // pred_fallthru
      _
    // Predicated region
    $region6: #{stage1_d_forward.1} parent=1 // pred_check
      _
    $region7: #{stage1_d_forward.1} parent=1 // pred_check_branch
      %17 = sbr.rel (0) target = $region9
    $region8: #{stage1_d_forward.1} parent=1 // pred_region
      _
    $region9: #{stage1_d_forward.1} parent=1 // pred_fallthru
      _
    // Predicated region
    $region10: #{stage1_d_forward.1} parent=1 // pred_check
      _
    $region11: #{stage1_d_forward.1} parent=1 // pred_check_branch
      %19 = sbr.rel (0) target = $region13
    $region12: #{stage1_d_forward.1} parent=1 // pred_region
      _
    $region13: #{stage1_d_forward.1} parent=1 // pred_fallthru
      _
    // Predicated region
    $region14: #{stage1_d_forward.1} parent=1 // pred_check
      _
    $region15: #{stage1_d_forward.1} parent=1 // pred_check_branch
      %21 = sbr.rel (0) target = $region17
    $region16: #{stage1_d_forward.1} parent=1 // pred_region
      %23 = vsyncadd [#allocation6], 0
      %s24 = sshll.u32 %s3, 4
      %s25 = int_to_ptr.hbm [resolvable:$true] %s24
      %s26 = sshll.u32 [#allocation5], 4
      %s27 = int_to_ptr.vmem [resolvable:$true] %s26
      %32 = dma.hbm_to_vmem [thread:$0]  %s25, 10240, %s27, [#allocation6], 64, 64, 4
    $region17: #{stage1_d_forward.1} parent=1 // pred_fallthru
      _
    // Predicated region
    $region18: #{stage1_d_forward.1} parent=1 // pred_check
      _
    $region19: #{stage1_d_forward.1} parent=1 // pred_check_branch
      %34 = sbr.rel (0) target = $region21
    $region20: #{stage1_d_forward.1} parent=1 // pred_region
      _
    $region21: #{stage1_d_forward.1} parent=1 // pred_fallthru
      _
    // Predicated region
    $region22: #{stage1_d_forward.1} parent=1 // pred_check
      _
    $region23: #{stage1_d_forward.1} parent=1 // pred_check_branch
      %36 = sbr.rel (0) target = $region25
    $region24: #{stage1_d_forward.1} parent=1 // pred_region
      _
    $region25: #{stage1_d_forward.1} parent=1 // pred_fallthru
      _
    // Predicated region
    $region26: #{stage1_d_forward.1} parent=1 // pred_check
      _
    $region27: #{stage1_d_forward.1} parent=1 // pred_check_branch
      %38 = sbr.rel (0) target = $region29
    $region28: #{stage1_d_forward.1} parent=1 // pred_region
      _
    $region29: #{stage1_d_forward.1} parent=1 // pred_fallthru
      _
    // Predicated region
    $region30: #{stage1_d_forward.1} parent=1 // pred_check
      _
    $region31: #{stage1_d_forward.1} parent=1 // pred_check_branch
      %40 = sbr.rel (0) target = $region33
    $region32: #{stage1_d_forward.1} parent=1 // pred_region
      _
    $region33: #{stage1_d_forward.1} parent=1 // pred_fallthru
      _
    // Predicated region
    $region34: #{stage1_d_forward.1} parent=1 // pred_check
      _
    $region35: #{stage1_d_forward.1} parent=1 // pred_check_branch
      %42 = sbr.rel (0) target = $region37
    $region36: #{stage1_d_forward.1} parent=1 // pred_region
      %44 = dma.done [#allocation6], 10240
    $region37: #{stage1_d_forward.1} parent=1 // pred_fallthru
      _
    %46 = vst [vmem:[#allocation2] sm:$0xff] 0
    %47 = vst [vmem:[#allocation2 + $0x8] sm:$0xff] 0
    %48 = vst [vmem:[#allocation2 + $0x50] sm:$0xff] 0
    %49 = vst [vmem:[#allocation2 + $0x58] sm:$0xff] 0
    %50 = vst [vmem:[#allocation3] sm:$0xff] 0
    %51 = vst [vmem:[#allocation3 + $0x8] sm:$0xff] 0
    %52 = vst [vmem:[#allocation3 + $0x30] sm:$0xff] 0
    %53 = vst [vmem:[#allocation3 + $0x38] sm:$0xff] 0
    %54 = vst [vmem:[#allocation4] sm:$0xf] 0
    %55 = vst [vmem:[#allocation4 + $0x4] sm:$0xf] 0
    %56 = vst [vmem:[#allocation4 + $0x8] sm:$0xf] 0
    %57 = vst [vmem:[#allocation4 + $0xc] sm:$0xf] 0
    %58 = vst [vmem:[#allocation4 + $0x10] sm:$0xf] 0
    %59 = vst [vmem:[#allocation4 + $0x24] sm:$0xf] 0
    %60 = vst [vmem:[#allocation4 + $0x28] sm:$0xf] 0
    %61 = vst [vmem:[#allocation4 + $0x2c] sm:$0xf] 0
    %62 = vst [vmem:[#allocation4 + $0x30] sm:$0xf] 0
    %63 = vst [vmem:[#allocation4 + $0x34] sm:$0xf] 0
    %v64 = vld [vmem:[%s0] sm:$0xff]
    %v65 = vld [vmem:[%s0 + $0x8] sm:$0xff]
    %v66 = vld [vmem:[%s0 + $0x10] sm:$0xff]
    %v67 = vld [vmem:[%s0 + $0x18] sm:$0xff]
    %v68 = vld [vmem:[%s1] sm:$0xff]
    %v69 = vld [vmem:[%s1 + $0x8] sm:$0xff]
    %v70 = vld [vmem:[%s1 + $0x10] sm:$0xff]
    %v71 = vld [vmem:[%s1 + $0x18] sm:$0xff]
    %v72 = vld [vmem:[%s1 + $0x20] sm:$0xff]
    %v73 = vld [vmem:[%s1 + $0x28] sm:$0xff]
    %v74 = vld [vmem:[%s1 + $0x30] sm:$0xff]
    %v75 = vld [vmem:[%s1 + $0x38] sm:$0xff]
    %v76 = vld [vmem:[%s1 + $0x40] sm:$0xff]
    %v77 = vld [vmem:[%s1 + $0x48] sm:$0xff]
    %v78 = vld [vmem:[%s1 + $0x50] sm:$0xff]
    %v79 = vld [vmem:[%s1 + $0x58] sm:$0xff]
    %v80 = vld [vmem:[%s1 + $0x60] sm:$0xff]
    %v81 = vld [vmem:[%s1 + $0x68] sm:$0xff]
    %v82 = vld [vmem:[%s1 + $0x70] sm:$0xff]
    %v83 = vld [vmem:[%s1 + $0x78] sm:$0xff]
    %v84 = vld [vmem:[%s1 + $0x80] sm:$0xff]
    %v85 = vld [vmem:[%s1 + $0x88] sm:$0xff]
    %v86 = vld [vmem:[%s1 + $0x90] sm:$0xff]
    %v87 = vld [vmem:[%s1 + $0x98] sm:$0xff]
    %v88 = vld [vmem:[%s1 + $0xa0] sm:$0xff]
    %v89 = vld [vmem:[%s1 + $0xa8] sm:$0xff]
    %v90 = vld [vmem:[%s1 + $0xb0] sm:$0xff]
    %v91 = vld [vmem:[%s1 + $0xb8] sm:$0xff]
    %v92 = vld [vmem:[%s1 + $0xc0] sm:$0xff]
    %v93 = vld [vmem:[%s1 + $0xc8] sm:$0xff]
    %v94 = vld [vmem:[%s1 + $0xd0] sm:$0xff]
    %v95 = vld [vmem:[%s1 + $0xd8] sm:$0xff]
    %v96 = vld [vmem:[%s1 + $0xe0] sm:$0xff]
    %v97 = vld [vmem:[%s1 + $0xe8] sm:$0xff]
    %v98 = vld [vmem:[%s1 + $0xf0] sm:$0xff]
    %v99 = vld [vmem:[%s1 + $0xf8] sm:$0xff]
    %v100 = vld [vmem:[%s1 + $0x100] sm:$0xff]
    %v101 = vld [vmem:[%s1 + $0x108] sm:$0xff]
    %v102 = vld [vmem:[%s1 + $0x110] sm:$0xff]
    %v103 = vld [vmem:[%s1 + $0x118] sm:$0xff]
    %v104 = vld [vmem:[%s1 + $0x120] sm:$0xff]
    %v105 = vld [vmem:[%s1 + $0x128] sm:$0xff]
    %v106 = vld [vmem:[%s1 + $0x130] sm:$0xff]
    %v107 = vld [vmem:[%s1 + $0x138] sm:$0xff]
    %v108 = vld [vmem:[%s1 + $0x140] sm:$0xff]
    %v109 = vld [vmem:[%s1 + $0x148] sm:$0xff]
    %v110 = vld [vmem:[%s1 + $0x150] sm:$0xff]
    %v111 = vld [vmem:[%s1 + $0x158] sm:$0xff]
    %v112 = vld [vmem:[%s1 + $0x160] sm:$0xff]
    %v113 = vld [vmem:[%s1 + $0x168] sm:$0xff]
    %v114 = vld [vmem:[%s1 + $0x170] sm:$0xff]
    %v115 = vld [vmem:[%s1 + $0x178] sm:$0xff]
    %v116 = vld [vmem:[%s1 + $0x180] sm:$0xff]
    %v117 = vld [vmem:[%s1 + $0x188] sm:$0xff]
    %v118 = vld [vmem:[%s1 + $0x190] sm:$0xff]
    %v119 = vld [vmem:[%s1 + $0x198] sm:$0xff]
    %v120 = vld [vmem:[%s1 + $0x1a0] sm:$0xff]
    %v121 = vld [vmem:[%s1 + $0x1a8] sm:$0xff]
    %v122 = vld [vmem:[%s1 + $0x1b0] sm:$0xff]
    %v123 = vld [vmem:[%s1 + $0x1b8] sm:$0xff]
    %v124 = vld [vmem:[%s1 + $0x1c0] sm:$0xff]
    %v125 = vld [vmem:[%s1 + $0x1c8] sm:$0xff]
    %v126 = vld [vmem:[%s1 + $0x1d0] sm:$0xff]
    %v127 = vld [vmem:[%s1 + $0x1d8] sm:$0xff]
    %v128 = vld [vmem:[%s1 + $0x1e0] sm:$0xff]
    %v129 = vld [vmem:[%s1 + $0x1e8] sm:$0xff]
    %v130 = vld [vmem:[%s1 + $0x1f0] sm:$0xff]
    %v131 = vld [vmem:[%s1 + $0x1f8] sm:$0xff]
    %v132 = vld [vmem:[%s0 + $0x8] sm:$0xff]
    %v133 = vld [vmem:[%s0 + $0x10] sm:$0xff]
    %v134 = vld [vmem:[%s0 + $0x18] sm:$0xff]
    %v135 = vld [vmem:[%s0 + $0x20] sm:$0xff]
    %s136 = scalar_lea.vmem %s1, 512
    %v137 = vld [vmem:[%s136] sm:$0xff]
    %v138 = vld [vmem:[%s136 + $0x8] sm:$0xff]
    %v139 = vld [vmem:[%s136 + $0x10] sm:$0xff]
    %v140 = vld [vmem:[%s136 + $0x18] sm:$0xff]
    %v141 = vld [vmem:[%s136 + $0x20] sm:$0xff]
    %v142 = vld [vmem:[%s136 + $0x28] sm:$0xff]
    %v143 = vld [vmem:[%s136 + $0x30] sm:$0xff]
    %v144 = vld [vmem:[%s136 + $0x38] sm:$0xff]
    %v145 = vld [vmem:[%s136 + $0x40] sm:$0xff]
    %v146 = vld [vmem:[%s136 + $0x48] sm:$0xff]
    %v147 = vld [vmem:[%s136 + $0x50] sm:$0xff]
    %v148 = vld [vmem:[%s136 + $0x58] sm:$0xff]
    %v149 = vld [vmem:[%s136 + $0x60] sm:$0xff]
    %v150 = vld [vmem:[%s136 + $0x68] sm:$0xff]
    %v151 = vld [vmem:[%s136 + $0x70] sm:$0xff]
    %v152 = vld [vmem:[%s136 + $0x78] sm:$0xff]
    %v153 = vld [vmem:[%s136 + $0x80] sm:$0xff]
    %v154 = vld [vmem:[%s136 + $0x88] sm:$0xff]
    %v155 = vld [vmem:[%s136 + $0x90] sm:$0xff]
    %v156 = vld [vmem:[%s136 + $0x98] sm:$0xff]
    %v157 = vld [vmem:[%s136 + $0xa0] sm:$0xff]
    %v158 = vld [vmem:[%s136 + $0xa8] sm:$0xff]
    %v159 = vld [vmem:[%s136 + $0xb0] sm:$0xff]
    %v160 = vld [vmem:[%s136 + $0xb8] sm:$0xff]
    %v161 = vld [vmem:[%s136 + $0xc0] sm:$0xff]
    %v162 = vld [vmem:[%s136 + $0xc8] sm:$0xff]
    %v163 = vld [vmem:[%s136 + $0xd0] sm:$0xff]
    %v164 = vld [vmem:[%s136 + $0xd8] sm:$0xff]
    %v165 = vld [vmem:[%s136 + $0xe0] sm:$0xff]
    %v166 = vld [vmem:[%s136 + $0xe8] sm:$0xff]
    %v167 = vld [vmem:[%s136 + $0xf0] sm:$0xff]
    %v168 = vld [vmem:[%s136 + $0xf8] sm:$0xff]
    %v169 = vld [vmem:[%s136 + $0x100] sm:$0xff]
    %v170 = vld [vmem:[%s136 + $0x108] sm:$0xff]
    %v171 = vld [vmem:[%s136 + $0x110] sm:$0xff]
    %v172 = vld [vmem:[%s136 + $0x118] sm:$0xff]
    %v173 = vld [vmem:[%s136 + $0x120] sm:$0xff]
    %v174 = vld [vmem:[%s136 + $0x128] sm:$0xff]
    %v175 = vld [vmem:[%s136 + $0x130] sm:$0xff]
    %v176 = vld [vmem:[%s136 + $0x138] sm:$0xff]
    %v177 = vld [vmem:[%s136 + $0x140] sm:$0xff]
    %v178 = vld [vmem:[%s136 + $0x148] sm:$0xff]
    %v179 = vld [vmem:[%s136 + $0x150] sm:$0xff]
    %v180 = vld [vmem:[%s136 + $0x158] sm:$0xff]
    %v181 = vld [vmem:[%s136 + $0x160] sm:$0xff]
    %v182 = vld [vmem:[%s136 + $0x168] sm:$0xff]
    %v183 = vld [vmem:[%s136 + $0x170] sm:$0xff]
    %v184 = vld [vmem:[%s136 + $0x178] sm:$0xff]
    %v185 = vld [vmem:[%s136 + $0x180] sm:$0xff]
    %v186 = vld [vmem:[%s136 + $0x188] sm:$0xff]
    %v187 = vld [vmem:[%s136 + $0x190] sm:$0xff]
    %v188 = vld [vmem:[%s136 + $0x198] sm:$0xff]
    %v189 = vld [vmem:[%s136 + $0x1a0] sm:$0xff]
    %v190 = vld [vmem:[%s136 + $0x1a8] sm:$0xff]
    %v191 = vld [vmem:[%s136 + $0x1b0] sm:$0xff]
    %v192 = vld [vmem:[%s136 + $0x1b8] sm:$0xff]
    %v193 = vld [vmem:[%s136 + $0x1c0] sm:$0xff]
    %v194 = vld [vmem:[%s136 + $0x1c8] sm:$0xff]
    %v195 = vld [vmem:[%s136 + $0x1d0] sm:$0xff]
    %v196 = vld [vmem:[%s136 + $0x1d8] sm:$0xff]
    %v197 = vld [vmem:[%s136 + $0x1e0] sm:$0xff]
    %v198 = vld [vmem:[%s136 + $0x1e8] sm:$0xff]
    %v199 = vld [vmem:[%s136 + $0x1f0] sm:$0xff]
    %v200 = vld [vmem:[%s136 + $0x1f8] sm:$0xff]
    %v205 = vunpack.c.l.b16 %v132
    %v206 = vunpack.c.h.b16 %v132
    %v207 = vunpack.c.l.b16 %v133
    %v208 = vunpack.c.h.b16 %v133
    %v209 = vunpack.c.l.b16 %v134
    %v210 = vunpack.c.h.b16 %v134
    %v211 = vunpack.c.l.b16 %v135
    %v212 = vunpack.c.h.b16 %v135
    %v213 = vpack.c.b16 %v207, %v205
    %v214 = vpack.c.b16 %v208, %v206
    %v215 = vpack.c.b16 %v211, %v209
    %v216 = vpack.c.b16 %v212, %v210
    %v285 = vunpack.c.l.b16 %v137
    %v286 = vunpack.c.h.b16 %v137
    %v287 = vunpack.c.l.b16 %v138
    %v288 = vunpack.c.h.b16 %v138
    %v289 = vunpack.c.l.b16 %v139
    %v290 = vunpack.c.h.b16 %v139
    %v291 = vunpack.c.l.b16 %v140
    %v292 = vunpack.c.h.b16 %v140
    %v293 = vunpack.c.l.b16 %v141
    %v294 = vunpack.c.h.b16 %v141
    %v295 = vunpack.c.l.b16 %v142
    %v296 = vunpack.c.h.b16 %v142
    %v297 = vunpack.c.l.b16 %v143
    %v298 = vunpack.c.h.b16 %v143
    %v299 = vunpack.c.l.b16 %v144
    %v300 = vunpack.c.h.b16 %v144
    %v301 = vunpack.c.l.b16 %v145
    %v302 = vunpack.c.h.b16 %v145
    %v303 = vunpack.c.l.b16 %v146
    %v304 = vunpack.c.h.b16 %v146
    %v305 = vunpack.c.l.b16 %v147
    %v306 = vunpack.c.h.b16 %v147
    %v307 = vunpack.c.l.b16 %v148
    %v308 = vunpack.c.h.b16 %v148
    %v309 = vunpack.c.l.b16 %v149
    %v310 = vunpack.c.h.b16 %v149
    %v311 = vunpack.c.l.b16 %v150
    %v312 = vunpack.c.h.b16 %v150
    %v313 = vunpack.c.l.b16 %v151
    %v314 = vunpack.c.h.b16 %v151
    %v315 = vunpack.c.l.b16 %v152
    %v316 = vunpack.c.h.b16 %v152
    %v317 = vunpack.c.l.b16 %v153
    %v318 = vunpack.c.h.b16 %v153
    %v319 = vunpack.c.l.b16 %v154
    %v320 = vunpack.c.h.b16 %v154
    %v321 = vunpack.c.l.b16 %v155
    %v322 = vunpack.c.h.b16 %v155
    %v323 = vunpack.c.l.b16 %v156
    %v324 = vunpack.c.h.b16 %v156
    %v325 = vunpack.c.l.b16 %v157
    %v326 = vunpack.c.h.b16 %v157
    %v327 = vunpack.c.l.b16 %v158
    %v328 = vunpack.c.h.b16 %v158
    %v329 = vunpack.c.l.b16 %v159
    %v330 = vunpack.c.h.b16 %v159
    %v331 = vunpack.c.l.b16 %v160
    %v332 = vunpack.c.h.b16 %v160
    %v333 = vunpack.c.l.b16 %v161
    %v334 = vunpack.c.h.b16 %v161
    %v335 = vunpack.c.l.b16 %v162
    %v336 = vunpack.c.h.b16 %v162
    %v337 = vunpack.c.l.b16 %v163
    %v338 = vunpack.c.h.b16 %v163
    %v339 = vunpack.c.l.b16 %v164
    %v340 = vunpack.c.h.b16 %v164
    %v341 = vunpack.c.l.b16 %v165
    %v342 = vunpack.c.h.b16 %v165
    %v343 = vunpack.c.l.b16 %v166
    %v344 = vunpack.c.h.b16 %v166
    %v345 = vunpack.c.l.b16 %v167
    %v346 = vunpack.c.h.b16 %v167
    %v347 = vunpack.c.l.b16 %v168
    %v348 = vunpack.c.h.b16 %v168
    %v349 = vunpack.c.l.b16 %v169
    %v350 = vunpack.c.h.b16 %v169
    %v351 = vunpack.c.l.b16 %v170
    %v352 = vunpack.c.h.b16 %v170
    %v353 = vunpack.c.l.b16 %v171
    %v354 = vunpack.c.h.b16 %v171
    %v355 = vunpack.c.l.b16 %v172
    %v356 = vunpack.c.h.b16 %v172
    %v357 = vunpack.c.l.b16 %v173
    %v358 = vunpack.c.h.b16 %v173
    %v359 = vunpack.c.l.b16 %v174
    %v360 = vunpack.c.h.b16 %v174
    %v361 = vunpack.c.l.b16 %v175
    %v362 = vunpack.c.h.b16 %v175
    %v363 = vunpack.c.l.b16 %v176
    %v364 = vunpack.c.h.b16 %v176
    %v365 = vunpack.c.l.b16 %v177
    %v366 = vunpack.c.h.b16 %v177
    %v367 = vunpack.c.l.b16 %v178
    %v368 = vunpack.c.h.b16 %v178
    %v369 = vunpack.c.l.b16 %v179
    %v370 = vunpack.c.h.b16 %v179
    %v371 = vunpack.c.l.b16 %v180
    %v372 = vunpack.c.h.b16 %v180
    %v373 = vunpack.c.l.b16 %v181
    %v374 = vunpack.c.h.b16 %v181
    %v375 = vunpack.c.l.b16 %v182
    %v376 = vunpack.c.h.b16 %v182
    %v377 = vunpack.c.l.b16 %v183
    %v378 = vunpack.c.h.b16 %v183
    %v379 = vunpack.c.l.b16 %v184
    %v380 = vunpack.c.h.b16 %v184
    %v381 = vunpack.c.l.b16 %v185
    %v382 = vunpack.c.h.b16 %v185
    %v383 = vunpack.c.l.b16 %v186
    %v384 = vunpack.c.h.b16 %v186
    %v385 = vunpack.c.l.b16 %v187
    %v386 = vunpack.c.h.b16 %v187
    %v387 = vunpack.c.l.b16 %v188
    %v388 = vunpack.c.h.b16 %v188
    %v389 = vunpack.c.l.b16 %v189
    %v390 = vunpack.c.h.b16 %v189
    %v391 = vunpack.c.l.b16 %v190
    %v392 = vunpack.c.h.b16 %v190
    %v393 = vunpack.c.l.b16 %v191
    %v394 = vunpack.c.h.b16 %v191
    %v395 = vunpack.c.l.b16 %v192
    %v396 = vunpack.c.h.b16 %v192
    %v397 = vunpack.c.l.b16 %v193
    %v398 = vunpack.c.h.b16 %v193
    %v399 = vunpack.c.l.b16 %v194
    %v400 = vunpack.c.h.b16 %v194
    %v401 = vunpack.c.l.b16 %v195
    %v402 = vunpack.c.h.b16 %v195
    %v403 = vunpack.c.l.b16 %v196
    %v404 = vunpack.c.h.b16 %v196
    %v405 = vunpack.c.l.b16 %v197
    %v406 = vunpack.c.h.b16 %v197
    %v407 = vunpack.c.l.b16 %v198
    %v408 = vunpack.c.h.b16 %v198
    %v409 = vunpack.c.l.b16 %v199
    %v410 = vunpack.c.h.b16 %v199
    %v411 = vunpack.c.l.b16 %v200
    %v412 = vunpack.c.h.b16 %v200
    %v413 = vpack.c.b16 %v289, %v285
    %v414 = vpack.c.b16 %v290, %v286
    %v415 = vpack.c.b16 %v291, %v287
    %v416 = vpack.c.b16 %v292, %v288
    %v417 = vpack.c.b16 %v297, %v293
    %v418 = vpack.c.b16 %v298, %v294
    %v419 = vpack.c.b16 %v299, %v295
    %v420 = vpack.c.b16 %v300, %v296
    %v421 = vpack.c.b16 %v305, %v301
    %v422 = vpack.c.b16 %v306, %v302
    %v423 = vpack.c.b16 %v307, %v303
    %v424 = vpack.c.b16 %v308, %v304
    %v425 = vpack.c.b16 %v313, %v309
    %v426 = vpack.c.b16 %v314, %v310
    %v427 = vpack.c.b16 %v315, %v311
    %v428 = vpack.c.b16 %v316, %v312
    %v429 = vpack.c.b16 %v321, %v317
    %v430 = vpack.c.b16 %v322, %v318
    %v431 = vpack.c.b16 %v323, %v319
    %v432 = vpack.c.b16 %v324, %v320
    %v433 = vpack.c.b16 %v329, %v325
    %v434 = vpack.c.b16 %v330, %v326
    %v435 = vpack.c.b16 %v331, %v327
    %v436 = vpack.c.b16 %v332, %v328
    %v437 = vpack.c.b16 %v337, %v333
    %v438 = vpack.c.b16 %v338, %v334
    %v439 = vpack.c.b16 %v339, %v335
    %v440 = vpack.c.b16 %v340, %v336
    %v441 = vpack.c.b16 %v345, %v341
    %v442 = vpack.c.b16 %v346, %v342
    %v443 = vpack.c.b16 %v347, %v343
    %v444 = vpack.c.b16 %v348, %v344
    %v445 = vpack.c.b16 %v353, %v349
    %v446 = vpack.c.b16 %v354, %v350
    %v447 = vpack.c.b16 %v355, %v351
    %v448 = vpack.c.b16 %v356, %v352
    %v449 = vpack.c.b16 %v361, %v357
    %v450 = vpack.c.b16 %v362, %v358
    %v451 = vpack.c.b16 %v363, %v359
    %v452 = vpack.c.b16 %v364, %v360
    %v453 = vpack.c.b16 %v369, %v365
    %v454 = vpack.c.b16 %v370, %v366
    %v455 = vpack.c.b16 %v371, %v367
    %v456 = vpack.c.b16 %v372, %v368
    %v457 = vpack.c.b16 %v377, %v373
    %v458 = vpack.c.b16 %v378, %v374
    %v459 = vpack.c.b16 %v379, %v375
    %v460 = vpack.c.b16 %v380, %v376
    %v461 = vpack.c.b16 %v385, %v381
    %v462 = vpack.c.b16 %v386, %v382
    %v463 = vpack.c.b16 %v387, %v383
    %v464 = vpack.c.b16 %v388, %v384
    %v465 = vpack.c.b16 %v393, %v389
    %v466 = vpack.c.b16 %v394, %v390
    %v467 = vpack.c.b16 %v395, %v391
    %v468 = vpack.c.b16 %v396, %v392
    %v469 = vpack.c.b16 %v401, %v397
    %v470 = vpack.c.b16 %v402, %v398
    %v471 = vpack.c.b16 %v403, %v399
    %v472 = vpack.c.b16 %v404, %v400
    %v473 = vpack.c.b16 %v409, %v405
    %v474 = vpack.c.b16 %v410, %v406
    %v475 = vpack.c.b16 %v411, %v407
    %v476 = vpack.c.b16 %v412, %v408
    %541 = vmatpush.bf16.msra.mxu0 %v441
    %542 = vmatpush.bf16.msra.mxu0 %v437
    %543 = vmatpush.bf16.msra.mxu0 %v433
    %544 = vmatpush.bf16.msra.mxu0 %v429
    %545 = vmatpush.bf16.msra.mxu0 %v425
    %546 = vmatpush.bf16.msra.mxu0 %v421
    %547 = vmatpush.bf16.msra.mxu0 %v417
    %548 = vmatpush.bf16.msra.mxu0 %v413
    %549 = vmatmul.bf16.gmra.mxu0 %v213
    %v550 = vpop.f32.mrf.mxu0
    %v551 = vadd.f32 0.0, %v550
    %v552 = vpop.f32.mrf.mxu0
    %v553 = vadd.f32 0.0, %v552
    %554 = vmatmul.bf16.gmra.mxu0 %v215
    %v555 = vpop.f32.mrf.mxu0
    %v556 = vadd.f32 0.0, %v555
    %v557 = vpop.f32.mrf.mxu0
    %v558 = vadd.f32 0.0, %v557
    %559 = vdwg.mxu0
    %560 = vmatpush.bf16.msra.mxu0 %v473
    %561 = vmatpush.bf16.msra.mxu0 %v469
    %562 = vmatpush.bf16.msra.mxu0 %v465
    %563 = vmatpush.bf16.msra.mxu0 %v461
    %564 = vmatpush.bf16.msra.mxu0 %v457
    %565 = vmatpush.bf16.msra.mxu0 %v453
    %566 = vmatpush.bf16.msra.mxu0 %v449
    %567 = vmatpush.bf16.msra.mxu0 %v445
    %568 = vmatmul.bf16.gmra.mxu0 %v214
    %v569 = vpop.f32.mrf.mxu0
    %v570 = vadd.f32 %v551, %v569
    %v571 = vpop.f32.mrf.mxu0
    %v572 = vadd.f32 %v553, %v571
    %573 = vmatmul.bf16.gmra.mxu0 %v216
    %v574 = vpop.f32.mrf.mxu0
    %v575 = vadd.f32 %v556, %v574
    %v576 = vpop.f32.mrf.mxu0
    %v577 = vadd.f32 %v558, %v576
    %578 = vdwg.mxu0
    %579 = vmatpush.bf16.msra.mxu0 %v442
    %580 = vmatpush.bf16.msra.mxu0 %v438
    %581 = vmatpush.bf16.msra.mxu0 %v434
    %582 = vmatpush.bf16.msra.mxu0 %v430
    %583 = vmatpush.bf16.msra.mxu0 %v426
    %584 = vmatpush.bf16.msra.mxu0 %v422
    %585 = vmatpush.bf16.msra.mxu0 %v418
    %586 = vmatpush.bf16.msra.mxu0 %v414
    %587 = vmatmul.bf16.gmra.mxu0 %v213
    %v588 = vpop.f32.mrf.mxu0
    %v589 = vadd.f32 0.0, %v588
    %v590 = vpop.f32.mrf.mxu0
    %v591 = vadd.f32 0.0, %v590
    %592 = vmatmul.bf16.gmra.mxu0 %v215
    %v593 = vpop.f32.mrf.mxu0
    %v594 = vadd.f32 0.0, %v593
    %v595 = vpop.f32.mrf.mxu0
    %v596 = vadd.f32 0.0, %v595
    %597 = vdwg.mxu0
    %598 = vmatpush.bf16.msra.mxu0 %v474
    %599 = vmatpush.bf16.msra.mxu0 %v470
    %600 = vmatpush.bf16.msra.mxu0 %v466
    %601 = vmatpush.bf16.msra.mxu0 %v462
    %602 = vmatpush.bf16.msra.mxu0 %v458
    %603 = vmatpush.bf16.msra.mxu0 %v454
    %604 = vmatpush.bf16.msra.mxu0 %v450
    %605 = vmatpush.bf16.msra.mxu0 %v446
    %606 = vmatmul.bf16.gmra.mxu0 %v214
    %v607 = vpop.f32.mrf.mxu0
    %v608 = vadd.f32 %v589, %v607
    %v609 = vpop.f32.mrf.mxu0
    %v610 = vadd.f32 %v591, %v609
    %611 = vmatmul.bf16.gmra.mxu0 %v216
    %v612 = vpop.f32.mrf.mxu0
    %v613 = vadd.f32 %v594, %v612
    %v614 = vpop.f32.mrf.mxu0
    %v615 = vadd.f32 %v596, %v614
    %616 = vdwg.mxu0
    %617 = vmatpush.bf16.msra.mxu0 %v443
    %618 = vmatpush.bf16.msra.mxu0 %v439
    %619 = vmatpush.bf16.msra.mxu0 %v435
    %620 = vmatpush.bf16.msra.mxu0 %v431
    %621 = vmatpush.bf16.msra.mxu0 %v427
    %622 = vmatpush.bf16.msra.mxu0 %v423
    %623 = vmatpush.bf16.msra.mxu0 %v419
    %624 = vmatpush.bf16.msra.mxu0 %v415
    %625 = vmatmul.bf16.gmra.mxu0 %v213
    %v626 = vpop.f32.mrf.mxu0
    %v627 = vadd.f32 0.0, %v626
    %v628 = vpop.f32.mrf.mxu0
    %v629 = vadd.f32 0.0, %v628
    %630 = vmatmul.bf16.gmra.mxu0 %v215
    %v631 = vpop.f32.mrf.mxu0
    %v632 = vadd.f32 0.0, %v631
    %v633 = vpop.f32.mrf.mxu0
    %v634 = vadd.f32 0.0, %v633
    %635 = vdwg.mxu0
    %636 = vmatpush.bf16.msra.mxu0 %v475
    %637 = vmatpush.bf16.msra.mxu0 %v471
    %638 = vmatpush.bf16.msra.mxu0 %v467
    %639 = vmatpush.bf16.msra.mxu0 %v463
    %640 = vmatpush.bf16.msra.mxu0 %v459
    %641 = vmatpush.bf16.msra.mxu0 %v455
    %642 = vmatpush.bf16.msra.mxu0 %v451
    %643 = vmatpush.bf16.msra.mxu0 %v447
    %644 = vmatmul.bf16.gmra.mxu0 %v214
    %v645 = vpop.f32.mrf.mxu0
    %v646 = vadd.f32 %v627, %v645
    %v647 = vpop.f32.mrf.mxu0
    %v648 = vadd.f32 %v629, %v647
    %649 = vmatmul.bf16.gmra.mxu0 %v216
    %v650 = vpop.f32.mrf.mxu0
    %v651 = vadd.f32 %v632, %v650
    %v652 = vpop.f32.mrf.mxu0
    %v653 = vadd.f32 %v634, %v652
    %654 = vdwg.mxu0
    %655 = vmatpush.bf16.msra.mxu0 %v444
    %656 = vmatpush.bf16.msra.mxu0 %v440
    %657 = vmatpush.bf16.msra.mxu0 %v436
    %658 = vmatpush.bf16.msra.mxu0 %v432
    %659 = vmatpush.bf16.msra.mxu0 %v428
    %660 = vmatpush.bf16.msra.mxu0 %v424
    %661 = vmatpush.bf16.msra.mxu0 %v420
    %662 = vmatpush.bf16.msra.mxu0 %v416
    %663 = vmatmul.bf16.gmra.mxu0 %v213
    %v664 = vpop.f32.mrf.mxu0
    %v665 = vadd.f32 0.0, %v664
    %v666 = vpop.f32.mrf.mxu0
    %v667 = vadd.f32 0.0, %v666
    %668 = vmatmul.bf16.gmra.mxu0 %v215
    %v669 = vpop.f32.mrf.mxu0
    %v670 = vadd.f32 0.0, %v669
    %v671 = vpop.f32.mrf.mxu0
    %v672 = vadd.f32 0.0, %v671
    %673 = vdwg.mxu0
    %674 = vmatpush.bf16.msra.mxu0 %v476
    %675 = vmatpush.bf16.msra.mxu0 %v472
    %676 = vmatpush.bf16.msra.mxu0 %v468
    %677 = vmatpush.bf16.msra.mxu0 %v464
    %678 = vmatpush.bf16.msra.mxu0 %v460
    %679 = vmatpush.bf16.msra.mxu0 %v456
    %680 = vmatpush.bf16.msra.mxu0 %v452
    %681 = vmatpush.bf16.msra.mxu0 %v448
    %682 = vmatmul.bf16.gmra.mxu0 %v214
    %v683 = vpop.f32.mrf.mxu0
    %v684 = vadd.f32 %v665, %v683
    %v685 = vpop.f32.mrf.mxu0
    %v686 = vadd.f32 %v667, %v685
    %687 = vmatmul.bf16.gmra.mxu0 %v216
    %v688 = vpop.f32.mrf.mxu0
    %v689 = vadd.f32 %v670, %v688
    %v690 = vpop.f32.mrf.mxu0
    %v691 = vadd.f32 %v672, %v690
    %692 = vdwg.mxu0
    %v697 = vunpack.c.l.b16 %v64
    %v698 = vunpack.c.h.b16 %v64
    %v699 = vunpack.c.l.b16 %v65
    %v700 = vunpack.c.h.b16 %v65
    %v701 = vunpack.c.l.b16 %v66
    %v702 = vunpack.c.h.b16 %v66
    %v703 = vunpack.c.l.b16 %v67
    %v704 = vunpack.c.h.b16 %v67
    %v705 = vpack.c.b16 %v699, %v697
    %v706 = vpack.c.b16 %v700, %v698
    %v707 = vpack.c.b16 %v703, %v701
    %v708 = vpack.c.b16 %v704, %v702
    %v777 = vunpack.c.l.b16 %v68
    %v778 = vunpack.c.h.b16 %v68
    %v779 = vunpack.c.l.b16 %v69
    %v780 = vunpack.c.h.b16 %v69
    %v781 = vunpack.c.l.b16 %v70
    %v782 = vunpack.c.h.b16 %v70
    %v783 = vunpack.c.l.b16 %v71
    %v784 = vunpack.c.h.b16 %v71
    %v785 = vunpack.c.l.b16 %v72
    %v786 = vunpack.c.h.b16 %v72
    %v787 = vunpack.c.l.b16 %v73
    %v788 = vunpack.c.h.b16 %v73
    %v789 = vunpack.c.l.b16 %v74
    %v790 = vunpack.c.h.b16 %v74
    %v791 = vunpack.c.l.b16 %v75
    %v792 = vunpack.c.h.b16 %v75
    %v793 = vunpack.c.l.b16 %v76
    %v794 = vunpack.c.h.b16 %v76
    %v795 = vunpack.c.l.b16 %v77
    %v796 = vunpack.c.h.b16 %v77
    %v797 = vunpack.c.l.b16 %v78
    %v798 = vunpack.c.h.b16 %v78
    %v799 = vunpack.c.l.b16 %v79
    %v800 = vunpack.c.h.b16 %v79
    %v801 = vunpack.c.l.b16 %v80
    %v802 = vunpack.c.h.b16 %v80
    %v803 = vunpack.c.l.b16 %v81
    %v804 = vunpack.c.h.b16 %v81
    %v805 = vunpack.c.l.b16 %v82
    %v806 = vunpack.c.h.b16 %v82
    %v807 = vunpack.c.l.b16 %v83
    %v808 = vunpack.c.h.b16 %v83
    %v809 = vunpack.c.l.b16 %v84
    %v810 = vunpack.c.h.b16 %v84
    %v811 = vunpack.c.l.b16 %v85
    %v812 = vunpack.c.h.b16 %v85
    %v813 = vunpack.c.l.b16 %v86
    %v814 = vunpack.c.h.b16 %v86
    %v815 = vunpack.c.l.b16 %v87
    %v816 = vunpack.c.h.b16 %v87
    %v817 = vunpack.c.l.b16 %v88
    %v818 = vunpack.c.h.b16 %v88
    %v819 = vunpack.c.l.b16 %v89
    %v820 = vunpack.c.h.b16 %v89
    %v821 = vunpack.c.l.b16 %v90
    %v822 = vunpack.c.h.b16 %v90
    %v823 = vunpack.c.l.b16 %v91
    %v824 = vunpack.c.h.b16 %v91
    %v825 = vunpack.c.l.b16 %v92
    %v826 = vunpack.c.h.b16 %v92
    %v827 = vunpack.c.l.b16 %v93
    %v828 = vunpack.c.h.b16 %v93
    %v829 = vunpack.c.l.b16 %v94
    %v830 = vunpack.c.h.b16 %v94
    %v831 = vunpack.c.l.b16 %v95
    %v832 = vunpack.c.h.b16 %v95
    %v833 = vunpack.c.l.b16 %v96
    %v834 = vunpack.c.h.b16 %v96
    %v835 = vunpack.c.l.b16 %v97
    %v836 = vunpack.c.h.b16 %v97
    %v837 = vunpack.c.l.b16 %v98
    %v838 = vunpack.c.h.b16 %v98
    %v839 = vunpack.c.l.b16 %v99
    %v840 = vunpack.c.h.b16 %v99
    %v841 = vunpack.c.l.b16 %v100
    %v842 = vunpack.c.h.b16 %v100
    %v843 = vunpack.c.l.b16 %v101
    %v844 = vunpack.c.h.b16 %v101
    %v845 = vunpack.c.l.b16 %v102
    %v846 = vunpack.c.h.b16 %v102
    %v847 = vunpack.c.l.b16 %v103
    %v848 = vunpack.c.h.b16 %v103
    %v849 = vunpack.c.l.b16 %v104
    %v850 = vunpack.c.h.b16 %v104
    %v851 = vunpack.c.l.b16 %v105
    %v852 = vunpack.c.h.b16 %v105
    %v853 = vunpack.c.l.b16 %v106
    %v854 = vunpack.c.h.b16 %v106
    %v855 = vunpack.c.l.b16 %v107
    %v856 = vunpack.c.h.b16 %v107
    %v857 = vunpack.c.l.b16 %v108
    %v858 = vunpack.c.h.b16 %v108
    %v859 = vunpack.c.l.b16 %v109
    %v860 = vunpack.c.h.b16 %v109
    %v861 = vunpack.c.l.b16 %v110
    %v862 = vunpack.c.h.b16 %v110
    %v863 = vunpack.c.l.b16 %v111
    %v864 = vunpack.c.h.b16 %v111
    %v865 = vunpack.c.l.b16 %v112
    %v866 = vunpack.c.h.b16 %v112
    %v867 = vunpack.c.l.b16 %v113
    %v868 = vunpack.c.h.b16 %v113
    %v869 = vunpack.c.l.b16 %v114
    %v870 = vunpack.c.h.b16 %v114
    %v871 = vunpack.c.l.b16 %v115
    %v872 = vunpack.c.h.b16 %v115
    %v873 = vunpack.c.l.b16 %v116
    %v874 = vunpack.c.h.b16 %v116
    %v875 = vunpack.c.l.b16 %v117
    %v876 = vunpack.c.h.b16 %v117
    %v877 = vunpack.c.l.b16 %v118
    %v878 = vunpack.c.h.b16 %v118
    %v879 = vunpack.c.l.b16 %v119
    %v880 = vunpack.c.h.b16 %v119
    %v881 = vunpack.c.l.b16 %v120
    %v882 = vunpack.c.h.b16 %v120
    %v883 = vunpack.c.l.b16 %v121
    %v884 = vunpack.c.h.b16 %v121
    %v885 = vunpack.c.l.b16 %v122
    %v886 = vunpack.c.h.b16 %v122
    %v887 = vunpack.c.l.b16 %v123
    %v888 = vunpack.c.h.b16 %v123
    %v889 = vunpack.c.l.b16 %v124
    %v890 = vunpack.c.h.b16 %v124
    %v891 = vunpack.c.l.b16 %v125
    %v892 = vunpack.c.h.b16 %v125
    %v893 = vunpack.c.l.b16 %v126
    %v894 = vunpack.c.h.b16 %v126
    %v895 = vunpack.c.l.b16 %v127
    %v896 = vunpack.c.h.b16 %v127
    %v897 = vunpack.c.l.b16 %v128
    %v898 = vunpack.c.h.b16 %v128
    %v899 = vunpack.c.l.b16 %v129
    %v900 = vunpack.c.h.b16 %v129
    %v901 = vunpack.c.l.b16 %v130
    %v902 = vunpack.c.h.b16 %v130
    %v903 = vunpack.c.l.b16 %v131
    %v904 = vunpack.c.h.b16 %v131
    %v905 = vpack.c.b16 %v781, %v777
    %v906 = vpack.c.b16 %v782, %v778
    %v907 = vpack.c.b16 %v783, %v779
    %v908 = vpack.c.b16 %v784, %v780
    %v909 = vpack.c.b16 %v789, %v785
    %v910 = vpack.c.b16 %v790, %v786
    %v911 = vpack.c.b16 %v791, %v787
    %v912 = vpack.c.b16 %v792, %v788
    %v913 = vpack.c.b16 %v797, %v793
    %v914 = vpack.c.b16 %v798, %v794
    %v915 = vpack.c.b16 %v799, %v795
    %v916 = vpack.c.b16 %v800, %v796
    %v917 = vpack.c.b16 %v805, %v801
    %v918 = vpack.c.b16 %v806, %v802
    %v919 = vpack.c.b16 %v807, %v803
    %v920 = vpack.c.b16 %v808, %v804
    %v921 = vpack.c.b16 %v813, %v809
    %v922 = vpack.c.b16 %v814, %v810
    %v923 = vpack.c.b16 %v815, %v811
    %v924 = vpack.c.b16 %v816, %v812
    %v925 = vpack.c.b16 %v821, %v817
    %v926 = vpack.c.b16 %v822, %v818
    %v927 = vpack.c.b16 %v823, %v819
    %v928 = vpack.c.b16 %v824, %v820
    %v929 = vpack.c.b16 %v829, %v825
    %v930 = vpack.c.b16 %v830, %v826
    %v931 = vpack.c.b16 %v831, %v827
    %v932 = vpack.c.b16 %v832, %v828
    %v933 = vpack.c.b16 %v837, %v833
    %v934 = vpack.c.b16 %v838, %v834
    %v935 = vpack.c.b16 %v839, %v835
    %v936 = vpack.c.b16 %v840, %v836
    %v937 = vpack.c.b16 %v845, %v841
    %v938 = vpack.c.b16 %v846, %v842
    %v939 = vpack.c.b16 %v847, %v843
    %v940 = vpack.c.b16 %v848, %v844
    %v941 = vpack.c.b16 %v853, %v849
    %v942 = vpack.c.b16 %v854, %v850
    %v943 = vpack.c.b16 %v855, %v851
    %v944 = vpack.c.b16 %v856, %v852
    %v945 = vpack.c.b16 %v861, %v857
    %v946 = vpack.c.b16 %v862, %v858
    %v947 = vpack.c.b16 %v863, %v859
    %v948 = vpack.c.b16 %v864, %v860
    %v949 = vpack.c.b16 %v869, %v865
    %v950 = vpack.c.b16 %v870, %v866
    %v951 = vpack.c.b16 %v871, %v867
    %v952 = vpack.c.b16 %v872, %v868
    %v953 = vpack.c.b16 %v877, %v873
    %v954 = vpack.c.b16 %v878, %v874
    %v955 = vpack.c.b16 %v879, %v875
    %v956 = vpack.c.b16 %v880, %v876
    %v957 = vpack.c.b16 %v885, %v881
    %v958 = vpack.c.b16 %v886, %v882
    %v959 = vpack.c.b16 %v887, %v883
    %v960 = vpack.c.b16 %v888, %v884
    %v961 = vpack.c.b16 %v893, %v889
    %v962 = vpack.c.b16 %v894, %v890
    %v963 = vpack.c.b16 %v895, %v891
    %v964 = vpack.c.b16 %v896, %v892
    %v965 = vpack.c.b16 %v901, %v897
    %v966 = vpack.c.b16 %v902, %v898
    %v967 = vpack.c.b16 %v903, %v899
    %v968 = vpack.c.b16 %v904, %v900
    %1033 = vmatpush.bf16.msra.mxu0 %v933
    %1034 = vmatpush.bf16.msra.mxu0 %v929
    %1035 = vmatpush.bf16.msra.mxu0 %v925
    %1036 = vmatpush.bf16.msra.mxu0 %v921
    %1037 = vmatpush.bf16.msra.mxu0 %v917
    %1038 = vmatpush.bf16.msra.mxu0 %v913
    %1039 = vmatpush.bf16.msra.mxu0 %v909
    %1040 = vmatpush.bf16.msra.mxu0 %v905
    %1041 = vmatmul.bf16.gmra.mxu0 %v705
    %v1042 = vpop.f32.mrf.mxu0
    %v1043 = vadd.f32 %v570, %v1042
    %v1044 = vpop.f32.mrf.mxu0
    %v1045 = vadd.f32 %v572, %v1044
    %1046 = vmatmul.bf16.gmra.mxu0 %v707
    %v1047 = vpop.f32.mrf.mxu0
    %v1048 = vadd.f32 %v575, %v1047
    %v1049 = vpop.f32.mrf.mxu0
    %v1050 = vadd.f32 %v577, %v1049
    %1051 = vdwg.mxu0
    %1052 = vmatpush.bf16.msra.mxu0 %v965
    %1053 = vmatpush.bf16.msra.mxu0 %v961
    %1054 = vmatpush.bf16.msra.mxu0 %v957
    %1055 = vmatpush.bf16.msra.mxu0 %v953
    %1056 = vmatpush.bf16.msra.mxu0 %v949
    %1057 = vmatpush.bf16.msra.mxu0 %v945
    %1058 = vmatpush.bf16.msra.mxu0 %v941
    %1059 = vmatpush.bf16.msra.mxu0 %v937
    %1060 = vmatmul.bf16.gmra.mxu0 %v706
    %v1061 = vpop.f32.mrf.mxu0
    %v1062 = vadd.f32 %v1043, %v1061
    %v1063 = vpop.f32.mrf.mxu0
    %v1064 = vadd.f32 %v1045, %v1063
    %1065 = vmatmul.bf16.gmra.mxu0 %v708
    %v1066 = vpop.f32.mrf.mxu0
    %v1067 = vadd.f32 %v1048, %v1066
    %v1068 = vpop.f32.mrf.mxu0
    %v1069 = vadd.f32 %v1050, %v1068
    %1070 = vdwg.mxu0
    %1071 = vmatpush.bf16.msra.mxu0 %v934
    %1072 = vmatpush.bf16.msra.mxu0 %v930
    %1073 = vmatpush.bf16.msra.mxu0 %v926
    %1074 = vmatpush.bf16.msra.mxu0 %v922
    %1075 = vmatpush.bf16.msra.mxu0 %v918
    %1076 = vmatpush.bf16.msra.mxu0 %v914
    %1077 = vmatpush.bf16.msra.mxu0 %v910
    %1078 = vmatpush.bf16.msra.mxu0 %v906
    %1079 = vmatmul.bf16.gmra.mxu0 %v705
    %v1080 = vpop.f32.mrf.mxu0
    %v1081 = vadd.f32 %v608, %v1080
    %v1082 = vpop.f32.mrf.mxu0
    %v1083 = vadd.f32 %v610, %v1082
    %1084 = vmatmul.bf16.gmra.mxu0 %v707
    %v1085 = vpop.f32.mrf.mxu0
    %v1086 = vadd.f32 %v613, %v1085
    %v1087 = vpop.f32.mrf.mxu0
    %v1088 = vadd.f32 %v615, %v1087
    %1089 = vdwg.mxu0
    %1090 = vmatpush.bf16.msra.mxu0 %v966
    %1091 = vmatpush.bf16.msra.mxu0 %v962
    %1092 = vmatpush.bf16.msra.mxu0 %v958
    %1093 = vmatpush.bf16.msra.mxu0 %v954
    %1094 = vmatpush.bf16.msra.mxu0 %v950
    %1095 = vmatpush.bf16.msra.mxu0 %v946
    %1096 = vmatpush.bf16.msra.mxu0 %v942
    %1097 = vmatpush.bf16.msra.mxu0 %v938
    %1098 = vmatmul.bf16.gmra.mxu0 %v706
    %v1099 = vpop.f32.mrf.mxu0
    %v1100 = vadd.f32 %v1081, %v1099
    %v1101 = vpop.f32.mrf.mxu0
    %v1102 = vadd.f32 %v1083, %v1101
    %1103 = vmatmul.bf16.gmra.mxu0 %v708
    %v1104 = vpop.f32.mrf.mxu0
    %v1105 = vadd.f32 %v1086, %v1104
    %v1106 = vpop.f32.mrf.mxu0
    %v1107 = vadd.f32 %v1088, %v1106
    %1108 = vdwg.mxu0
    %1109 = vmatpush.bf16.msra.mxu0 %v935
    %1110 = vmatpush.bf16.msra.mxu0 %v931
    %1111 = vmatpush.bf16.msra.mxu0 %v927
    %1112 = vmatpush.bf16.msra.mxu0 %v923
    %1113 = vmatpush.bf16.msra.mxu0 %v919
    %1114 = vmatpush.bf16.msra.mxu0 %v915
    %1115 = vmatpush.bf16.msra.mxu0 %v911
    %1116 = vmatpush.bf16.msra.mxu0 %v907
    %1117 = vmatmul.bf16.gmra.mxu0 %v705
    %v1118 = vpop.f32.mrf.mxu0
    %v1119 = vadd.f32 %v646, %v1118
    %v1120 = vpop.f32.mrf.mxu0
    %v1121 = vadd.f32 %v648, %v1120
    %1122 = vmatmul.bf16.gmra.mxu0 %v707
    %v1123 = vpop.f32.mrf.mxu0
    %v1124 = vadd.f32 %v651, %v1123
    %v1125 = vpop.f32.mrf.mxu0
    %v1126 = vadd.f32 %v653, %v1125
    %1127 = vdwg.mxu0
    %1128 = vmatpush.bf16.msra.mxu0 %v967
    %1129 = vmatpush.bf16.msra.mxu0 %v963
    %1130 = vmatpush.bf16.msra.mxu0 %v959
    %1131 = vmatpush.bf16.msra.mxu0 %v955
    %1132 = vmatpush.bf16.msra.mxu0 %v951
    %1133 = vmatpush.bf16.msra.mxu0 %v947
    %1134 = vmatpush.bf16.msra.mxu0 %v943
    %1135 = vmatpush.bf16.msra.mxu0 %v939
    %1136 = vmatmul.bf16.gmra.mxu0 %v706
    %v1137 = vpop.f32.mrf.mxu0
    %v1138 = vadd.f32 %v1119, %v1137
    %v1139 = vpop.f32.mrf.mxu0
    %v1140 = vadd.f32 %v1121, %v1139
    %1141 = vmatmul.bf16.gmra.mxu0 %v708
    %v1142 = vpop.f32.mrf.mxu0
    %v1143 = vadd.f32 %v1124, %v1142
    %v1144 = vpop.f32.mrf.mxu0
    %v1145 = vadd.f32 %v1126, %v1144
    %1146 = vdwg.mxu0
    %1147 = vmatpush.bf16.msra.mxu0 %v936
    %1148 = vmatpush.bf16.msra.mxu0 %v932
    %1149 = vmatpush.bf16.msra.mxu0 %v928
    %1150 = vmatpush.bf16.msra.mxu0 %v924
    %1151 = vmatpush.bf16.msra.mxu0 %v920
    %1152 = vmatpush.bf16.msra.mxu0 %v916
    %1153 = vmatpush.bf16.msra.mxu0 %v912
    %1154 = vmatpush.bf16.msra.mxu0 %v908
    %1155 = vmatmul.bf16.gmra.mxu0 %v705
    %v1156 = vpop.f32.mrf.mxu0
    %v1157 = vadd.f32 %v684, %v1156
    %v1158 = vpop.f32.mrf.mxu0
    %v1159 = vadd.f32 %v686, %v1158
    %1160 = vmatmul.bf16.gmra.mxu0 %v707
    %v1161 = vpop.f32.mrf.mxu0
    %v1162 = vadd.f32 %v689, %v1161
    %v1163 = vpop.f32.mrf.mxu0
    %v1164 = vadd.f32 %v691, %v1163
    %1165 = vdwg.mxu0
    %1166 = vmatpush.bf16.msra.mxu0 %v968
    %1167 = vmatpush.bf16.msra.mxu0 %v964
    %1168 = vmatpush.bf16.msra.mxu0 %v960
    %1169 = vmatpush.bf16.msra.mxu0 %v956
    %1170 = vmatpush.bf16.msra.mxu0 %v952
    %1171 = vmatpush.bf16.msra.mxu0 %v948
    %1172 = vmatpush.bf16.msra.mxu0 %v944
    %1173 = vmatpush.bf16.msra.mxu0 %v940
    %1174 = vmatmul.bf16.gmra.mxu0 %v706
    %v1175 = vpop.f32.mrf.mxu0
    %v1176 = vadd.f32 %v1157, %v1175
    %v1177 = vpop.f32.mrf.mxu0
    %v1178 = vadd.f32 %v1159, %v1177
    %1179 = vmatmul.bf16.gmra.mxu0 %v708
    %v1180 = vpop.f32.mrf.mxu0
    %v1181 = vadd.f32 %v1162, %v1180
    %v1182 = vpop.f32.mrf.mxu0
    %v1183 = vadd.f32 %v1164, %v1182
    %1184 = vdwg.mxu0
    %vm1185 = vcmp.ge.f32.partialorder %v1062, 0.0
    %vm1186 = vcmp.ge.f32.partialorder %v1100, 0.0
    %vm1187 = vcmp.ge.f32.partialorder %v1138, 0.0
    %vm1188 = vcmp.ge.f32.partialorder %v1176, 0.0
    %vm1189 = vcmp.ge.f32.partialorder %v1064, 0.0
    %vm1190 = vcmp.ge.f32.partialorder %v1102, 0.0
    %vm1191 = vcmp.ge.f32.partialorder %v1140, 0.0
    %vm1192 = vcmp.ge.f32.partialorder %v1178, 0.0
    %vm1193 = vcmp.ge.f32.partialorder %v1067, 0.0
    %vm1194 = vcmp.ge.f32.partialorder %v1105, 0.0
    %vm1195 = vcmp.ge.f32.partialorder %v1143, 0.0
    %vm1196 = vcmp.ge.f32.partialorder %v1181, 0.0
    %vm1197 = vcmp.ge.f32.partialorder %v1069, 0.0
    %vm1198 = vcmp.ge.f32.partialorder %v1107, 0.0
    %vm1199 = vcmp.ge.f32.partialorder %v1145, 0.0
    %vm1200 = vcmp.ge.f32.partialorder %v1183, 0.0
    %v1201 = vmul.f32 %v1062, 0.2
    %v1202 = vmul.f32 %v1100, 0.2
    %v1203 = vmul.f32 %v1138, 0.2
    %v1204 = vmul.f32 %v1176, 0.2
    %v1205 = vmul.f32 %v1064, 0.2
    %v1206 = vmul.f32 %v1102, 0.2
    %v1207 = vmul.f32 %v1140, 0.2
    %v1208 = vmul.f32 %v1178, 0.2
    %v1209 = vmul.f32 %v1067, 0.2
    %v1210 = vmul.f32 %v1105, 0.2
    %v1211 = vmul.f32 %v1143, 0.2
    %v1212 = vmul.f32 %v1181, 0.2
    %v1213 = vmul.f32 %v1069, 0.2
    %v1214 = vmul.f32 %v1107, 0.2
    %v1215 = vmul.f32 %v1145, 0.2
    %v1216 = vmul.f32 %v1183, 0.2
    %v1217 = vsel %vm1185, %v1062, %v1201
    %v1218 = vsel %vm1186, %v1100, %v1202
    %v1219 = vsel %vm1187, %v1138, %v1203
    %v1220 = vsel %vm1188, %v1176, %v1204
    %v1221 = vsel %vm1189, %v1064, %v1205
    %v1222 = vsel %vm1190, %v1102, %v1206
    %v1223 = vsel %vm1191, %v1140, %v1207
    %v1224 = vsel %vm1192, %v1178, %v1208
    %v1225 = vsel %vm1193, %v1067, %v1209
    %v1226 = vsel %vm1194, %v1105, %v1210
    %v1227 = vsel %vm1195, %v1143, %v1211
    %v1228 = vsel %vm1196, %v1181, %v1212
    %v1229 = vsel %vm1197, %v1069, %v1213
    %v1230 = vsel %vm1198, %v1107, %v1214
    %v1231 = vsel %vm1199, %v1145, %v1215
    %v1232 = vsel %vm1200, %v1183, %v1216
    %v1233 = vpack.c.bf16 %v1218, %v1217
    %v1234 = vpack.c.bf16 %v1220, %v1219
    %v1235 = vpack.c.bf16 %v1222, %v1221
    %v1236 = vpack.c.bf16 %v1224, %v1223
    %v1237 = vpack.c.bf16 %v1226, %v1225
    %v1238 = vpack.c.bf16 %v1228, %v1227
    %v1239 = vpack.c.bf16 %v1230, %v1229
    %v1240 = vpack.c.bf16 %v1232, %v1231
    %1241 = vst [vmem:[#allocation2 + $0x10] sm:$0xff] %v1233
    %1242 = vst [vmem:[#allocation2 + $0x18] sm:$0xff] %v1234
    %1243 = vst [vmem:[#allocation2 + $0x20] sm:$0xff] %v1235
    %1244 = vst [vmem:[#allocation2 + $0x28] sm:$0xff] %v1236
    %1245 = vst [vmem:[#allocation2 + $0x30] sm:$0xff] %v1237
    %1246 = vst [vmem:[#allocation2 + $0x38] sm:$0xff] %v1238
    %1247 = vst [vmem:[#allocation2 + $0x40] sm:$0xff] %v1239
    %1248 = vst [vmem:[#allocation2 + $0x48] sm:$0xff] %v1240
    %v1249 = vld [vmem:[%s5] sm:$0x3]
    %v1250 = vld [vmem:[#allocation2] sm:$0xff]
    %v1251 = vld [vmem:[#allocation2 + $0x8] sm:$0xff]
    %v1252 = vld [vmem:[#allocation2 + $0x10] sm:$0xff]
    %v1253 = vld [vmem:[#allocation2 + $0x18] sm:$0xff]
    %v1254 = vld [vmem:[#allocation2 + $0x20] sm:$0xff]
    %v1255 = vld [vmem:[#allocation2 + $0x28] sm:$0xff]
    %v1256 = vld [vmem:[#allocation2 + $0x30] sm:$0xff]
    %v1257 = vld [vmem:[#allocation2 + $0x38] sm:$0xff]
    %v1258 = vld [vmem:[%s2] sm:$0xff]
    %v1259 = vld [vmem:[%s2 + $0x8] sm:$0xff]
    %v1260 = vld [vmem:[%s2 + $0x10] sm:$0xff]
    %v1261 = vld [vmem:[%s2 + $0x18] sm:$0xff]
    %v1262 = vld [vmem:[%s2 + $0x20] sm:$0xff]
    %v1263 = vld [vmem:[%s2 + $0x28] sm:$0xff]
    %v1264 = vld [vmem:[%s2 + $0x30] sm:$0xff]
    %v1265 = vld [vmem:[%s2 + $0x38] sm:$0xff]
    %v1266 = vld [vmem:[%s2 + $0x40] sm:$0xff]
    %v1267 = vld [vmem:[%s2 + $0x48] sm:$0xff]
    %v1268 = vld [vmem:[%s2 + $0x50] sm:$0xff]
    %v1269 = vld [vmem:[%s2 + $0x58] sm:$0xff]
    %v1270 = vld [vmem:[%s2 + $0x60] sm:$0xff]
    %v1271 = vld [vmem:[%s2 + $0x68] sm:$0xff]
    %v1272 = vld [vmem:[%s2 + $0x70] sm:$0xff]
    %v1273 = vld [vmem:[%s2 + $0x78] sm:$0xff]
    %v1274 = vld [vmem:[%s2 + $0x80] sm:$0xff]
    %v1275 = vld [vmem:[%s2 + $0x88] sm:$0xff]
    %v1276 = vld [vmem:[%s2 + $0x90] sm:$0xff]
    %v1277 = vld [vmem:[%s2 + $0x98] sm:$0xff]
    %v1278 = vld [vmem:[%s2 + $0xa0] sm:$0xff]
    %v1279 = vld [vmem:[%s2 + $0xa8] sm:$0xff]
    %v1280 = vld [vmem:[%s2 + $0xb0] sm:$0xff]
    %v1281 = vld [vmem:[%s2 + $0xb8] sm:$0xff]
    %v1282 = vld [vmem:[%s2 + $0xc0] sm:$0xff]
    %v1283 = vld [vmem:[%s2 + $0xc8] sm:$0xff]
    %v1284 = vld [vmem:[%s2 + $0xd0] sm:$0xff]
    %v1285 = vld [vmem:[%s2 + $0xd8] sm:$0xff]
    %v1286 = vld [vmem:[%s2 + $0xe0] sm:$0xff]
    %v1287 = vld [vmem:[%s2 + $0xe8] sm:$0xff]
    %v1288 = vld [vmem:[%s2 + $0xf0] sm:$0xff]
    %v1289 = vld [vmem:[%s2 + $0xf8] sm:$0xff]
    %v1290 = vld [vmem:[%s2 + $0x100] sm:$0xff]
    %v1291 = vld [vmem:[%s2 + $0x108] sm:$0xff]
    %v1292 = vld [vmem:[%s2 + $0x110] sm:$0xff]
    %v1293 = vld [vmem:[%s2 + $0x118] sm:$0xff]
    %v1294 = vld [vmem:[%s2 + $0x120] sm:$0xff]
    %v1295 = vld [vmem:[%s2 + $0x128] sm:$0xff]
    %v1296 = vld [vmem:[%s2 + $0x130] sm:$0xff]
    %v1297 = vld [vmem:[%s2 + $0x138] sm:$0xff]
    %v1298 = vld [vmem:[%s2 + $0x140] sm:$0xff]
    %v1299 = vld [vmem:[%s2 + $0x148] sm:$0xff]
    %v1300 = vld [vmem:[%s2 + $0x150] sm:$0xff]
    %v1301 = vld [vmem:[%s2 + $0x158] sm:$0xff]
    %v1302 = vld [vmem:[%s2 + $0x160] sm:$0xff]
    %v1303 = vld [vmem:[%s2 + $0x168] sm:$0xff]
    %v1304 = vld [vmem:[%s2 + $0x170] sm:$0xff]
    %v1305 = vld [vmem:[%s2 + $0x178] sm:$0xff]
    %v1306 = vld [vmem:[%s2 + $0x180] sm:$0xff]
    %v1307 = vld [vmem:[%s2 + $0x188] sm:$0xff]
    %v1308 = vld [vmem:[%s2 + $0x190] sm:$0xff]
    %v1309 = vld [vmem:[%s2 + $0x198] sm:$0xff]
    %v1310 = vld [vmem:[%s2 + $0x1a0] sm:$0xff]
    %v1311 = vld [vmem:[%s2 + $0x1a8] sm:$0xff]
    %v1312 = vld [vmem:[%s2 + $0x1b0] sm:$0xff]
    %v1313 = vld [vmem:[%s2 + $0x1b8] sm:$0xff]
    %v1314 = vld [vmem:[%s2 + $0x1c0] sm:$0xff]
    %v1315 = vld [vmem:[%s2 + $0x1c8] sm:$0xff]
    %v1316 = vld [vmem:[%s2 + $0x1d0] sm:$0xff]
    %v1317 = vld [vmem:[%s2 + $0x1d8] sm:$0xff]
    %v1318 = vld [vmem:[%s2 + $0x1e0] sm:$0xff]
    %v1319 = vld [vmem:[%s2 + $0x1e8] sm:$0xff]
    %v1320 = vld [vmem:[%s2 + $0x1f0] sm:$0xff]
    %v1321 = vld [vmem:[%s2 + $0x1f8] sm:$0xff]
    %v1322 = vld [vmem:[#allocation2 + $0x40] sm:$0xff]
    %v1323 = vld [vmem:[#allocation2 + $0x48] sm:$0xff]
    %s1324 = scalar_lea.vmem %s2, 512
    %v1325 = vld [vmem:[%s1324] sm:$0xff]
    %v1326 = vld [vmem:[%s1324 + $0x8] sm:$0xff]
    %v1327 = vld [vmem:[%s1324 + $0x10] sm:$0xff]
    %v1328 = vld [vmem:[%s1324 + $0x18] sm:$0xff]
    %v1329 = vld [vmem:[%s1324 + $0x20] sm:$0xff]
    %v1330 = vld [vmem:[%s1324 + $0x28] sm:$0xff]
    %v1331 = vld [vmem:[%s1324 + $0x30] sm:$0xff]
    %v1332 = vld [vmem:[%s1324 + $0x38] sm:$0xff]
    %v1333 = vld [vmem:[%s1324 + $0x40] sm:$0xff]
    %v1334 = vld [vmem:[%s1324 + $0x48] sm:$0xff]
    %v1335 = vld [vmem:[%s1324 + $0x50] sm:$0xff]
    %v1336 = vld [vmem:[%s1324 + $0x58] sm:$0xff]
    %v1337 = vld [vmem:[%s1324 + $0x60] sm:$0xff]
    %v1338 = vld [vmem:[%s1324 + $0x68] sm:$0xff]
    %v1339 = vld [vmem:[%s1324 + $0x70] sm:$0xff]
    %v1340 = vld [vmem:[%s1324 + $0x78] sm:$0xff]
    %v1341 = vld [vmem:[%s1324 + $0x80] sm:$0xff]
    %v1342 = vld [vmem:[%s1324 + $0x88] sm:$0xff]
    %v1343 = vld [vmem:[%s1324 + $0x90] sm:$0xff]
    %v1344 = vld [vmem:[%s1324 + $0x98] sm:$0xff]
    %v1345 = vld [vmem:[%s1324 + $0xa0] sm:$0xff]
    %v1346 = vld [vmem:[%s1324 + $0xa8] sm:$0xff]
    %v1347 = vld [vmem:[%s1324 + $0xb0] sm:$0xff]
    %v1348 = vld [vmem:[%s1324 + $0xb8] sm:$0xff]
    %v1349 = vld [vmem:[%s1324 + $0xc0] sm:$0xff]
    %v1350 = vld [vmem:[%s1324 + $0xc8] sm:$0xff]
    %v1351 = vld [vmem:[%s1324 + $0xd0] sm:$0xff]
    %v1352 = vld [vmem:[%s1324 + $0xd8] sm:$0xff]
    %v1353 = vld [vmem:[%s1324 + $0xe0] sm:$0xff]
    %v1354 = vld [vmem:[%s1324 + $0xe8] sm:$0xff]
    %v1355 = vld [vmem:[%s1324 + $0xf0] sm:$0xff]
    %v1356 = vld [vmem:[%s1324 + $0xf8] sm:$0xff]
    %v1357 = vld [vmem:[%s1324 + $0x100] sm:$0xff]
    %v1358 = vld [vmem:[%s1324 + $0x108] sm:$0xff]
    %v1359 = vld [vmem:[%s1324 + $0x110] sm:$0xff]
    %v1360 = vld [vmem:[%s1324 + $0x118] sm:$0xff]
    %v1361 = vld [vmem:[%s1324 + $0x120] sm:$0xff]
    %v1362 = vld [vmem:[%s1324 + $0x128] sm:$0xff]
    %v1363 = vld [vmem:[%s1324 + $0x130] sm:$0xff]
    %v1364 = vld [vmem:[%s1324 + $0x138] sm:$0xff]
    %v1365 = vld [vmem:[%s1324 + $0x140] sm:$0xff]
    %v1366 = vld [vmem:[%s1324 + $0x148] sm:$0xff]
    %v1367 = vld [vmem:[%s1324 + $0x150] sm:$0xff]
    %v1368 = vld [vmem:[%s1324 + $0x158] sm:$0xff]
    %v1369 = vld [vmem:[%s1324 + $0x160] sm:$0xff]
    %v1370 = vld [vmem:[%s1324 + $0x168] sm:$0xff]
    %v1371 = vld [vmem:[%s1324 + $0x170] sm:$0xff]
    %v1372 = vld [vmem:[%s1324 + $0x178] sm:$0xff]
    %v1373 = vld [vmem:[%s1324 + $0x180] sm:$0xff]
    %v1374 = vld [vmem:[%s1324 + $0x188] sm:$0xff]
    %v1375 = vld [vmem:[%s1324 + $0x190] sm:$0xff]
    %v1376 = vld [vmem:[%s1324 + $0x198] sm:$0xff]
    %v1377 = vld [vmem:[%s1324 + $0x1a0] sm:$0xff]
    %v1378 = vld [vmem:[%s1324 + $0x1a8] sm:$0xff]
    %v1379 = vld [vmem:[%s1324 + $0x1b0] sm:$0xff]
    %v1380 = vld [vmem:[%s1324 + $0x1b8] sm:$0xff]
    %v1381 = vld [vmem:[%s1324 + $0x1c0] sm:$0xff]
    %v1382 = vld [vmem:[%s1324 + $0x1c8] sm:$0xff]
    %v1383 = vld [vmem:[%s1324 + $0x1d0] sm:$0xff]
    %v1384 = vld [vmem:[%s1324 + $0x1d8] sm:$0xff]
    %v1385 = vld [vmem:[%s1324 + $0x1e0] sm:$0xff]
    %v1386 = vld [vmem:[%s1324 + $0x1e8] sm:$0xff]
    %v1387 = vld [vmem:[%s1324 + $0x1f0] sm:$0xff]
    %v1388 = vld [vmem:[%s1324 + $0x1f8] sm:$0xff]
    %v1397 = vunpack.c.l.b16 %v1252
    %v1398 = vunpack.c.h.b16 %v1252
    %v1399 = vunpack.c.l.b16 %v1253
    %v1400 = vunpack.c.h.b16 %v1253
    %v1401 = vunpack.c.l.b16 %v1254
    %v1402 = vunpack.c.h.b16 %v1254
    %v1403 = vunpack.c.l.b16 %v1255
    %v1404 = vunpack.c.h.b16 %v1255
    %v1405 = vunpack.c.l.b16 %v1256
    %v1406 = vunpack.c.h.b16 %v1256
    %v1407 = vunpack.c.l.b16 %v1257
    %v1408 = vunpack.c.h.b16 %v1257
    %v1409 = vunpack.c.l.b16 %v1322
    %v1410 = vunpack.c.h.b16 %v1322
    %v1411 = vunpack.c.l.b16 %v1323
    %v1412 = vunpack.c.h.b16 %v1323
    %v1413 = vpack.c.b16 %v1401, %v1397
    %v1414 = vpack.c.b16 %v1402, %v1398
    %v1415 = vpack.c.b16 %v1403, %v1399
    %v1416 = vpack.c.b16 %v1404, %v1400
    %v1417 = vpack.c.b16 %v1409, %v1405
    %v1418 = vpack.c.b16 %v1410, %v1406
    %v1419 = vpack.c.b16 %v1411, %v1407
    %v1420 = vpack.c.b16 %v1412, %v1408
    %v1493 = vunpack.c.l.b16 %v1325
    %v1494 = vunpack.c.h.b16 %v1325
    %v1495 = vunpack.c.l.b16 %v1326
    %v1496 = vunpack.c.h.b16 %v1326
    %v1497 = vunpack.c.l.b16 %v1327
    %v1498 = vunpack.c.h.b16 %v1327
    %v1499 = vunpack.c.l.b16 %v1328
    %v1500 = vunpack.c.h.b16 %v1328
    %v1501 = vunpack.c.l.b16 %v1329
    %v1502 = vunpack.c.h.b16 %v1329
    %v1503 = vunpack.c.l.b16 %v1330
    %v1504 = vunpack.c.h.b16 %v1330
    %v1505 = vunpack.c.l.b16 %v1331
    %v1506 = vunpack.c.h.b16 %v1331
    %v1507 = vunpack.c.l.b16 %v1332
    %v1508 = vunpack.c.h.b16 %v1332
    %v1509 = vunpack.c.l.b16 %v1333
    %v1510 = vunpack.c.h.b16 %v1333
    %v1511 = vunpack.c.l.b16 %v1334
    %v1512 = vunpack.c.h.b16 %v1334
    %v1513 = vunpack.c.l.b16 %v1335
    %v1514 = vunpack.c.h.b16 %v1335
    %v1515 = vunpack.c.l.b16 %v1336
    %v1516 = vunpack.c.h.b16 %v1336
    %v1517 = vunpack.c.l.b16 %v1337
    %v1518 = vunpack.c.h.b16 %v1337
    %v1519 = vunpack.c.l.b16 %v1338
    %v1520 = vunpack.c.h.b16 %v1338
    %v1521 = vunpack.c.l.b16 %v1339
    %v1522 = vunpack.c.h.b16 %v1339
    %v1523 = vunpack.c.l.b16 %v1340
    %v1524 = vunpack.c.h.b16 %v1340
    %v1525 = vunpack.c.l.b16 %v1341
    %v1526 = vunpack.c.h.b16 %v1341
    %v1527 = vunpack.c.l.b16 %v1342
    %v1528 = vunpack.c.h.b16 %v1342
    %v1529 = vunpack.c.l.b16 %v1343
    %v1530 = vunpack.c.h.b16 %v1343
    %v1531 = vunpack.c.l.b16 %v1344
    %v1532 = vunpack.c.h.b16 %v1344
    %v1533 = vunpack.c.l.b16 %v1345
    %v1534 = vunpack.c.h.b16 %v1345
    %v1535 = vunpack.c.l.b16 %v1346
    %v1536 = vunpack.c.h.b16 %v1346
    %v1537 = vunpack.c.l.b16 %v1347
    %v1538 = vunpack.c.h.b16 %v1347
    %v1539 = vunpack.c.l.b16 %v1348
    %v1540 = vunpack.c.h.b16 %v1348
    %v1541 = vunpack.c.l.b16 %v1349
    %v1542 = vunpack.c.h.b16 %v1349
    %v1543 = vunpack.c.l.b16 %v1350
    %v1544 = vunpack.c.h.b16 %v1350
    %v1545 = vunpack.c.l.b16 %v1351
    %v1546 = vunpack.c.h.b16 %v1351
    %v1547 = vunpack.c.l.b16 %v1352
    %v1548 = vunpack.c.h.b16 %v1352
    %v1549 = vunpack.c.l.b16 %v1353
    %v1550 = vunpack.c.h.b16 %v1353
    %v1551 = vunpack.c.l.b16 %v1354
    %v1552 = vunpack.c.h.b16 %v1354
    %v1553 = vunpack.c.l.b16 %v1355
    %v1554 = vunpack.c.h.b16 %v1355
    %v1555 = vunpack.c.l.b16 %v1356
    %v1556 = vunpack.c.h.b16 %v1356
    %v1557 = vunpack.c.l.b16 %v1357
    %v1558 = vunpack.c.h.b16 %v1357
    %v1559 = vunpack.c.l.b16 %v1358
    %v1560 = vunpack.c.h.b16 %v1358
    %v1561 = vunpack.c.l.b16 %v1359
    %v1562 = vunpack.c.h.b16 %v1359
    %v1563 = vunpack.c.l.b16 %v1360
    %v1564 = vunpack.c.h.b16 %v1360
    %v1565 = vunpack.c.l.b16 %v1361
    %v1566 = vunpack.c.h.b16 %v1361
    %v1567 = vunpack.c.l.b16 %v1362
    %v1568 = vunpack.c.h.b16 %v1362
    %v1569 = vunpack.c.l.b16 %v1363
    %v1570 = vunpack.c.h.b16 %v1363
    %v1571 = vunpack.c.l.b16 %v1364
    %v1572 = vunpack.c.h.b16 %v1364
    %v1573 = vunpack.c.l.b16 %v1365
    %v1574 = vunpack.c.h.b16 %v1365
    %v1575 = vunpack.c.l.b16 %v1366
    %v1576 = vunpack.c.h.b16 %v1366
    %v1577 = vunpack.c.l.b16 %v1367
    %v1578 = vunpack.c.h.b16 %v1367
    %v1579 = vunpack.c.l.b16 %v1368
    %v1580 = vunpack.c.h.b16 %v1368
    %v1581 = vunpack.c.l.b16 %v1369
    %v1582 = vunpack.c.h.b16 %v1369
    %v1583 = vunpack.c.l.b16 %v1370
    %v1584 = vunpack.c.h.b16 %v1370
    %v1585 = vunpack.c.l.b16 %v1371
    %v1586 = vunpack.c.h.b16 %v1371
    %v1587 = vunpack.c.l.b16 %v1372
    %v1588 = vunpack.c.h.b16 %v1372
    %v1589 = vunpack.c.l.b16 %v1373
    %v1590 = vunpack.c.h.b16 %v1373
    %v1591 = vunpack.c.l.b16 %v1374
    %v1592 = vunpack.c.h.b16 %v1374
    %v1593 = vunpack.c.l.b16 %v1375
    %v1594 = vunpack.c.h.b16 %v1375
    %v1595 = vunpack.c.l.b16 %v1376
    %v1596 = vunpack.c.h.b16 %v1376
    %v1597 = vunpack.c.l.b16 %v1377
    %v1598 = vunpack.c.h.b16 %v1377
    %v1599 = vunpack.c.l.b16 %v1378
    %v1600 = vunpack.c.h.b16 %v1378
    %v1601 = vunpack.c.l.b16 %v1379
    %v1602 = vunpack.c.h.b16 %v1379
    %v1603 = vunpack.c.l.b16 %v1380
    %v1604 = vunpack.c.h.b16 %v1380
    %v1605 = vunpack.c.l.b16 %v1381
    %v1606 = vunpack.c.h.b16 %v1381
    %v1607 = vunpack.c.l.b16 %v1382
    %v1608 = vunpack.c.h.b16 %v1382
    %v1609 = vunpack.c.l.b16 %v1383
    %v1610 = vunpack.c.h.b16 %v1383
    %v1611 = vunpack.c.l.b16 %v1384
    %v1612 = vunpack.c.h.b16 %v1384
    %v1613 = vunpack.c.l.b16 %v1385
    %v1614 = vunpack.c.h.b16 %v1385
    %v1615 = vunpack.c.l.b16 %v1386
    %v1616 = vunpack.c.h.b16 %v1386
    %v1617 = vunpack.c.l.b16 %v1387
    %v1618 = vunpack.c.h.b16 %v1387
    %v1619 = vunpack.c.l.b16 %v1388
    %v1620 = vunpack.c.h.b16 %v1388
    %v1621 = vpack.c.b16 %v1495, %v1493
    %v1622 = vpack.c.b16 %v1496, %v1494
    %v1623 = vpack.c.b16 %v1499, %v1497
    %v1624 = vpack.c.b16 %v1500, %v1498
    %v1625 = vpack.c.b16 %v1503, %v1501
    %v1626 = vpack.c.b16 %v1504, %v1502
    %v1627 = vpack.c.b16 %v1507, %v1505
    %v1628 = vpack.c.b16 %v1508, %v1506
    %v1629 = vpack.c.b16 %v1511, %v1509
    %v1630 = vpack.c.b16 %v1512, %v1510
    %v1631 = vpack.c.b16 %v1515, %v1513
    %v1632 = vpack.c.b16 %v1516, %v1514
    %v1633 = vpack.c.b16 %v1519, %v1517
    %v1634 = vpack.c.b16 %v1520, %v1518
    %v1635 = vpack.c.b16 %v1523, %v1521
    %v1636 = vpack.c.b16 %v1524, %v1522
    %v1637 = vpack.c.b16 %v1527, %v1525
    %v1638 = vpack.c.b16 %v1528, %v1526
    %v1639 = vpack.c.b16 %v1531, %v1529
    %v1640 = vpack.c.b16 %v1532, %v1530
    %v1641 = vpack.c.b16 %v1535, %v1533
    %v1642 = vpack.c.b16 %v1536, %v1534
    %v1643 = vpack.c.b16 %v1539, %v1537
    %v1644 = vpack.c.b16 %v1540, %v1538
    %v1645 = vpack.c.b16 %v1543, %v1541
    %v1646 = vpack.c.b16 %v1544, %v1542
    %v1647 = vpack.c.b16 %v1547, %v1545
    %v1648 = vpack.c.b16 %v1548, %v1546
    %v1649 = vpack.c.b16 %v1551, %v1549
    %v1650 = vpack.c.b16 %v1552, %v1550
    %v1651 = vpack.c.b16 %v1555, %v1553
    %v1652 = vpack.c.b16 %v1556, %v1554
    %v1653 = vpack.c.b16 %v1559, %v1557
    %v1654 = vpack.c.b16 %v1560, %v1558
    %v1655 = vpack.c.b16 %v1563, %v1561
    %v1656 = vpack.c.b16 %v1564, %v1562
    %v1657 = vpack.c.b16 %v1567, %v1565
    %v1658 = vpack.c.b16 %v1568, %v1566
    %v1659 = vpack.c.b16 %v1571, %v1569
    %v1660 = vpack.c.b16 %v1572, %v1570
    %v1661 = vpack.c.b16 %v1575, %v1573
    %v1662 = vpack.c.b16 %v1576, %v1574
    %v1663 = vpack.c.b16 %v1579, %v1577
    %v1664 = vpack.c.b16 %v1580, %v1578
    %v1665 = vpack.c.b16 %v1583, %v1581
    %v1666 = vpack.c.b16 %v1584, %v1582
    %v1667 = vpack.c.b16 %v1587, %v1585
    %v1668 = vpack.c.b16 %v1588, %v1586
    %v1669 = vpack.c.b16 %v1591, %v1589
    %v1670 = vpack.c.b16 %v1592, %v1590
    %v1671 = vpack.c.b16 %v1595, %v1593
    %v1672 = vpack.c.b16 %v1596, %v1594
    %v1673 = vpack.c.b16 %v1599, %v1597
    %v1674 = vpack.c.b16 %v1600, %v1598
    %v1675 = vpack.c.b16 %v1603, %v1601
    %v1676 = vpack.c.b16 %v1604, %v1602
    %v1677 = vpack.c.b16 %v1607, %v1605
    %v1678 = vpack.c.b16 %v1608, %v1606
    %v1679 = vpack.c.b16 %v1611, %v1609
    %v1680 = vpack.c.b16 %v1612, %v1610
    %v1681 = vpack.c.b16 %v1615, %v1613
    %v1682 = vpack.c.b16 %v1616, %v1614
    %v1683 = vpack.c.b16 %v1619, %v1617
    %v1684 = vpack.c.b16 %v1620, %v1618
    %1749 = vmatpush.bf16.msra.mxu0 %v1635
    %1750 = vmatpush.bf16.msra.mxu0 %v1633
    %1751 = vmatpush.bf16.msra.mxu0 %v1631
    %1752 = vmatpush.bf16.msra.mxu0 %v1629
    %1753 = vmatpush.bf16.msra.mxu0 %v1627
    %1754 = vmatpush.bf16.msra.mxu0 %v1625
    %1755 = vmatpush.bf16.msra.mxu0 %v1623
    %1756 = vmatpush.bf16.msra.mxu0 %v1621
    %1757 = vmatmul.bf16.gmra.mxu0 %v1413
    %v1758 = vpop.f32.mrf.mxu0
    %v1759 = vadd.f32 0.0, %v1758
    %v1760 = vpop.f32.mrf.mxu0
    %v1761 = vadd.f32 0.0, %v1760
    %1762 = vmatmul.bf16.gmra.mxu0 %v1417
    %v1763 = vpop.f32.mrf.mxu0
    %v1764 = vadd.f32 0.0, %v1763
    %v1765 = vpop.f32.mrf.mxu0
    %v1766 = vadd.f32 0.0, %v1765
    %1767 = vdwg.mxu0
    %1768 = vmatpush.bf16.msra.mxu0 %v1651
    %1769 = vmatpush.bf16.msra.mxu0 %v1649
    %1770 = vmatpush.bf16.msra.mxu0 %v1647
    %1771 = vmatpush.bf16.msra.mxu0 %v1645
    %1772 = vmatpush.bf16.msra.mxu0 %v1643
    %1773 = vmatpush.bf16.msra.mxu0 %v1641
    %1774 = vmatpush.bf16.msra.mxu0 %v1639
    %1775 = vmatpush.bf16.msra.mxu0 %v1637
    %1776 = vmatmul.bf16.gmra.mxu0 %v1414
    %v1777 = vpop.f32.mrf.mxu0
    %v1778 = vadd.f32 %v1759, %v1777
    %v1779 = vpop.f32.mrf.mxu0
    %v1780 = vadd.f32 %v1761, %v1779
    %1781 = vmatmul.bf16.gmra.mxu0 %v1418
    %v1782 = vpop.f32.mrf.mxu0
    %v1783 = vadd.f32 %v1764, %v1782
    %v1784 = vpop.f32.mrf.mxu0
    %v1785 = vadd.f32 %v1766, %v1784
    %1786 = vdwg.mxu0
    %1787 = vmatpush.bf16.msra.mxu0 %v1667
    %1788 = vmatpush.bf16.msra.mxu0 %v1665
    %1789 = vmatpush.bf16.msra.mxu0 %v1663
    %1790 = vmatpush.bf16.msra.mxu0 %v1661
    %1791 = vmatpush.bf16.msra.mxu0 %v1659
    %1792 = vmatpush.bf16.msra.mxu0 %v1657
    %1793 = vmatpush.bf16.msra.mxu0 %v1655
    %1794 = vmatpush.bf16.msra.mxu0 %v1653
    %1795 = vmatmul.bf16.gmra.mxu0 %v1415
    %v1796 = vpop.f32.mrf.mxu0
    %v1797 = vadd.f32 %v1778, %v1796
    %v1798 = vpop.f32.mrf.mxu0
    %v1799 = vadd.f32 %v1780, %v1798
    %1800 = vmatmul.bf16.gmra.mxu0 %v1419
    %v1801 = vpop.f32.mrf.mxu0
    %v1802 = vadd.f32 %v1783, %v1801
    %v1803 = vpop.f32.mrf.mxu0
    %v1804 = vadd.f32 %v1785, %v1803
    %1805 = vdwg.mxu0
    %1806 = vmatpush.bf16.msra.mxu0 %v1683
    %1807 = vmatpush.bf16.msra.mxu0 %v1681
    %1808 = vmatpush.bf16.msra.mxu0 %v1679
    %1809 = vmatpush.bf16.msra.mxu0 %v1677
    %1810 = vmatpush.bf16.msra.mxu0 %v1675
    %1811 = vmatpush.bf16.msra.mxu0 %v1673
    %1812 = vmatpush.bf16.msra.mxu0 %v1671
    %1813 = vmatpush.bf16.msra.mxu0 %v1669
    %1814 = vmatmul.bf16.gmra.mxu0 %v1416
    %v1815 = vpop.f32.mrf.mxu0
    %v1816 = vadd.f32 %v1797, %v1815
    %v1817 = vpop.f32.mrf.mxu0
    %v1818 = vadd.f32 %v1799, %v1817
    %1819 = vmatmul.bf16.gmra.mxu0 %v1420
    %v1820 = vpop.f32.mrf.mxu0
    %v1821 = vadd.f32 %v1802, %v1820
    %v1822 = vpop.f32.mrf.mxu0
    %v1823 = vadd.f32 %v1804, %v1822
    %1824 = vdwg.mxu0
    %1825 = vmatpush.bf16.msra.mxu0 %v1636
    %1826 = vmatpush.bf16.msra.mxu0 %v1634
    %1827 = vmatpush.bf16.msra.mxu0 %v1632
    %1828 = vmatpush.bf16.msra.mxu0 %v1630
    %1829 = vmatpush.bf16.msra.mxu0 %v1628
    %1830 = vmatpush.bf16.msra.mxu0 %v1626
    %1831 = vmatpush.bf16.msra.mxu0 %v1624
    %1832 = vmatpush.bf16.msra.mxu0 %v1622
    %1833 = vmatmul.bf16.gmra.mxu0 %v1413
    %v1834 = vpop.f32.mrf.mxu0
    %v1835 = vadd.f32 0.0, %v1834
    %v1836 = vpop.f32.mrf.mxu0
    %v1837 = vadd.f32 0.0, %v1836
    %1838 = vmatmul.bf16.gmra.mxu0 %v1417
    %v1839 = vpop.f32.mrf.mxu0
    %v1840 = vadd.f32 0.0, %v1839
    %v1841 = vpop.f32.mrf.mxu0
    %v1842 = vadd.f32 0.0, %v1841
    %1843 = vdwg.mxu0
    %1844 = vmatpush.bf16.msra.mxu0 %v1652
    %1845 = vmatpush.bf16.msra.mxu0 %v1650
    %1846 = vmatpush.bf16.msra.mxu0 %v1648
    %1847 = vmatpush.bf16.msra.mxu0 %v1646
    %1848 = vmatpush.bf16.msra.mxu0 %v1644
    %1849 = vmatpush.bf16.msra.mxu0 %v1642
    %1850 = vmatpush.bf16.msra.mxu0 %v1640
    %1851 = vmatpush.bf16.msra.mxu0 %v1638
    %1852 = vmatmul.bf16.gmra.mxu0 %v1414
    %v1853 = vpop.f32.mrf.mxu0
    %v1854 = vadd.f32 %v1835, %v1853
    %v1855 = vpop.f32.mrf.mxu0
    %v1856 = vadd.f32 %v1837, %v1855
    %1857 = vmatmul.bf16.gmra.mxu0 %v1418
    %v1858 = vpop.f32.mrf.mxu0
    %v1859 = vadd.f32 %v1840, %v1858
    %v1860 = vpop.f32.mrf.mxu0
    %v1861 = vadd.f32 %v1842, %v1860
    %1862 = vdwg.mxu0
    %1863 = vmatpush.bf16.msra.mxu0 %v1668
    %1864 = vmatpush.bf16.msra.mxu0 %v1666
    %1865 = vmatpush.bf16.msra.mxu0 %v1664
    %1866 = vmatpush.bf16.msra.mxu0 %v1662
    %1867 = vmatpush.bf16.msra.mxu0 %v1660
    %1868 = vmatpush.bf16.msra.mxu0 %v1658
    %1869 = vmatpush.bf16.msra.mxu0 %v1656
    %1870 = vmatpush.bf16.msra.mxu0 %v1654
    %1871 = vmatmul.bf16.gmra.mxu0 %v1415
    %v1872 = vpop.f32.mrf.mxu0
    %v1873 = vadd.f32 %v1854, %v1872
    %v1874 = vpop.f32.mrf.mxu0
    %v1875 = vadd.f32 %v1856, %v1874
    %1876 = vmatmul.bf16.gmra.mxu0 %v1419
    %v1877 = vpop.f32.mrf.mxu0
    %v1878 = vadd.f32 %v1859, %v1877
    %v1879 = vpop.f32.mrf.mxu0
    %v1880 = vadd.f32 %v1861, %v1879
    %1881 = vdwg.mxu0
    %1882 = vmatpush.bf16.msra.mxu0 %v1684
    %1883 = vmatpush.bf16.msra.mxu0 %v1682
    %1884 = vmatpush.bf16.msra.mxu0 %v1680
    %1885 = vmatpush.bf16.msra.mxu0 %v1678
    %1886 = vmatpush.bf16.msra.mxu0 %v1676
    %1887 = vmatpush.bf16.msra.mxu0 %v1674
    %1888 = vmatpush.bf16.msra.mxu0 %v1672
    %1889 = vmatpush.bf16.msra.mxu0 %v1670
    %1890 = vmatmul.bf16.gmra.mxu0 %v1416
    %v1891 = vpop.f32.mrf.mxu0
    %v1892 = vadd.f32 %v1873, %v1891
    %v1893 = vpop.f32.mrf.mxu0
    %v1894 = vadd.f32 %v1875, %v1893
    %1895 = vmatmul.bf16.gmra.mxu0 %v1420
    %v1896 = vpop.f32.mrf.mxu0
    %v1897 = vadd.f32 %v1878, %v1896
    %v1898 = vpop.f32.mrf.mxu0
    %v1899 = vadd.f32 %v1880, %v1898
    %1900 = vdwg.mxu0
    %v1903 = vunpack.c.l.b16 %v1250
    %v1904 = vunpack.c.h.b16 %v1250
    %v1905 = vunpack.c.l.b16 %v1251
    %v1906 = vunpack.c.h.b16 %v1251
    %v1907 = vpack.c.b16 %v1397, %v1903
    %v1908 = vpack.c.b16 %v1398, %v1904
    %v1909 = vpack.c.b16 %v1399, %v1905
    %v1910 = vpack.c.b16 %v1400, %v1906
    %v1911 = vpack.c.b16 %v1405, %v1401
    %v1912 = vpack.c.b16 %v1406, %v1402
    %v1913 = vpack.c.b16 %v1407, %v1403
    %v1914 = vpack.c.b16 %v1408, %v1404
    %v1987 = vunpack.c.l.b16 %v1258
    %v1988 = vunpack.c.h.b16 %v1258
    %v1989 = vunpack.c.l.b16 %v1259
    %v1990 = vunpack.c.h.b16 %v1259
    %v1991 = vunpack.c.l.b16 %v1260
    %v1992 = vunpack.c.h.b16 %v1260
    %v1993 = vunpack.c.l.b16 %v1261
    %v1994 = vunpack.c.h.b16 %v1261
    %v1995 = vunpack.c.l.b16 %v1262
    %v1996 = vunpack.c.h.b16 %v1262
    %v1997 = vunpack.c.l.b16 %v1263
    %v1998 = vunpack.c.h.b16 %v1263
    %v1999 = vunpack.c.l.b16 %v1264
    %v2000 = vunpack.c.h.b16 %v1264
    %v2001 = vunpack.c.l.b16 %v1265
    %v2002 = vunpack.c.h.b16 %v1265
    %v2003 = vunpack.c.l.b16 %v1266
    %v2004 = vunpack.c.h.b16 %v1266
    %v2005 = vunpack.c.l.b16 %v1267
    %v2006 = vunpack.c.h.b16 %v1267
    %v2007 = vunpack.c.l.b16 %v1268
    %v2008 = vunpack.c.h.b16 %v1268
    %v2009 = vunpack.c.l.b16 %v1269
    %v2010 = vunpack.c.h.b16 %v1269
    %v2011 = vunpack.c.l.b16 %v1270
    %v2012 = vunpack.c.h.b16 %v1270
    %v2013 = vunpack.c.l.b16 %v1271
    %v2014 = vunpack.c.h.b16 %v1271
    %v2015 = vunpack.c.l.b16 %v1272
    %v2016 = vunpack.c.h.b16 %v1272
    %v2017 = vunpack.c.l.b16 %v1273
    %v2018 = vunpack.c.h.b16 %v1273
    %v2019 = vunpack.c.l.b16 %v1274
    %v2020 = vunpack.c.h.b16 %v1274
    %v2021 = vunpack.c.l.b16 %v1275
    %v2022 = vunpack.c.h.b16 %v1275
    %v2023 = vunpack.c.l.b16 %v1276
    %v2024 = vunpack.c.h.b16 %v1276
    %v2025 = vunpack.c.l.b16 %v1277
    %v2026 = vunpack.c.h.b16 %v1277
    %v2027 = vunpack.c.l.b16 %v1278
    %v2028 = vunpack.c.h.b16 %v1278
    %v2029 = vunpack.c.l.b16 %v1279
    %v2030 = vunpack.c.h.b16 %v1279
    %v2031 = vunpack.c.l.b16 %v1280
    %v2032 = vunpack.c.h.b16 %v1280
    %v2033 = vunpack.c.l.b16 %v1281
    %v2034 = vunpack.c.h.b16 %v1281
    %v2035 = vunpack.c.l.b16 %v1282
    %v2036 = vunpack.c.h.b16 %v1282
    %v2037 = vunpack.c.l.b16 %v1283
    %v2038 = vunpack.c.h.b16 %v1283
    %v2039 = vunpack.c.l.b16 %v1284
    %v2040 = vunpack.c.h.b16 %v1284
    %v2041 = vunpack.c.l.b16 %v1285
    %v2042 = vunpack.c.h.b16 %v1285
    %v2043 = vunpack.c.l.b16 %v1286
    %v2044 = vunpack.c.h.b16 %v1286
    %v2045 = vunpack.c.l.b16 %v1287
    %v2046 = vunpack.c.h.b16 %v1287
    %v2047 = vunpack.c.l.b16 %v1288
    %v2048 = vunpack.c.h.b16 %v1288
    %v2049 = vunpack.c.l.b16 %v1289
    %v2050 = vunpack.c.h.b16 %v1289
    %v2051 = vunpack.c.l.b16 %v1290
    %v2052 = vunpack.c.h.b16 %v1290
    %v2053 = vunpack.c.l.b16 %v1291
    %v2054 = vunpack.c.h.b16 %v1291
    %v2055 = vunpack.c.l.b16 %v1292
    %v2056 = vunpack.c.h.b16 %v1292
    %v2057 = vunpack.c.l.b16 %v1293
    %v2058 = vunpack.c.h.b16 %v1293
    %v2059 = vunpack.c.l.b16 %v1294
    %v2060 = vunpack.c.h.b16 %v1294
    %v2061 = vunpack.c.l.b16 %v1295
    %v2062 = vunpack.c.h.b16 %v1295
    %v2063 = vunpack.c.l.b16 %v1296
    %v2064 = vunpack.c.h.b16 %v1296
    %v2065 = vunpack.c.l.b16 %v1297
    %v2066 = vunpack.c.h.b16 %v1297
    %v2067 = vunpack.c.l.b16 %v1298
    %v2068 = vunpack.c.h.b16 %v1298
    %v2069 = vunpack.c.l.b16 %v1299
    %v2070 = vunpack.c.h.b16 %v1299
    %v2071 = vunpack.c.l.b16 %v1300
    %v2072 = vunpack.c.h.b16 %v1300
    %v2073 = vunpack.c.l.b16 %v1301
    %v2074 = vunpack.c.h.b16 %v1301
    %v2075 = vunpack.c.l.b16 %v1302
    %v2076 = vunpack.c.h.b16 %v1302
    %v2077 = vunpack.c.l.b16 %v1303
    %v2078 = vunpack.c.h.b16 %v1303
    %v2079 = vunpack.c.l.b16 %v1304
    %v2080 = vunpack.c.h.b16 %v1304
    %v2081 = vunpack.c.l.b16 %v1305
    %v2082 = vunpack.c.h.b16 %v1305
    %v2083 = vunpack.c.l.b16 %v1306
    %v2084 = vunpack.c.h.b16 %v1306
    %v2085 = vunpack.c.l.b16 %v1307
    %v2086 = vunpack.c.h.b16 %v1307
    %v2087 = vunpack.c.l.b16 %v1308
    %v2088 = vunpack.c.h.b16 %v1308
    %v2089 = vunpack.c.l.b16 %v1309
    %v2090 = vunpack.c.h.b16 %v1309
    %v2091 = vunpack.c.l.b16 %v1310
    %v2092 = vunpack.c.h.b16 %v1310
    %v2093 = vunpack.c.l.b16 %v1311
    %v2094 = vunpack.c.h.b16 %v1311
    %v2095 = vunpack.c.l.b16 %v1312
    %v2096 = vunpack.c.h.b16 %v1312
    %v2097 = vunpack.c.l.b16 %v1313
    %v2098 = vunpack.c.h.b16 %v1313
    %v2099 = vunpack.c.l.b16 %v1314
    %v2100 = vunpack.c.h.b16 %v1314
    %v2101 = vunpack.c.l.b16 %v1315
    %v2102 = vunpack.c.h.b16 %v1315
    %v2103 = vunpack.c.l.b16 %v1316
    %v2104 = vunpack.c.h.b16 %v1316
    %v2105 = vunpack.c.l.b16 %v1317
    %v2106 = vunpack.c.h.b16 %v1317
    %v2107 = vunpack.c.l.b16 %v1318
    %v2108 = vunpack.c.h.b16 %v1318
    %v2109 = vunpack.c.l.b16 %v1319
    %v2110 = vunpack.c.h.b16 %v1319
    %v2111 = vunpack.c.l.b16 %v1320
    %v2112 = vunpack.c.h.b16 %v1320
    %v2113 = vunpack.c.l.b16 %v1321
    %v2114 = vunpack.c.h.b16 %v1321
    %v2115 = vpack.c.b16 %v1989, %v1987
    %v2116 = vpack.c.b16 %v1990, %v1988
    %v2117 = vpack.c.b16 %v1993, %v1991
    %v2118 = vpack.c.b16 %v1994, %v1992
    %v2119 = vpack.c.b16 %v1997, %v1995
    %v2120 = vpack.c.b16 %v1998, %v1996
    %v2121 = vpack.c.b16 %v2001, %v1999
    %v2122 = vpack.c.b16 %v2002, %v2000
    %v2123 = vpack.c.b16 %v2005, %v2003
    %v2124 = vpack.c.b16 %v2006, %v2004
    %v2125 = vpack.c.b16 %v2009, %v2007
    %v2126 = vpack.c.b16 %v2010, %v2008
    %v2127 = vpack.c.b16 %v2013, %v2011
    %v2128 = vpack.c.b16 %v2014, %v2012
    %v2129 = vpack.c.b16 %v2017, %v2015
    %v2130 = vpack.c.b16 %v2018, %v2016
    %v2131 = vpack.c.b16 %v2021, %v2019
    %v2132 = vpack.c.b16 %v2022, %v2020
    %v2133 = vpack.c.b16 %v2025, %v2023
    %v2134 = vpack.c.b16 %v2026, %v2024
    %v2135 = vpack.c.b16 %v2029, %v2027
    %v2136 = vpack.c.b16 %v2030, %v2028
    %v2137 = vpack.c.b16 %v2033, %v2031
    %v2138 = vpack.c.b16 %v2034, %v2032
    %v2139 = vpack.c.b16 %v2037, %v2035
    %v2140 = vpack.c.b16 %v2038, %v2036
    %v2141 = vpack.c.b16 %v2041, %v2039
    %v2142 = vpack.c.b16 %v2042, %v2040
    %v2143 = vpack.c.b16 %v2045, %v2043
    %v2144 = vpack.c.b16 %v2046, %v2044
    %v2145 = vpack.c.b16 %v2049, %v2047
    %v2146 = vpack.c.b16 %v2050, %v2048
    %v2147 = vpack.c.b16 %v2053, %v2051
    %v2148 = vpack.c.b16 %v2054, %v2052
    %v2149 = vpack.c.b16 %v2057, %v2055
    %v2150 = vpack.c.b16 %v2058, %v2056
    %v2151 = vpack.c.b16 %v2061, %v2059
    %v2152 = vpack.c.b16 %v2062, %v2060
    %v2153 = vpack.c.b16 %v2065, %v2063
    %v2154 = vpack.c.b16 %v2066, %v2064
    %v2155 = vpack.c.b16 %v2069, %v2067
    %v2156 = vpack.c.b16 %v2070, %v2068
    %v2157 = vpack.c.b16 %v2073, %v2071
    %v2158 = vpack.c.b16 %v2074, %v2072
    %v2159 = vpack.c.b16 %v2077, %v2075
    %v2160 = vpack.c.b16 %v2078, %v2076
    %v2161 = vpack.c.b16 %v2081, %v2079
    %v2162 = vpack.c.b16 %v2082, %v2080
    %v2163 = vpack.c.b16 %v2085, %v2083
    %v2164 = vpack.c.b16 %v2086, %v2084
    %v2165 = vpack.c.b16 %v2089, %v2087
    %v2166 = vpack.c.b16 %v2090, %v2088
    %v2167 = vpack.c.b16 %v2093, %v2091
    %v2168 = vpack.c.b16 %v2094, %v2092
    %v2169 = vpack.c.b16 %v2097, %v2095
    %v2170 = vpack.c.b16 %v2098, %v2096
    %v2171 = vpack.c.b16 %v2101, %v2099
    %v2172 = vpack.c.b16 %v2102, %v2100
    %v2173 = vpack.c.b16 %v2105, %v2103
    %v2174 = vpack.c.b16 %v2106, %v2104
    %v2175 = vpack.c.b16 %v2109, %v2107
    %v2176 = vpack.c.b16 %v2110, %v2108
    %v2177 = vpack.c.b16 %v2113, %v2111
    %v2178 = vpack.c.b16 %v2114, %v2112
    %2243 = vmatpush.bf16.msra.mxu0 %v2129
    %2244 = vmatpush.bf16.msra.mxu0 %v2127
    %2245 = vmatpush.bf16.msra.mxu0 %v2125
    %2246 = vmatpush.bf16.msra.mxu0 %v2123
    %2247 = vmatpush.bf16.msra.mxu0 %v2121
    %2248 = vmatpush.bf16.msra.mxu0 %v2119
    %2249 = vmatpush.bf16.msra.mxu0 %v2117
    %2250 = vmatpush.bf16.msra.mxu0 %v2115
    %2251 = vmatmul.bf16.gmra.mxu0 %v1907
    %v2252 = vpop.f32.mrf.mxu0
    %v2253 = vadd.f32 %v1816, %v2252
    %v2254 = vpop.f32.mrf.mxu0
    %v2255 = vadd.f32 %v1818, %v2254
    %2256 = vmatmul.bf16.gmra.mxu0 %v1911
    %v2257 = vpop.f32.mrf.mxu0
    %v2258 = vadd.f32 %v1821, %v2257
    %v2259 = vpop.f32.mrf.mxu0
    %v2260 = vadd.f32 %v1823, %v2259
    %2261 = vdwg.mxu0
    %2262 = vmatpush.bf16.msra.mxu0 %v2145
    %2263 = vmatpush.bf16.msra.mxu0 %v2143
    %2264 = vmatpush.bf16.msra.mxu0 %v2141
    %2265 = vmatpush.bf16.msra.mxu0 %v2139
    %2266 = vmatpush.bf16.msra.mxu0 %v2137
    %2267 = vmatpush.bf16.msra.mxu0 %v2135
    %2268 = vmatpush.bf16.msra.mxu0 %v2133
    %2269 = vmatpush.bf16.msra.mxu0 %v2131
    %2270 = vmatmul.bf16.gmra.mxu0 %v1908
    %v2271 = vpop.f32.mrf.mxu0
    %v2272 = vadd.f32 %v2253, %v2271
    %v2273 = vpop.f32.mrf.mxu0
    %v2274 = vadd.f32 %v2255, %v2273
    %2275 = vmatmul.bf16.gmra.mxu0 %v1912
    %v2276 = vpop.f32.mrf.mxu0
    %v2277 = vadd.f32 %v2258, %v2276
    %v2278 = vpop.f32.mrf.mxu0
    %v2279 = vadd.f32 %v2260, %v2278
    %2280 = vdwg.mxu0
    %2281 = vmatpush.bf16.msra.mxu0 %v2161
    %2282 = vmatpush.bf16.msra.mxu0 %v2159
    %2283 = vmatpush.bf16.msra.mxu0 %v2157
    %2284 = vmatpush.bf16.msra.mxu0 %v2155
    %2285 = vmatpush.bf16.msra.mxu0 %v2153
    %2286 = vmatpush.bf16.msra.mxu0 %v2151
    %2287 = vmatpush.bf16.msra.mxu0 %v2149
    %2288 = vmatpush.bf16.msra.mxu0 %v2147
    %2289 = vmatmul.bf16.gmra.mxu0 %v1909
    %v2290 = vpop.f32.mrf.mxu0
    %v2291 = vadd.f32 %v2272, %v2290
    %v2292 = vpop.f32.mrf.mxu0
    %v2293 = vadd.f32 %v2274, %v2292
    %2294 = vmatmul.bf16.gmra.mxu0 %v1913
    %v2295 = vpop.f32.mrf.mxu0
    %v2296 = vadd.f32 %v2277, %v2295
    %v2297 = vpop.f32.mrf.mxu0
    %v2298 = vadd.f32 %v2279, %v2297
    %2299 = vdwg.mxu0
    %2300 = vmatpush.bf16.msra.mxu0 %v2177
    %2301 = vmatpush.bf16.msra.mxu0 %v2175
    %2302 = vmatpush.bf16.msra.mxu0 %v2173
    %2303 = vmatpush.bf16.msra.mxu0 %v2171
    %2304 = vmatpush.bf16.msra.mxu0 %v2169
    %2305 = vmatpush.bf16.msra.mxu0 %v2167
    %2306 = vmatpush.bf16.msra.mxu0 %v2165
    %2307 = vmatpush.bf16.msra.mxu0 %v2163
    %2308 = vmatmul.bf16.gmra.mxu0 %v1910
    %v2309 = vpop.f32.mrf.mxu0
    %v2310 = vadd.f32 %v2291, %v2309
    %v2311 = vpop.f32.mrf.mxu0
    %v2312 = vadd.f32 %v2293, %v2311
    %2313 = vmatmul.bf16.gmra.mxu0 %v1914
    %v2314 = vpop.f32.mrf.mxu0
    %v2315 = vadd.f32 %v2296, %v2314
    %v2316 = vpop.f32.mrf.mxu0
    %v2317 = vadd.f32 %v2298, %v2316
    %2318 = vdwg.mxu0
    %2319 = vmatpush.bf16.msra.mxu0 %v2130
    %2320 = vmatpush.bf16.msra.mxu0 %v2128
    %2321 = vmatpush.bf16.msra.mxu0 %v2126
    %2322 = vmatpush.bf16.msra.mxu0 %v2124
    %2323 = vmatpush.bf16.msra.mxu0 %v2122
    %2324 = vmatpush.bf16.msra.mxu0 %v2120
    %2325 = vmatpush.bf16.msra.mxu0 %v2118
    %2326 = vmatpush.bf16.msra.mxu0 %v2116
    %2327 = vmatmul.bf16.gmra.mxu0 %v1907
    %v2328 = vpop.f32.mrf.mxu0
    %v2329 = vadd.f32 %v1892, %v2328
    %v2330 = vpop.f32.mrf.mxu0
    %v2331 = vadd.f32 %v1894, %v2330
    %2332 = vmatmul.bf16.gmra.mxu0 %v1911
    %v2333 = vpop.f32.mrf.mxu0
    %v2334 = vadd.f32 %v1897, %v2333
    %v2335 = vpop.f32.mrf.mxu0
    %v2336 = vadd.f32 %v1899, %v2335
    %2337 = vdwg.mxu0
    %2338 = vmatpush.bf16.msra.mxu0 %v2146
    %2339 = vmatpush.bf16.msra.mxu0 %v2144
    %2340 = vmatpush.bf16.msra.mxu0 %v2142
    %2341 = vmatpush.bf16.msra.mxu0 %v2140
    %2342 = vmatpush.bf16.msra.mxu0 %v2138
    %2343 = vmatpush.bf16.msra.mxu0 %v2136
    %2344 = vmatpush.bf16.msra.mxu0 %v2134
    %2345 = vmatpush.bf16.msra.mxu0 %v2132
    %2346 = vmatmul.bf16.gmra.mxu0 %v1908
    %v2347 = vpop.f32.mrf.mxu0
    %v2348 = vadd.f32 %v2329, %v2347
    %v2349 = vpop.f32.mrf.mxu0
    %v2350 = vadd.f32 %v2331, %v2349
    %2351 = vmatmul.bf16.gmra.mxu0 %v1912
    %v2352 = vpop.f32.mrf.mxu0
    %v2353 = vadd.f32 %v2334, %v2352
    %v2354 = vpop.f32.mrf.mxu0
    %v2355 = vadd.f32 %v2336, %v2354
    %2356 = vdwg.mxu0
    %2357 = vmatpush.bf16.msra.mxu0 %v2162
    %2358 = vmatpush.bf16.msra.mxu0 %v2160
    %2359 = vmatpush.bf16.msra.mxu0 %v2158
    %2360 = vmatpush.bf16.msra.mxu0 %v2156
    %2361 = vmatpush.bf16.msra.mxu0 %v2154
    %2362 = vmatpush.bf16.msra.mxu0 %v2152
    %2363 = vmatpush.bf16.msra.mxu0 %v2150
    %2364 = vmatpush.bf16.msra.mxu0 %v2148
    %2365 = vmatmul.bf16.gmra.mxu0 %v1909
    %v2366 = vpop.f32.mrf.mxu0
    %v2367 = vadd.f32 %v2348, %v2366
    %v2368 = vpop.f32.mrf.mxu0
    %v2369 = vadd.f32 %v2350, %v2368
    %2370 = vmatmul.bf16.gmra.mxu0 %v1913
    %v2371 = vpop.f32.mrf.mxu0
    %v2372 = vadd.f32 %v2353, %v2371
    %v2373 = vpop.f32.mrf.mxu0
    %v2374 = vadd.f32 %v2355, %v2373
    %2375 = vdwg.mxu0
    %2376 = vmatpush.bf16.msra.mxu0 %v2178
    %2377 = vmatpush.bf16.msra.mxu0 %v2176
    %2378 = vmatpush.bf16.msra.mxu0 %v2174
    %2379 = vmatpush.bf16.msra.mxu0 %v2172
    %2380 = vmatpush.bf16.msra.mxu0 %v2170
    %2381 = vmatpush.bf16.msra.mxu0 %v2168
    %2382 = vmatpush.bf16.msra.mxu0 %v2166
    %2383 = vmatpush.bf16.msra.mxu0 %v2164
    %2384 = vmatmul.bf16.gmra.mxu0 %v1910
    %v2385 = vpop.f32.mrf.mxu0
    %v2386 = vadd.f32 %v2367, %v2385
    %v2387 = vpop.f32.mrf.mxu0
    %v2388 = vadd.f32 %v2369, %v2387
    %2389 = vmatmul.bf16.gmra.mxu0 %v1914
    %v2390 = vpop.f32.mrf.mxu0
    %v2391 = vadd.f32 %v2372, %v2390
    %v2392 = vpop.f32.mrf.mxu0
    %v2393 = vadd.f32 %v2374, %v2392
    %2394 = vdwg.mxu0
    %v2395 = vld [vmem:[#allocation2 + $0x20] sm:$0xff]
    %v2396 = vld [vmem:[#allocation2 + $0x28] sm:$0xff]
    %v2397 = vld [vmem:[#allocation2 + $0x30] sm:$0xff]
    %v2398 = vld [vmem:[#allocation2 + $0x38] sm:$0xff]
    %v2399 = vld [vmem:[#allocation2 + $0x40] sm:$0xff]
    %v2400 = vld [vmem:[#allocation2 + $0x48] sm:$0xff]
    %v2401 = vld [vmem:[#allocation2 + $0x50] sm:$0xff]
    %v2402 = vld [vmem:[#allocation2 + $0x58] sm:$0xff]
    %s2403 = scalar_lea.vmem %s2, 1024
    %v2404 = vld [vmem:[%s2403] sm:$0xff]
    %v2405 = vld [vmem:[%s2403 + $0x8] sm:$0xff]
    %v2406 = vld [vmem:[%s2403 + $0x10] sm:$0xff]
    %v2407 = vld [vmem:[%s2403 + $0x18] sm:$0xff]
    %v2408 = vld [vmem:[%s2403 + $0x20] sm:$0xff]
    %v2409 = vld [vmem:[%s2403 + $0x28] sm:$0xff]
    %v2410 = vld [vmem:[%s2403 + $0x30] sm:$0xff]
    %v2411 = vld [vmem:[%s2403 + $0x38] sm:$0xff]
    %v2412 = vld [vmem:[%s2403 + $0x40] sm:$0xff]
    %v2413 = vld [vmem:[%s2403 + $0x48] sm:$0xff]
    %v2414 = vld [vmem:[%s2403 + $0x50] sm:$0xff]
    %v2415 = vld [vmem:[%s2403 + $0x58] sm:$0xff]
    %v2416 = vld [vmem:[%s2403 + $0x60] sm:$0xff]
    %v2417 = vld [vmem:[%s2403 + $0x68] sm:$0xff]
    %v2418 = vld [vmem:[%s2403 + $0x70] sm:$0xff]
    %v2419 = vld [vmem:[%s2403 + $0x78] sm:$0xff]
    %v2420 = vld [vmem:[%s2403 + $0x80] sm:$0xff]
    %v2421 = vld [vmem:[%s2403 + $0x88] sm:$0xff]
    %v2422 = vld [vmem:[%s2403 + $0x90] sm:$0xff]
    %v2423 = vld [vmem:[%s2403 + $0x98] sm:$0xff]
    %v2424 = vld [vmem:[%s2403 + $0xa0] sm:$0xff]
    %v2425 = vld [vmem:[%s2403 + $0xa8] sm:$0xff]
    %v2426 = vld [vmem:[%s2403 + $0xb0] sm:$0xff]
    %v2427 = vld [vmem:[%s2403 + $0xb8] sm:$0xff]
    %v2428 = vld [vmem:[%s2403 + $0xc0] sm:$0xff]
    %v2429 = vld [vmem:[%s2403 + $0xc8] sm:$0xff]
    %v2430 = vld [vmem:[%s2403 + $0xd0] sm:$0xff]
    %v2431 = vld [vmem:[%s2403 + $0xd8] sm:$0xff]
    %v2432 = vld [vmem:[%s2403 + $0xe0] sm:$0xff]
    %v2433 = vld [vmem:[%s2403 + $0xe8] sm:$0xff]
    %v2434 = vld [vmem:[%s2403 + $0xf0] sm:$0xff]
    %v2435 = vld [vmem:[%s2403 + $0xf8] sm:$0xff]
    %v2436 = vld [vmem:[%s2403 + $0x100] sm:$0xff]
    %v2437 = vld [vmem:[%s2403 + $0x108] sm:$0xff]
    %v2438 = vld [vmem:[%s2403 + $0x110] sm:$0xff]
    %v2439 = vld [vmem:[%s2403 + $0x118] sm:$0xff]
    %v2440 = vld [vmem:[%s2403 + $0x120] sm:$0xff]
    %v2441 = vld [vmem:[%s2403 + $0x128] sm:$0xff]
    %v2442 = vld [vmem:[%s2403 + $0x130] sm:$0xff]
    %v2443 = vld [vmem:[%s2403 + $0x138] sm:$0xff]
    %v2444 = vld [vmem:[%s2403 + $0x140] sm:$0xff]
    %v2445 = vld [vmem:[%s2403 + $0x148] sm:$0xff]
    %v2446 = vld [vmem:[%s2403 + $0x150] sm:$0xff]
    %v2447 = vld [vmem:[%s2403 + $0x158] sm:$0xff]
    %v2448 = vld [vmem:[%s2403 + $0x160] sm:$0xff]
    %v2449 = vld [vmem:[%s2403 + $0x168] sm:$0xff]
    %v2450 = vld [vmem:[%s2403 + $0x170] sm:$0xff]
    %v2451 = vld [vmem:[%s2403 + $0x178] sm:$0xff]
    %v2452 = vld [vmem:[%s2403 + $0x180] sm:$0xff]
    %v2453 = vld [vmem:[%s2403 + $0x188] sm:$0xff]
    %v2454 = vld [vmem:[%s2403 + $0x190] sm:$0xff]
    %v2455 = vld [vmem:[%s2403 + $0x198] sm:$0xff]
    %v2456 = vld [vmem:[%s2403 + $0x1a0] sm:$0xff]
    %v2457 = vld [vmem:[%s2403 + $0x1a8] sm:$0xff]
    %v2458 = vld [vmem:[%s2403 + $0x1b0] sm:$0xff]
    %v2459 = vld [vmem:[%s2403 + $0x1b8] sm:$0xff]
    %v2460 = vld [vmem:[%s2403 + $0x1c0] sm:$0xff]
    %v2461 = vld [vmem:[%s2403 + $0x1c8] sm:$0xff]
    %v2462 = vld [vmem:[%s2403 + $0x1d0] sm:$0xff]
    %v2463 = vld [vmem:[%s2403 + $0x1d8] sm:$0xff]
    %v2464 = vld [vmem:[%s2403 + $0x1e0] sm:$0xff]
    %v2465 = vld [vmem:[%s2403 + $0x1e8] sm:$0xff]
    %v2466 = vld [vmem:[%s2403 + $0x1f0] sm:$0xff]
    %v2467 = vld [vmem:[%s2403 + $0x1f8] sm:$0xff]
    %v2476 = vunpack.c.l.b16 %v2395
    %v2477 = vunpack.c.h.b16 %v2395
    %v2478 = vunpack.c.l.b16 %v2396
    %v2479 = vunpack.c.h.b16 %v2396
    %v2480 = vunpack.c.l.b16 %v2397
    %v2481 = vunpack.c.h.b16 %v2397
    %v2482 = vunpack.c.l.b16 %v2398
    %v2483 = vunpack.c.h.b16 %v2398
    %v2484 = vunpack.c.l.b16 %v2399
    %v2485 = vunpack.c.h.b16 %v2399
    %v2486 = vunpack.c.l.b16 %v2400
    %v2487 = vunpack.c.h.b16 %v2400
    %v2488 = vunpack.c.l.b16 %v2401
    %v2489 = vunpack.c.h.b16 %v2401
    %v2490 = vunpack.c.l.b16 %v2402
    %v2491 = vunpack.c.h.b16 %v2402
    %v2492 = vpack.c.b16 %v2480, %v2476
    %v2493 = vpack.c.b16 %v2481, %v2477
    %v2494 = vpack.c.b16 %v2482, %v2478
    %v2495 = vpack.c.b16 %v2483, %v2479
    %v2496 = vpack.c.b16 %v2488, %v2484
    %v2497 = vpack.c.b16 %v2489, %v2485
    %v2498 = vpack.c.b16 %v2490, %v2486
    %v2499 = vpack.c.b16 %v2491, %v2487
    %v2572 = vunpack.c.l.b16 %v2404
    %v2573 = vunpack.c.h.b16 %v2404
    %v2574 = vunpack.c.l.b16 %v2405
    %v2575 = vunpack.c.h.b16 %v2405
    %v2576 = vunpack.c.l.b16 %v2406
    %v2577 = vunpack.c.h.b16 %v2406
    %v2578 = vunpack.c.l.b16 %v2407
    %v2579 = vunpack.c.h.b16 %v2407
    %v2580 = vunpack.c.l.b16 %v2408
    %v2581 = vunpack.c.h.b16 %v2408
    %v2582 = vunpack.c.l.b16 %v2409
    %v2583 = vunpack.c.h.b16 %v2409
    %v2584 = vunpack.c.l.b16 %v2410
    %v2585 = vunpack.c.h.b16 %v2410
    %v2586 = vunpack.c.l.b16 %v2411
    %v2587 = vunpack.c.h.b16 %v2411
    %v2588 = vunpack.c.l.b16 %v2412
    %v2589 = vunpack.c.h.b16 %v2412
    %v2590 = vunpack.c.l.b16 %v2413
    %v2591 = vunpack.c.h.b16 %v2413
    %v2592 = vunpack.c.l.b16 %v2414
    %v2593 = vunpack.c.h.b16 %v2414
    %v2594 = vunpack.c.l.b16 %v2415
    %v2595 = vunpack.c.h.b16 %v2415
    %v2596 = vunpack.c.l.b16 %v2416
    %v2597 = vunpack.c.h.b16 %v2416
    %v2598 = vunpack.c.l.b16 %v2417
    %v2599 = vunpack.c.h.b16 %v2417
    %v2600 = vunpack.c.l.b16 %v2418
    %v2601 = vunpack.c.h.b16 %v2418
    %v2602 = vunpack.c.l.b16 %v2419
    %v2603 = vunpack.c.h.b16 %v2419
    %v2604 = vunpack.c.l.b16 %v2420
    %v2605 = vunpack.c.h.b16 %v2420
    %v2606 = vunpack.c.l.b16 %v2421
    %v2607 = vunpack.c.h.b16 %v2421
    %v2608 = vunpack.c.l.b16 %v2422
    %v2609 = vunpack.c.h.b16 %v2422
    %v2610 = vunpack.c.l.b16 %v2423
    %v2611 = vunpack.c.h.b16 %v2423
    %v2612 = vunpack.c.l.b16 %v2424
    %v2613 = vunpack.c.h.b16 %v2424
    %v2614 = vunpack.c.l.b16 %v2425
    %v2615 = vunpack.c.h.b16 %v2425
    %v2616 = vunpack.c.l.b16 %v2426
    %v2617 = vunpack.c.h.b16 %v2426
    %v2618 = vunpack.c.l.b16 %v2427
    %v2619 = vunpack.c.h.b16 %v2427
    %v2620 = vunpack.c.l.b16 %v2428
    %v2621 = vunpack.c.h.b16 %v2428
    %v2622 = vunpack.c.l.b16 %v2429
    %v2623 = vunpack.c.h.b16 %v2429
    %v2624 = vunpack.c.l.b16 %v2430
    %v2625 = vunpack.c.h.b16 %v2430
    %v2626 = vunpack.c.l.b16 %v2431
    %v2627 = vunpack.c.h.b16 %v2431
    %v2628 = vunpack.c.l.b16 %v2432
    %v2629 = vunpack.c.h.b16 %v2432
    %v2630 = vunpack.c.l.b16 %v2433
    %v2631 = vunpack.c.h.b16 %v2433
    %v2632 = vunpack.c.l.b16 %v2434
    %v2633 = vunpack.c.h.b16 %v2434
    %v2634 = vunpack.c.l.b16 %v2435
    %v2635 = vunpack.c.h.b16 %v2435
    %v2636 = vunpack.c.l.b16 %v2436
    %v2637 = vunpack.c.h.b16 %v2436
    %v2638 = vunpack.c.l.b16 %v2437
    %v2639 = vunpack.c.h.b16 %v2437
    %v2640 = vunpack.c.l.b16 %v2438
    %v2641 = vunpack.c.h.b16 %v2438
    %v2642 = vunpack.c.l.b16 %v2439
    %v2643 = vunpack.c.h.b16 %v2439
    %v2644 = vunpack.c.l.b16 %v2440
    %v2645 = vunpack.c.h.b16 %v2440
    %v2646 = vunpack.c.l.b16 %v2441
    %v2647 = vunpack.c.h.b16 %v2441
    %v2648 = vunpack.c.l.b16 %v2442
    %v2649 = vunpack.c.h.b16 %v2442
    %v2650 = vunpack.c.l.b16 %v2443
    %v2651 = vunpack.c.h.b16 %v2443
    %v2652 = vunpack.c.l.b16 %v2444
    %v2653 = vunpack.c.h.b16 %v2444
    %v2654 = vunpack.c.l.b16 %v2445
    %v2655 = vunpack.c.h.b16 %v2445
    %v2656 = vunpack.c.l.b16 %v2446
    %v2657 = vunpack.c.h.b16 %v2446
    %v2658 = vunpack.c.l.b16 %v2447
    %v2659 = vunpack.c.h.b16 %v2447
    %v2660 = vunpack.c.l.b16 %v2448
    %v2661 = vunpack.c.h.b16 %v2448
    %v2662 = vunpack.c.l.b16 %v2449
    %v2663 = vunpack.c.h.b16 %v2449
    %v2664 = vunpack.c.l.b16 %v2450
    %v2665 = vunpack.c.h.b16 %v2450
    %v2666 = vunpack.c.l.b16 %v2451
    %v2667 = vunpack.c.h.b16 %v2451
    %v2668 = vunpack.c.l.b16 %v2452
    %v2669 = vunpack.c.h.b16 %v2452
    %v2670 = vunpack.c.l.b16 %v2453
    %v2671 = vunpack.c.h.b16 %v2453
    %v2672 = vunpack.c.l.b16 %v2454
    %v2673 = vunpack.c.h.b16 %v2454
    %v2674 = vunpack.c.l.b16 %v2455
    %v2675 = vunpack.c.h.b16 %v2455
    %v2676 = vunpack.c.l.b16 %v2456
    %v2677 = vunpack.c.h.b16 %v2456
    %v2678 = vunpack.c.l.b16 %v2457
    %v2679 = vunpack.c.h.b16 %v2457
    %v2680 = vunpack.c.l.b16 %v2458
    %v2681 = vunpack.c.h.b16 %v2458
    %v2682 = vunpack.c.l.b16 %v2459
    %v2683 = vunpack.c.h.b16 %v2459
    %v2684 = vunpack.c.l.b16 %v2460
    %v2685 = vunpack.c.h.b16 %v2460
    %v2686 = vunpack.c.l.b16 %v2461
    %v2687 = vunpack.c.h.b16 %v2461
    %v2688 = vunpack.c.l.b16 %v2462
    %v2689 = vunpack.c.h.b16 %v2462
    %v2690 = vunpack.c.l.b16 %v2463
    %v2691 = vunpack.c.h.b16 %v2463
    %v2692 = vunpack.c.l.b16 %v2464
    %v2693 = vunpack.c.h.b16 %v2464
    %v2694 = vunpack.c.l.b16 %v2465
    %v2695 = vunpack.c.h.b16 %v2465
    %v2696 = vunpack.c.l.b16 %v2466
    %v2697 = vunpack.c.h.b16 %v2466
    %v2698 = vunpack.c.l.b16 %v2467
    %v2699 = vunpack.c.h.b16 %v2467
    %v2700 = vpack.c.b16 %v2574, %v2572
    %v2701 = vpack.c.b16 %v2575, %v2573
    %v2702 = vpack.c.b16 %v2578, %v2576
    %v2703 = vpack.c.b16 %v2579, %v2577
    %v2704 = vpack.c.b16 %v2582, %v2580
    %v2705 = vpack.c.b16 %v2583, %v2581
    %v2706 = vpack.c.b16 %v2586, %v2584
    %v2707 = vpack.c.b16 %v2587, %v2585
    %v2708 = vpack.c.b16 %v2590, %v2588
    %v2709 = vpack.c.b16 %v2591, %v2589
    %v2710 = vpack.c.b16 %v2594, %v2592
    %v2711 = vpack.c.b16 %v2595, %v2593
    %v2712 = vpack.c.b16 %v2598, %v2596
    %v2713 = vpack.c.b16 %v2599, %v2597
    %v2714 = vpack.c.b16 %v2602, %v2600
    %v2715 = vpack.c.b16 %v2603, %v2601
    %v2716 = vpack.c.b16 %v2606, %v2604
    %v2717 = vpack.c.b16 %v2607, %v2605
    %v2718 = vpack.c.b16 %v2610, %v2608
    %v2719 = vpack.c.b16 %v2611, %v2609
    %v2720 = vpack.c.b16 %v2614, %v2612
    %v2721 = vpack.c.b16 %v2615, %v2613
    %v2722 = vpack.c.b16 %v2618, %v2616
    %v2723 = vpack.c.b16 %v2619, %v2617
    %v2724 = vpack.c.b16 %v2622, %v2620
    %v2725 = vpack.c.b16 %v2623, %v2621
    %v2726 = vpack.c.b16 %v2626, %v2624
    %v2727 = vpack.c.b16 %v2627, %v2625
    %v2728 = vpack.c.b16 %v2630, %v2628
    %v2729 = vpack.c.b16 %v2631, %v2629
    %v2730 = vpack.c.b16 %v2634, %v2632
    %v2731 = vpack.c.b16 %v2635, %v2633
    %v2732 = vpack.c.b16 %v2638, %v2636
    %v2733 = vpack.c.b16 %v2639, %v2637
    %v2734 = vpack.c.b16 %v2642, %v2640
    %v2735 = vpack.c.b16 %v2643, %v2641
    %v2736 = vpack.c.b16 %v2646, %v2644
    %v2737 = vpack.c.b16 %v2647, %v2645
    %v2738 = vpack.c.b16 %v2650, %v2648
    %v2739 = vpack.c.b16 %v2651, %v2649
    %v2740 = vpack.c.b16 %v2654, %v2652
    %v2741 = vpack.c.b16 %v2655, %v2653
    %v2742 = vpack.c.b16 %v2658, %v2656
    %v2743 = vpack.c.b16 %v2659, %v2657
    %v2744 = vpack.c.b16 %v2662, %v2660
    %v2745 = vpack.c.b16 %v2663, %v2661
    %v2746 = vpack.c.b16 %v2666, %v2664
    %v2747 = vpack.c.b16 %v2667, %v2665
    %v2748 = vpack.c.b16 %v2670, %v2668
    %v2749 = vpack.c.b16 %v2671, %v2669
    %v2750 = vpack.c.b16 %v2674, %v2672
    %v2751 = vpack.c.b16 %v2675, %v2673
    %v2752 = vpack.c.b16 %v2678, %v2676
    %v2753 = vpack.c.b16 %v2679, %v2677
    %v2754 = vpack.c.b16 %v2682, %v2680
    %v2755 = vpack.c.b16 %v2683, %v2681
    %v2756 = vpack.c.b16 %v2686, %v2684
    %v2757 = vpack.c.b16 %v2687, %v2685
    %v2758 = vpack.c.b16 %v2690, %v2688
    %v2759 = vpack.c.b16 %v2691, %v2689
    %v2760 = vpack.c.b16 %v2694, %v2692
    %v2761 = vpack.c.b16 %v2695, %v2693
    %v2762 = vpack.c.b16 %v2698, %v2696
    %v2763 = vpack.c.b16 %v2699, %v2697
    %2828 = vmatpush.bf16.msra.mxu0 %v2714
    %2829 = vmatpush.bf16.msra.mxu0 %v2712
    %2830 = vmatpush.bf16.msra.mxu0 %v2710
    %2831 = vmatpush.bf16.msra.mxu0 %v2708
    %2832 = vmatpush.bf16.msra.mxu0 %v2706
    %2833 = vmatpush.bf16.msra.mxu0 %v2704
    %2834 = vmatpush.bf16.msra.mxu0 %v2702
    %2835 = vmatpush.bf16.msra.mxu0 %v2700
    %2836 = vmatmul.bf16.gmra.mxu0 %v2492
    %v2837 = vpop.f32.mrf.mxu0
    %v2838 = vadd.f32 0.0, %v2837
    %v2839 = vpop.f32.mrf.mxu0
    %v2840 = vadd.f32 0.0, %v2839
    %2841 = vmatmul.bf16.gmra.mxu0 %v2496
    %v2842 = vpop.f32.mrf.mxu0
    %v2843 = vadd.f32 0.0, %v2842
    %v2844 = vpop.f32.mrf.mxu0
    %v2845 = vadd.f32 0.0, %v2844
    %2846 = vdwg.mxu0
    %2847 = vmatpush.bf16.msra.mxu0 %v2730
    %2848 = vmatpush.bf16.msra.mxu0 %v2728
    %2849 = vmatpush.bf16.msra.mxu0 %v2726
    %2850 = vmatpush.bf16.msra.mxu0 %v2724
    %2851 = vmatpush.bf16.msra.mxu0 %v2722
    %2852 = vmatpush.bf16.msra.mxu0 %v2720
    %2853 = vmatpush.bf16.msra.mxu0 %v2718
    %2854 = vmatpush.bf16.msra.mxu0 %v2716
    %2855 = vmatmul.bf16.gmra.mxu0 %v2493
    %v2856 = vpop.f32.mrf.mxu0
    %v2857 = vadd.f32 %v2838, %v2856
    %v2858 = vpop.f32.mrf.mxu0
    %v2859 = vadd.f32 %v2840, %v2858
    %2860 = vmatmul.bf16.gmra.mxu0 %v2497
    %v2861 = vpop.f32.mrf.mxu0
    %v2862 = vadd.f32 %v2843, %v2861
    %v2863 = vpop.f32.mrf.mxu0
    %v2864 = vadd.f32 %v2845, %v2863
    %2865 = vdwg.mxu0
    %2866 = vmatpush.bf16.msra.mxu0 %v2746
    %2867 = vmatpush.bf16.msra.mxu0 %v2744
    %2868 = vmatpush.bf16.msra.mxu0 %v2742
    %2869 = vmatpush.bf16.msra.mxu0 %v2740
    %2870 = vmatpush.bf16.msra.mxu0 %v2738
    %2871 = vmatpush.bf16.msra.mxu0 %v2736
    %2872 = vmatpush.bf16.msra.mxu0 %v2734
    %2873 = vmatpush.bf16.msra.mxu0 %v2732
    %2874 = vmatmul.bf16.gmra.mxu0 %v2494
    %v2875 = vpop.f32.mrf.mxu0
    %v2876 = vadd.f32 %v2857, %v2875
    %v2877 = vpop.f32.mrf.mxu0
    %v2878 = vadd.f32 %v2859, %v2877
    %2879 = vmatmul.bf16.gmra.mxu0 %v2498
    %v2880 = vpop.f32.mrf.mxu0
    %v2881 = vadd.f32 %v2862, %v2880
    %v2882 = vpop.f32.mrf.mxu0
    %v2883 = vadd.f32 %v2864, %v2882
    %2884 = vdwg.mxu0
    %2885 = vmatpush.bf16.msra.mxu0 %v2762
    %2886 = vmatpush.bf16.msra.mxu0 %v2760
    %2887 = vmatpush.bf16.msra.mxu0 %v2758
    %2888 = vmatpush.bf16.msra.mxu0 %v2756
    %2889 = vmatpush.bf16.msra.mxu0 %v2754
    %2890 = vmatpush.bf16.msra.mxu0 %v2752
    %2891 = vmatpush.bf16.msra.mxu0 %v2750
    %2892 = vmatpush.bf16.msra.mxu0 %v2748
    %2893 = vmatmul.bf16.gmra.mxu0 %v2495
    %v2894 = vpop.f32.mrf.mxu0
    %v2895 = vadd.f32 %v2876, %v2894
    %v2896 = vpop.f32.mrf.mxu0
    %v2897 = vadd.f32 %v2878, %v2896
    %2898 = vmatmul.bf16.gmra.mxu0 %v2499
    %v2899 = vpop.f32.mrf.mxu0
    %v2900 = vadd.f32 %v2881, %v2899
    %v2901 = vpop.f32.mrf.mxu0
    %v2902 = vadd.f32 %v2883, %v2901
    %2903 = vdwg.mxu0
    %2904 = vmatpush.bf16.msra.mxu0 %v2715
    %2905 = vmatpush.bf16.msra.mxu0 %v2713
    %2906 = vmatpush.bf16.msra.mxu0 %v2711
    %2907 = vmatpush.bf16.msra.mxu0 %v2709
    %2908 = vmatpush.bf16.msra.mxu0 %v2707
    %2909 = vmatpush.bf16.msra.mxu0 %v2705
    %2910 = vmatpush.bf16.msra.mxu0 %v2703
    %2911 = vmatpush.bf16.msra.mxu0 %v2701
    %2912 = vmatmul.bf16.gmra.mxu0 %v2492
    %v2913 = vpop.f32.mrf.mxu0
    %v2914 = vadd.f32 0.0, %v2913
    %v2915 = vpop.f32.mrf.mxu0
    %v2916 = vadd.f32 0.0, %v2915
    %2917 = vmatmul.bf16.gmra.mxu0 %v2496
    %v2918 = vpop.f32.mrf.mxu0
    %v2919 = vadd.f32 0.0, %v2918
    %v2920 = vpop.f32.mrf.mxu0
    %v2921 = vadd.f32 0.0, %v2920
    %2922 = vdwg.mxu0
    %2923 = vmatpush.bf16.msra.mxu0 %v2731
    %2924 = vmatpush.bf16.msra.mxu0 %v2729
    %2925 = vmatpush.bf16.msra.mxu0 %v2727
    %2926 = vmatpush.bf16.msra.mxu0 %v2725
    %2927 = vmatpush.bf16.msra.mxu0 %v2723
    %2928 = vmatpush.bf16.msra.mxu0 %v2721
    %2929 = vmatpush.bf16.msra.mxu0 %v2719
    %2930 = vmatpush.bf16.msra.mxu0 %v2717
    %2931 = vmatmul.bf16.gmra.mxu0 %v2493
    %v2932 = vpop.f32.mrf.mxu0
    %v2933 = vadd.f32 %v2914, %v2932
    %v2934 = vpop.f32.mrf.mxu0
    %v2935 = vadd.f32 %v2916, %v2934
    %2936 = vmatmul.bf16.gmra.mxu0 %v2497
    %v2937 = vpop.f32.mrf.mxu0
    %v2938 = vadd.f32 %v2919, %v2937
    %v2939 = vpop.f32.mrf.mxu0
    %v2940 = vadd.f32 %v2921, %v2939
    %2941 = vdwg.mxu0
    %2942 = vmatpush.bf16.msra.mxu0 %v2747
    %2943 = vmatpush.bf16.msra.mxu0 %v2745
    %2944 = vmatpush.bf16.msra.mxu0 %v2743
    %2945 = vmatpush.bf16.msra.mxu0 %v2741
    %2946 = vmatpush.bf16.msra.mxu0 %v2739
    %2947 = vmatpush.bf16.msra.mxu0 %v2737
    %2948 = vmatpush.bf16.msra.mxu0 %v2735
    %2949 = vmatpush.bf16.msra.mxu0 %v2733
    %2950 = vmatmul.bf16.gmra.mxu0 %v2494
    %v2951 = vpop.f32.mrf.mxu0
    %v2952 = vadd.f32 %v2933, %v2951
    %v2953 = vpop.f32.mrf.mxu0
    %v2954 = vadd.f32 %v2935, %v2953
    %2955 = vmatmul.bf16.gmra.mxu0 %v2498
    %v2956 = vpop.f32.mrf.mxu0
    %v2957 = vadd.f32 %v2938, %v2956
    %v2958 = vpop.f32.mrf.mxu0
    %v2959 = vadd.f32 %v2940, %v2958
    %2960 = vdwg.mxu0
    %2961 = vmatpush.bf16.msra.mxu0 %v2763
    %2962 = vmatpush.bf16.msra.mxu0 %v2761
    %2963 = vmatpush.bf16.msra.mxu0 %v2759
    %2964 = vmatpush.bf16.msra.mxu0 %v2757
    %2965 = vmatpush.bf16.msra.mxu0 %v2755
    %2966 = vmatpush.bf16.msra.mxu0 %v2753
    %2967 = vmatpush.bf16.msra.mxu0 %v2751
    %2968 = vmatpush.bf16.msra.mxu0 %v2749
    %2969 = vmatmul.bf16.gmra.mxu0 %v2495
    %v2970 = vpop.f32.mrf.mxu0
    %v2971 = vadd.f32 %v2952, %v2970
    %v2972 = vpop.f32.mrf.mxu0
    %v2973 = vadd.f32 %v2954, %v2972
    %2974 = vmatmul.bf16.gmra.mxu0 %v2499
    %v2975 = vpop.f32.mrf.mxu0
    %v2976 = vadd.f32 %v2957, %v2975
    %v2977 = vpop.f32.mrf.mxu0
    %v2978 = vadd.f32 %v2959, %v2977
    %2979 = vdwg.mxu0
    %v2980 = vadd.f32 %v2310, %v2895
    %v2981 = vadd.f32 %v2386, %v2971
    %v2982 = vadd.f32 %v2312, %v2897
    %v2983 = vadd.f32 %v2388, %v2973
    %v2984 = vadd.f32 %v2315, %v2900
    %v2985 = vadd.f32 %v2391, %v2976
    %v2986 = vadd.f32 %v2317, %v2902
    %v2987 = vadd.f32 %v2393, %v2978
    %v2989 = vperm.slane %v1249, 0
    %v2990 = vperm.slane %v1249, 1
    %v2993 = vadd.f32 %v2980, %v2989
    %v2994 = vadd.f32 %v2981, %v2990
    %v2995 = vadd.f32 %v2982, %v2989
    %v2996 = vadd.f32 %v2983, %v2990
    %v2997 = vadd.f32 %v2984, %v2989
    %v2998 = vadd.f32 %v2985, %v2990
    %v2999 = vadd.f32 %v2986, %v2989
    %v3000 = vadd.f32 %v2987, %v2990
    %vm3001 = vcmp.ge.f32.partialorder %v2993, 0.0
    %vm3002 = vcmp.ge.f32.partialorder %v2994, 0.0
    %vm3003 = vcmp.ge.f32.partialorder %v2995, 0.0
    %vm3004 = vcmp.ge.f32.partialorder %v2996, 0.0
    %vm3005 = vcmp.ge.f32.partialorder %v2997, 0.0
    %vm3006 = vcmp.ge.f32.partialorder %v2998, 0.0
    %vm3007 = vcmp.ge.f32.partialorder %v2999, 0.0
    %vm3008 = vcmp.ge.f32.partialorder %v3000, 0.0
    %v3009 = vmul.f32 %v2993, 0.2
    %v3010 = vmul.f32 %v2994, 0.2
    %v3011 = vmul.f32 %v2995, 0.2
    %v3012 = vmul.f32 %v2996, 0.2
    %v3013 = vmul.f32 %v2997, 0.2
    %v3014 = vmul.f32 %v2998, 0.2
    %v3015 = vmul.f32 %v2999, 0.2
    %v3016 = vmul.f32 %v3000, 0.2
    %v3017 = vsel %vm3001, %v2993, %v3009
    %v3018 = vsel %vm3002, %v2994, %v3010
    %v3019 = vsel %vm3003, %v2995, %v3011
    %v3020 = vsel %vm3004, %v2996, %v3012
    %v3021 = vsel %vm3005, %v2997, %v3013
    %v3022 = vsel %vm3006, %v2998, %v3014
    %v3023 = vsel %vm3007, %v2999, %v3015
    %v3024 = vsel %vm3008, %v3000, %v3016
    %v3025 = vpack.c.bf16 %v3018, %v3017
    %v3026 = vpack.c.bf16 %v3020, %v3019
    %v3027 = vpack.c.bf16 %v3022, %v3021
    %v3028 = vpack.c.bf16 %v3024, %v3023
    %3029 = vst [vmem:[#allocation3 + $0x10] sm:$0xff] %v3025
    %3030 = vst [vmem:[#allocation3 + $0x18] sm:$0xff] %v3026
    %3031 = vst [vmem:[#allocation3 + $0x20] sm:$0xff] %v3027
    %3032 = vst [vmem:[#allocation3 + $0x28] sm:$0xff] %v3028
    %v3033 = vld [vmem:[%s6] sm:$0x1]
    %v3034 = vld [vmem:[#allocation3] sm:$0xff]
    %v3035 = vld [vmem:[#allocation3 + $0x8] sm:$0xff]
    %v3036 = vld [vmem:[#allocation3 + $0x10] sm:$0xff]
    %v3037 = vld [vmem:[#allocation3 + $0x18] sm:$0xff]
    %v3038 = vld [vmem:[#allocation5] sm:$0xf]
    %v3039 = vld [vmem:[#allocation5 + $0x4] sm:$0xf]
    %v3040 = vld [vmem:[#allocation5 + $0x8] sm:$0xf]
    %v3041 = vld [vmem:[#allocation5 + $0xc] sm:$0xf]
    %v3042 = vld [vmem:[#allocation5 + $0x10] sm:$0xf]
    %v3043 = vld [vmem:[#allocation5 + $0x14] sm:$0xf]
    %v3044 = vld [vmem:[#allocation5 + $0x18] sm:$0xf]
    %v3045 = vld [vmem:[#allocation5 + $0x1c] sm:$0xf]
    %v3046 = vld [vmem:[#allocation5 + $0x20] sm:$0xf]
    %v3047 = vld [vmem:[#allocation5 + $0x24] sm:$0xf]
    %v3048 = vld [vmem:[#allocation5 + $0x28] sm:$0xf]
    %v3049 = vld [vmem:[#allocation5 + $0x2c] sm:$0xf]
    %v3050 = vld [vmem:[#allocation5 + $0x30] sm:$0xf]
    %v3051 = vld [vmem:[#allocation5 + $0x34] sm:$0xf]
    %v3052 = vld [vmem:[#allocation5 + $0x38] sm:$0xf]
    %v3053 = vld [vmem:[#allocation5 + $0x3c] sm:$0xf]
    %v3054 = vld [vmem:[#allocation5 + $0x40] sm:$0xf]
    %v3055 = vld [vmem:[#allocation5 + $0x44] sm:$0xf]
    %v3056 = vld [vmem:[#allocation5 + $0x48] sm:$0xf]
    %v3057 = vld [vmem:[#allocation5 + $0x4c] sm:$0xf]
    %v3058 = vld [vmem:[#allocation5 + $0x50] sm:$0xf]
    %v3059 = vld [vmem:[#allocation5 + $0x54] sm:$0xf]
    %v3060 = vld [vmem:[#allocation5 + $0x58] sm:$0xf]
    %v3061 = vld [vmem:[#allocation5 + $0x5c] sm:$0xf]
    %v3062 = vld [vmem:[#allocation5 + $0x60] sm:$0xf]
    %v3063 = vld [vmem:[#allocation5 + $0x64] sm:$0xf]
    %v3064 = vld [vmem:[#allocation5 + $0x68] sm:$0xf]
    %v3065 = vld [vmem:[#allocation5 + $0x6c] sm:$0xf]
    %v3066 = vld [vmem:[#allocation5 + $0x70] sm:$0xf]
    %v3067 = vld [vmem:[#allocation5 + $0x74] sm:$0xf]
    %v3068 = vld [vmem:[#allocation5 + $0x78] sm:$0xf]
    %v3069 = vld [vmem:[#allocation5 + $0x7c] sm:$0xf]
    %v3070 = vld [vmem:[#allocation3 + $0x20] sm:$0xff]
    %s3071 = scalar_lea.vmem [#allocation5], 128
    %v3072 = vld [vmem:[%s3071] sm:$0xf]
    %v3073 = vld [vmem:[%s3071 + $0x4] sm:$0xf]
    %v3074 = vld [vmem:[%s3071 + $0x8] sm:$0xf]
    %v3075 = vld [vmem:[%s3071 + $0xc] sm:$0xf]
    %v3076 = vld [vmem:[%s3071 + $0x10] sm:$0xf]
    %v3077 = vld [vmem:[%s3071 + $0x14] sm:$0xf]
    %v3078 = vld [vmem:[%s3071 + $0x18] sm:$0xf]
    %v3079 = vld [vmem:[%s3071 + $0x1c] sm:$0xf]
    %v3080 = vld [vmem:[%s3071 + $0x20] sm:$0xf]
    %v3081 = vld [vmem:[%s3071 + $0x24] sm:$0xf]
    %v3082 = vld [vmem:[%s3071 + $0x28] sm:$0xf]
    %v3083 = vld [vmem:[%s3071 + $0x2c] sm:$0xf]
    %v3084 = vld [vmem:[%s3071 + $0x30] sm:$0xf]
    %v3085 = vld [vmem:[%s3071 + $0x34] sm:$0xf]
    %v3086 = vld [vmem:[%s3071 + $0x38] sm:$0xf]
    %v3087 = vld [vmem:[%s3071 + $0x3c] sm:$0xf]
    %v3088 = vld [vmem:[%s3071 + $0x40] sm:$0xf]
    %v3089 = vld [vmem:[%s3071 + $0x44] sm:$0xf]
    %v3090 = vld [vmem:[%s3071 + $0x48] sm:$0xf]
    %v3091 = vld [vmem:[%s3071 + $0x4c] sm:$0xf]
    %v3092 = vld [vmem:[%s3071 + $0x50] sm:$0xf]
    %v3093 = vld [vmem:[%s3071 + $0x54] sm:$0xf]
    %v3094 = vld [vmem:[%s3071 + $0x58] sm:$0xf]
    %v3095 = vld [vmem:[%s3071 + $0x5c] sm:$0xf]
    %v3096 = vld [vmem:[%s3071 + $0x60] sm:$0xf]
    %v3097 = vld [vmem:[%s3071 + $0x64] sm:$0xf]
    %v3098 = vld [vmem:[%s3071 + $0x68] sm:$0xf]
    %v3099 = vld [vmem:[%s3071 + $0x6c] sm:$0xf]
    %v3100 = vld [vmem:[%s3071 + $0x70] sm:$0xf]
    %v3101 = vld [vmem:[%s3071 + $0x74] sm:$0xf]
    %v3102 = vld [vmem:[%s3071 + $0x78] sm:$0xf]
    %v3103 = vld [vmem:[%s3071 + $0x7c] sm:$0xf]
    %v3108 = vunpack.c.l.b16 %v3035
    %v3109 = vunpack.c.h.b16 %v3035
    %v3110 = vunpack.c.l.b16 %v3036
    %v3111 = vunpack.c.h.b16 %v3036
    %v3112 = vunpack.c.l.b16 %v3037
    %v3113 = vunpack.c.h.b16 %v3037
    %v3114 = vunpack.c.l.b16 %v3070
    %v3115 = vunpack.c.h.b16 %v3070
    %v3116 = vpack.c.b16 %v3110, %v3108
    %v3117 = vpack.c.b16 %v3111, %v3109
    %v3118 = vpack.c.b16 %v3114, %v3112
    %v3119 = vpack.c.b16 %v3115, %v3113
    %v3156 = vunpack.c.l.b16 %v3072
    %v3157 = vunpack.c.l.b16 %v3073
    %v3158 = vunpack.c.l.b16 %v3074
    %v3159 = vunpack.c.l.b16 %v3075
    %v3160 = vunpack.c.l.b16 %v3076
    %v3161 = vunpack.c.l.b16 %v3077
    %v3162 = vunpack.c.l.b16 %v3078
    %v3163 = vunpack.c.l.b16 %v3079
    %v3164 = vunpack.c.l.b16 %v3080
    %v3165 = vunpack.c.l.b16 %v3081
    %v3166 = vunpack.c.l.b16 %v3082
    %v3167 = vunpack.c.l.b16 %v3083
    %v3168 = vunpack.c.l.b16 %v3084
    %v3169 = vunpack.c.l.b16 %v3085
    %v3170 = vunpack.c.l.b16 %v3086
    %v3171 = vunpack.c.l.b16 %v3087
    %v3172 = vunpack.c.l.b16 %v3088
    %v3173 = vunpack.c.l.b16 %v3089
    %v3174 = vunpack.c.l.b16 %v3090
    %v3175 = vunpack.c.l.b16 %v3091
    %v3176 = vunpack.c.l.b16 %v3092
    %v3177 = vunpack.c.l.b16 %v3093
    %v3178 = vunpack.c.l.b16 %v3094
    %v3179 = vunpack.c.l.b16 %v3095
    %v3180 = vunpack.c.l.b16 %v3096
    %v3181 = vunpack.c.l.b16 %v3097
    %v3182 = vunpack.c.l.b16 %v3098
    %v3183 = vunpack.c.l.b16 %v3099
    %v3184 = vunpack.c.l.b16 %v3100
    %v3185 = vunpack.c.l.b16 %v3101
    %v3186 = vunpack.c.l.b16 %v3102
    %v3187 = vunpack.c.l.b16 %v3103
    %v3188 = vpack.c.b16 %v3157, %v3156
    %v3189 = vpack.c.b16 %v3159, %v3158
    %v3190 = vpack.c.b16 %v3161, %v3160
    %v3191 = vpack.c.b16 %v3163, %v3162
    %v3192 = vpack.c.b16 %v3165, %v3164
    %v3193 = vpack.c.b16 %v3167, %v3166
    %v3194 = vpack.c.b16 %v3169, %v3168
    %v3195 = vpack.c.b16 %v3171, %v3170
    %v3196 = vpack.c.b16 %v3173, %v3172
    %v3197 = vpack.c.b16 %v3175, %v3174
    %v3198 = vpack.c.b16 %v3177, %v3176
    %v3199 = vpack.c.b16 %v3179, %v3178
    %v3200 = vpack.c.b16 %v3181, %v3180
    %v3201 = vpack.c.b16 %v3183, %v3182
    %v3202 = vpack.c.b16 %v3185, %v3184
    %v3203 = vpack.c.b16 %v3187, %v3186
    %3220 = vmatpush.bf16.msra.mxu0 %v3195
    %3221 = vmatpush.bf16.msra.mxu0 %v3194
    %3222 = vmatpush.bf16.msra.mxu0 %v3193
    %3223 = vmatpush.bf16.msra.mxu0 %v3192
    %3224 = vmatpush.bf16.msra.mxu0 %v3191
    %3225 = vmatpush.bf16.msra.mxu0 %v3190
    %3226 = vmatpush.bf16.msra.mxu0 %v3189
    %3227 = vmatpush.bf16.msra.mxu0 %v3188
    %3228 = vmatmul.bf16.gmra.mxu0 %v3116
    %v3229 = vpop.f32.mrf.mxu0
    %v3230 = vadd.f32 0.0, %v3229
    %v3231 = vpop.f32.mrf.mxu0
    %v3232 = vadd.f32 0.0, %v3231
    %3233 = vmatmul.bf16.gmra.mxu0 %v3118
    %v3234 = vpop.f32.mrf.mxu0
    %v3235 = vadd.f32 0.0, %v3234
    %v3236 = vpop.f32.mrf.mxu0
    %v3237 = vadd.f32 0.0, %v3236
    %3238 = vdwg.mxu0
    %3239 = vmatpush.bf16.msra.mxu0 %v3203
    %3240 = vmatpush.bf16.msra.mxu0 %v3202
    %3241 = vmatpush.bf16.msra.mxu0 %v3201
    %3242 = vmatpush.bf16.msra.mxu0 %v3200
    %3243 = vmatpush.bf16.msra.mxu0 %v3199
    %3244 = vmatpush.bf16.msra.mxu0 %v3198
    %3245 = vmatpush.bf16.msra.mxu0 %v3197
    %3246 = vmatpush.bf16.msra.mxu0 %v3196
    %3247 = vmatmul.bf16.gmra.mxu0 %v3117
    %v3248 = vpop.f32.mrf.mxu0
    %v3249 = vadd.f32 %v3230, %v3248
    %v3250 = vpop.f32.mrf.mxu0
    %v3251 = vadd.f32 %v3232, %v3250
    %3252 = vmatmul.bf16.gmra.mxu0 %v3119
    %v3253 = vpop.f32.mrf.mxu0
    %v3254 = vadd.f32 %v3235, %v3253
    %v3255 = vpop.f32.mrf.mxu0
    %v3256 = vadd.f32 %v3237, %v3255
    %3257 = vdwg.mxu0
    %v3259 = vunpack.c.l.b16 %v3034
    %v3260 = vunpack.c.h.b16 %v3034
    %v3261 = vpack.c.b16 %v3108, %v3259
    %v3262 = vpack.c.b16 %v3109, %v3260
    %v3263 = vpack.c.b16 %v3112, %v3110
    %v3264 = vpack.c.b16 %v3113, %v3111
    %v3301 = vunpack.c.l.b16 %v3038
    %v3302 = vunpack.c.l.b16 %v3039
    %v3303 = vunpack.c.l.b16 %v3040
    %v3304 = vunpack.c.l.b16 %v3041
    %v3305 = vunpack.c.l.b16 %v3042
    %v3306 = vunpack.c.l.b16 %v3043
    %v3307 = vunpack.c.l.b16 %v3044
    %v3308 = vunpack.c.l.b16 %v3045
    %v3309 = vunpack.c.l.b16 %v3046
    %v3310 = vunpack.c.l.b16 %v3047
    %v3311 = vunpack.c.l.b16 %v3048
    %v3312 = vunpack.c.l.b16 %v3049
    %v3313 = vunpack.c.l.b16 %v3050
    %v3314 = vunpack.c.l.b16 %v3051
    %v3315 = vunpack.c.l.b16 %v3052
    %v3316 = vunpack.c.l.b16 %v3053
    %v3317 = vunpack.c.l.b16 %v3054
    %v3318 = vunpack.c.l.b16 %v3055
    %v3319 = vunpack.c.l.b16 %v3056
    %v3320 = vunpack.c.l.b16 %v3057
    %v3321 = vunpack.c.l.b16 %v3058
    %v3322 = vunpack.c.l.b16 %v3059
    %v3323 = vunpack.c.l.b16 %v3060
    %v3324 = vunpack.c.l.b16 %v3061
    %v3325 = vunpack.c.l.b16 %v3062
    %v3326 = vunpack.c.l.b16 %v3063
    %v3327 = vunpack.c.l.b16 %v3064
    %v3328 = vunpack.c.l.b16 %v3065
    %v3329 = vunpack.c.l.b16 %v3066
    %v3330 = vunpack.c.l.b16 %v3067
    %v3331 = vunpack.c.l.b16 %v3068
    %v3332 = vunpack.c.l.b16 %v3069
    %v3333 = vpack.c.b16 %v3302, %v3301
    %v3334 = vpack.c.b16 %v3304, %v3303
    %v3335 = vpack.c.b16 %v3306, %v3305
    %v3336 = vpack.c.b16 %v3308, %v3307
    %v3337 = vpack.c.b16 %v3310, %v3309
    %v3338 = vpack.c.b16 %v3312, %v3311
    %v3339 = vpack.c.b16 %v3314, %v3313
    %v3340 = vpack.c.b16 %v3316, %v3315
    %v3341 = vpack.c.b16 %v3318, %v3317
    %v3342 = vpack.c.b16 %v3320, %v3319
    %v3343 = vpack.c.b16 %v3322, %v3321
    %v3344 = vpack.c.b16 %v3324, %v3323
    %v3345 = vpack.c.b16 %v3326, %v3325
    %v3346 = vpack.c.b16 %v3328, %v3327
    %v3347 = vpack.c.b16 %v3330, %v3329
    %v3348 = vpack.c.b16 %v3332, %v3331
    %3365 = vmatpush.bf16.msra.mxu0 %v3340
    %3366 = vmatpush.bf16.msra.mxu0 %v3339
    %3367 = vmatpush.bf16.msra.mxu0 %v3338
    %3368 = vmatpush.bf16.msra.mxu0 %v3337
    %3369 = vmatpush.bf16.msra.mxu0 %v3336
    %3370 = vmatpush.bf16.msra.mxu0 %v3335
    %3371 = vmatpush.bf16.msra.mxu0 %v3334
    %3372 = vmatpush.bf16.msra.mxu0 %v3333
    %3373 = vmatmul.bf16.gmra.mxu0 %v3261
    %v3374 = vpop.f32.mrf.mxu0
    %v3375 = vadd.f32 %v3249, %v3374
    %v3376 = vpop.f32.mrf.mxu0
    %v3377 = vadd.f32 %v3251, %v3376
    %3378 = vmatmul.bf16.gmra.mxu0 %v3263
    %v3379 = vpop.f32.mrf.mxu0
    %v3380 = vadd.f32 %v3254, %v3379
    %v3381 = vpop.f32.mrf.mxu0
    %v3382 = vadd.f32 %v3256, %v3381
    %3383 = vdwg.mxu0
    %3384 = vmatpush.bf16.msra.mxu0 %v3348
    %3385 = vmatpush.bf16.msra.mxu0 %v3347
    %3386 = vmatpush.bf16.msra.mxu0 %v3346
    %3387 = vmatpush.bf16.msra.mxu0 %v3345
    %3388 = vmatpush.bf16.msra.mxu0 %v3344
    %3389 = vmatpush.bf16.msra.mxu0 %v3343
    %3390 = vmatpush.bf16.msra.mxu0 %v3342
    %3391 = vmatpush.bf16.msra.mxu0 %v3341
    %3392 = vmatmul.bf16.gmra.mxu0 %v3262
    %v3393 = vpop.f32.mrf.mxu0
    %v3394 = vadd.f32 %v3375, %v3393
    %v3395 = vpop.f32.mrf.mxu0
    %v3396 = vadd.f32 %v3377, %v3395
    %3397 = vmatmul.bf16.gmra.mxu0 %v3264
    %v3398 = vpop.f32.mrf.mxu0
    %v3399 = vadd.f32 %v3380, %v3398
    %v3400 = vpop.f32.mrf.mxu0
    %v3401 = vadd.f32 %v3382, %v3400
    %3402 = vdwg.mxu0
    %v3403 = vld [vmem:[#allocation3 + $0x10] sm:$0xff]
    %v3404 = vld [vmem:[#allocation3 + $0x18] sm:$0xff]
    %v3405 = vld [vmem:[#allocation3 + $0x20] sm:$0xff]
    %v3406 = vld [vmem:[#allocation3 + $0x28] sm:$0xff]
    %s3407 = scalar_lea.vmem [#allocation5], 256
    %v3408 = vld [vmem:[%s3407] sm:$0xf]
    %v3409 = vld [vmem:[%s3407 + $0x4] sm:$0xf]
    %v3410 = vld [vmem:[%s3407 + $0x8] sm:$0xf]
    %v3411 = vld [vmem:[%s3407 + $0xc] sm:$0xf]
    %v3412 = vld [vmem:[%s3407 + $0x10] sm:$0xf]
    %v3413 = vld [vmem:[%s3407 + $0x14] sm:$0xf]
    %v3414 = vld [vmem:[%s3407 + $0x18] sm:$0xf]
    %v3415 = vld [vmem:[%s3407 + $0x1c] sm:$0xf]
    %v3416 = vld [vmem:[%s3407 + $0x20] sm:$0xf]
    %v3417 = vld [vmem:[%s3407 + $0x24] sm:$0xf]
    %v3418 = vld [vmem:[%s3407 + $0x28] sm:$0xf]
    %v3419 = vld [vmem:[%s3407 + $0x2c] sm:$0xf]
    %v3420 = vld [vmem:[%s3407 + $0x30] sm:$0xf]
    %v3421 = vld [vmem:[%s3407 + $0x34] sm:$0xf]
    %v3422 = vld [vmem:[%s3407 + $0x38] sm:$0xf]
    %v3423 = vld [vmem:[%s3407 + $0x3c] sm:$0xf]
    %v3424 = vld [vmem:[%s3407 + $0x40] sm:$0xf]
    %v3425 = vld [vmem:[%s3407 + $0x44] sm:$0xf]
    %v3426 = vld [vmem:[%s3407 + $0x48] sm:$0xf]
    %v3427 = vld [vmem:[%s3407 + $0x4c] sm:$0xf]
    %v3428 = vld [vmem:[%s3407 + $0x50] sm:$0xf]
    %v3429 = vld [vmem:[%s3407 + $0x54] sm:$0xf]
    %v3430 = vld [vmem:[%s3407 + $0x58] sm:$0xf]
    %v3431 = vld [vmem:[%s3407 + $0x5c] sm:$0xf]
    %v3432 = vld [vmem:[%s3407 + $0x60] sm:$0xf]
    %v3433 = vld [vmem:[%s3407 + $0x64] sm:$0xf]
    %v3434 = vld [vmem:[%s3407 + $0x68] sm:$0xf]
    %v3435 = vld [vmem:[%s3407 + $0x6c] sm:$0xf]
    %v3436 = vld [vmem:[%s3407 + $0x70] sm:$0xf]
    %v3437 = vld [vmem:[%s3407 + $0x74] sm:$0xf]
    %v3438 = vld [vmem:[%s3407 + $0x78] sm:$0xf]
    %v3439 = vld [vmem:[%s3407 + $0x7c] sm:$0xf]
    %v3444 = vunpack.c.l.b16 %v3403
    %v3445 = vunpack.c.h.b16 %v3403
    %v3446 = vunpack.c.l.b16 %v3404
    %v3447 = vunpack.c.h.b16 %v3404
    %v3448 = vunpack.c.l.b16 %v3405
    %v3449 = vunpack.c.h.b16 %v3405
    %v3450 = vunpack.c.l.b16 %v3406
    %v3451 = vunpack.c.h.b16 %v3406
    %v3452 = vpack.c.b16 %v3446, %v3444
    %v3453 = vpack.c.b16 %v3447, %v3445
    %v3454 = vpack.c.b16 %v3450, %v3448
    %v3455 = vpack.c.b16 %v3451, %v3449
    %v3492 = vunpack.c.l.b16 %v3408
    %v3493 = vunpack.c.l.b16 %v3409
    %v3494 = vunpack.c.l.b16 %v3410
    %v3495 = vunpack.c.l.b16 %v3411
    %v3496 = vunpack.c.l.b16 %v3412
    %v3497 = vunpack.c.l.b16 %v3413
    %v3498 = vunpack.c.l.b16 %v3414
    %v3499 = vunpack.c.l.b16 %v3415
    %v3500 = vunpack.c.l.b16 %v3416
    %v3501 = vunpack.c.l.b16 %v3417
    %v3502 = vunpack.c.l.b16 %v3418
    %v3503 = vunpack.c.l.b16 %v3419
    %v3504 = vunpack.c.l.b16 %v3420
    %v3505 = vunpack.c.l.b16 %v3421
    %v3506 = vunpack.c.l.b16 %v3422
    %v3507 = vunpack.c.l.b16 %v3423
    %v3508 = vunpack.c.l.b16 %v3424
    %v3509 = vunpack.c.l.b16 %v3425
    %v3510 = vunpack.c.l.b16 %v3426
    %v3511 = vunpack.c.l.b16 %v3427
    %v3512 = vunpack.c.l.b16 %v3428
    %v3513 = vunpack.c.l.b16 %v3429
    %v3514 = vunpack.c.l.b16 %v3430
    %v3515 = vunpack.c.l.b16 %v3431
    %v3516 = vunpack.c.l.b16 %v3432
    %v3517 = vunpack.c.l.b16 %v3433
    %v3518 = vunpack.c.l.b16 %v3434
    %v3519 = vunpack.c.l.b16 %v3435
    %v3520 = vunpack.c.l.b16 %v3436
    %v3521 = vunpack.c.l.b16 %v3437
    %v3522 = vunpack.c.l.b16 %v3438
    %v3523 = vunpack.c.l.b16 %v3439
    %v3524 = vpack.c.b16 %v3493, %v3492
    %v3525 = vpack.c.b16 %v3495, %v3494
    %v3526 = vpack.c.b16 %v3497, %v3496
    %v3527 = vpack.c.b16 %v3499, %v3498
    %v3528 = vpack.c.b16 %v3501, %v3500
    %v3529 = vpack.c.b16 %v3503, %v3502
    %v3530 = vpack.c.b16 %v3505, %v3504
    %v3531 = vpack.c.b16 %v3507, %v3506
    %v3532 = vpack.c.b16 %v3509, %v3508
    %v3533 = vpack.c.b16 %v3511, %v3510
    %v3534 = vpack.c.b16 %v3513, %v3512
    %v3535 = vpack.c.b16 %v3515, %v3514
    %v3536 = vpack.c.b16 %v3517, %v3516
    %v3537 = vpack.c.b16 %v3519, %v3518
    %v3538 = vpack.c.b16 %v3521, %v3520
    %v3539 = vpack.c.b16 %v3523, %v3522
    %3556 = vmatpush.bf16.msra.mxu0 %v3531
    %3557 = vmatpush.bf16.msra.mxu0 %v3530
    %3558 = vmatpush.bf16.msra.mxu0 %v3529
    %3559 = vmatpush.bf16.msra.mxu0 %v3528
    %3560 = vmatpush.bf16.msra.mxu0 %v3527
    %3561 = vmatpush.bf16.msra.mxu0 %v3526
    %3562 = vmatpush.bf16.msra.mxu0 %v3525
    %3563 = vmatpush.bf16.msra.mxu0 %v3524
    %3564 = vmatmul.bf16.gmra.mxu0 %v3452
    %v3565 = vpop.f32.mrf.mxu0
    %v3566 = vadd.f32 0.0, %v3565
    %v3567 = vpop.f32.mrf.mxu0
    %v3568 = vadd.f32 0.0, %v3567
    %3569 = vmatmul.bf16.gmra.mxu0 %v3454
    %v3570 = vpop.f32.mrf.mxu0
    %v3571 = vadd.f32 0.0, %v3570
    %v3572 = vpop.f32.mrf.mxu0
    %v3573 = vadd.f32 0.0, %v3572
    %3574 = vdwg.mxu0
    %3575 = vmatpush.bf16.msra.mxu0 %v3539
    %3576 = vmatpush.bf16.msra.mxu0 %v3538
    %3577 = vmatpush.bf16.msra.mxu0 %v3537
    %3578 = vmatpush.bf16.msra.mxu0 %v3536
    %3579 = vmatpush.bf16.msra.mxu0 %v3535
    %3580 = vmatpush.bf16.msra.mxu0 %v3534
    %3581 = vmatpush.bf16.msra.mxu0 %v3533
    %3582 = vmatpush.bf16.msra.mxu0 %v3532
    %3583 = vmatmul.bf16.gmra.mxu0 %v3453
    %v3584 = vpop.f32.mrf.mxu0
    %v3585 = vadd.f32 %v3566, %v3584
    %v3586 = vpop.f32.mrf.mxu0
    %v3587 = vadd.f32 %v3568, %v3586
    %3588 = vmatmul.bf16.gmra.mxu0 %v3455
    %v3589 = vpop.f32.mrf.mxu0
    %v3590 = vadd.f32 %v3571, %v3589
    %v3591 = vpop.f32.mrf.mxu0
    %v3592 = vadd.f32 %v3573, %v3591
    %3593 = vdwg.mxu0
    %v3594 = vadd.f32 %v3394, %v3585
    %v3595 = vadd.f32 %v3396, %v3587
    %v3596 = vadd.f32 %v3399, %v3590
    %v3597 = vadd.f32 %v3401, %v3592
    %v3598 = vld [vmem:[#allocation3 + $0x18] sm:$0xff]
    %v3599 = vld [vmem:[#allocation3 + $0x20] sm:$0xff]
    %v3600 = vld [vmem:[#allocation3 + $0x28] sm:$0xff]
    %v3601 = vld [vmem:[#allocation3 + $0x30] sm:$0xff]
    %s3602 = scalar_lea.vmem [#allocation5], 384
    %v3603 = vld [vmem:[%s3602] sm:$0xf]
    %v3604 = vld [vmem:[%s3602 + $0x4] sm:$0xf]
    %v3605 = vld [vmem:[%s3602 + $0x8] sm:$0xf]
    %v3606 = vld [vmem:[%s3602 + $0xc] sm:$0xf]
    %v3607 = vld [vmem:[%s3602 + $0x10] sm:$0xf]
    %v3608 = vld [vmem:[%s3602 + $0x14] sm:$0xf]
    %v3609 = vld [vmem:[%s3602 + $0x18] sm:$0xf]
    %v3610 = vld [vmem:[%s3602 + $0x1c] sm:$0xf]
    %v3611 = vld [vmem:[%s3602 + $0x20] sm:$0xf]
    %v3612 = vld [vmem:[%s3602 + $0x24] sm:$0xf]
    %v3613 = vld [vmem:[%s3602 + $0x28] sm:$0xf]
    %v3614 = vld [vmem:[%s3602 + $0x2c] sm:$0xf]
    %v3615 = vld [vmem:[%s3602 + $0x30] sm:$0xf]
    %v3616 = vld [vmem:[%s3602 + $0x34] sm:$0xf]
    %v3617 = vld [vmem:[%s3602 + $0x38] sm:$0xf]
    %v3618 = vld [vmem:[%s3602 + $0x3c] sm:$0xf]
    %v3619 = vld [vmem:[%s3602 + $0x40] sm:$0xf]
    %v3620 = vld [vmem:[%s3602 + $0x44] sm:$0xf]
    %v3621 = vld [vmem:[%s3602 + $0x48] sm:$0xf]
    %v3622 = vld [vmem:[%s3602 + $0x4c] sm:$0xf]
    %v3623 = vld [vmem:[%s3602 + $0x50] sm:$0xf]
    %v3624 = vld [vmem:[%s3602 + $0x54] sm:$0xf]
    %v3625 = vld [vmem:[%s3602 + $0x58] sm:$0xf]
    %v3626 = vld [vmem:[%s3602 + $0x5c] sm:$0xf]
    %v3627 = vld [vmem:[%s3602 + $0x60] sm:$0xf]
    %v3628 = vld [vmem:[%s3602 + $0x64] sm:$0xf]
    %v3629 = vld [vmem:[%s3602 + $0x68] sm:$0xf]
    %v3630 = vld [vmem:[%s3602 + $0x6c] sm:$0xf]
    %v3631 = vld [vmem:[%s3602 + $0x70] sm:$0xf]
    %v3632 = vld [vmem:[%s3602 + $0x74] sm:$0xf]
    %v3633 = vld [vmem:[%s3602 + $0x78] sm:$0xf]
    %v3634 = vld [vmem:[%s3602 + $0x7c] sm:$0xf]
    %v3639 = vunpack.c.l.b16 %v3598
    %v3640 = vunpack.c.h.b16 %v3598
    %v3641 = vunpack.c.l.b16 %v3599
    %v3642 = vunpack.c.h.b16 %v3599
    %v3643 = vunpack.c.l.b16 %v3600
    %v3644 = vunpack.c.h.b16 %v3600
    %v3645 = vunpack.c.l.b16 %v3601
    %v3646 = vunpack.c.h.b16 %v3601
    %v3647 = vpack.c.b16 %v3641, %v3639
    %v3648 = vpack.c.b16 %v3642, %v3640
    %v3649 = vpack.c.b16 %v3645, %v3643
    %v3650 = vpack.c.b16 %v3646, %v3644
    %v3687 = vunpack.c.l.b16 %v3603
    %v3688 = vunpack.c.l.b16 %v3604
    %v3689 = vunpack.c.l.b16 %v3605
    %v3690 = vunpack.c.l.b16 %v3606
    %v3691 = vunpack.c.l.b16 %v3607
    %v3692 = vunpack.c.l.b16 %v3608
    %v3693 = vunpack.c.l.b16 %v3609
    %v3694 = vunpack.c.l.b16 %v3610
    %v3695 = vunpack.c.l.b16 %v3611
    %v3696 = vunpack.c.l.b16 %v3612
    %v3697 = vunpack.c.l.b16 %v3613
    %v3698 = vunpack.c.l.b16 %v3614
    %v3699 = vunpack.c.l.b16 %v3615
    %v3700 = vunpack.c.l.b16 %v3616
    %v3701 = vunpack.c.l.b16 %v3617
    %v3702 = vunpack.c.l.b16 %v3618
    %v3703 = vunpack.c.l.b16 %v3619
    %v3704 = vunpack.c.l.b16 %v3620
    %v3705 = vunpack.c.l.b16 %v3621
    %v3706 = vunpack.c.l.b16 %v3622
    %v3707 = vunpack.c.l.b16 %v3623
    %v3708 = vunpack.c.l.b16 %v3624
    %v3709 = vunpack.c.l.b16 %v3625
    %v3710 = vunpack.c.l.b16 %v3626
    %v3711 = vunpack.c.l.b16 %v3627
    %v3712 = vunpack.c.l.b16 %v3628
    %v3713 = vunpack.c.l.b16 %v3629
    %v3714 = vunpack.c.l.b16 %v3630
    %v3715 = vunpack.c.l.b16 %v3631
    %v3716 = vunpack.c.l.b16 %v3632
    %v3717 = vunpack.c.l.b16 %v3633
    %v3718 = vunpack.c.l.b16 %v3634
    %v3719 = vpack.c.b16 %v3688, %v3687
    %v3720 = vpack.c.b16 %v3690, %v3689
    %v3721 = vpack.c.b16 %v3692, %v3691
    %v3722 = vpack.c.b16 %v3694, %v3693
    %v3723 = vpack.c.b16 %v3696, %v3695
    %v3724 = vpack.c.b16 %v3698, %v3697
    %v3725 = vpack.c.b16 %v3700, %v3699
    %v3726 = vpack.c.b16 %v3702, %v3701
    %v3727 = vpack.c.b16 %v3704, %v3703
    %v3728 = vpack.c.b16 %v3706, %v3705
    %v3729 = vpack.c.b16 %v3708, %v3707
    %v3730 = vpack.c.b16 %v3710, %v3709
    %v3731 = vpack.c.b16 %v3712, %v3711
    %v3732 = vpack.c.b16 %v3714, %v3713
    %v3733 = vpack.c.b16 %v3716, %v3715
    %v3734 = vpack.c.b16 %v3718, %v3717
    %3751 = vmatpush.bf16.msra.mxu0 %v3726
    %3752 = vmatpush.bf16.msra.mxu0 %v3725
    %3753 = vmatpush.bf16.msra.mxu0 %v3724
    %3754 = vmatpush.bf16.msra.mxu0 %v3723
    %3755 = vmatpush.bf16.msra.mxu0 %v3722
    %3756 = vmatpush.bf16.msra.mxu0 %v3721
    %3757 = vmatpush.bf16.msra.mxu0 %v3720
    %3758 = vmatpush.bf16.msra.mxu0 %v3719
    %3759 = vmatmul.bf16.gmra.mxu0 %v3647
    %v3760 = vpop.f32.mrf.mxu0
    %v3761 = vadd.f32 0.0, %v3760
    %v3762 = vpop.f32.mrf.mxu0
    %v3763 = vadd.f32 0.0, %v3762
    %3764 = vmatmul.bf16.gmra.mxu0 %v3649
    %v3765 = vpop.f32.mrf.mxu0
    %v3766 = vadd.f32 0.0, %v3765
    %v3767 = vpop.f32.mrf.mxu0
    %v3768 = vadd.f32 0.0, %v3767
    %3769 = vdwg.mxu0
    %3770 = vmatpush.bf16.msra.mxu0 %v3734
    %3771 = vmatpush.bf16.msra.mxu0 %v3733
    %3772 = vmatpush.bf16.msra.mxu0 %v3732
    %3773 = vmatpush.bf16.msra.mxu0 %v3731
    %3774 = vmatpush.bf16.msra.mxu0 %v3730
    %3775 = vmatpush.bf16.msra.mxu0 %v3729
    %3776 = vmatpush.bf16.msra.mxu0 %v3728
    %3777 = vmatpush.bf16.msra.mxu0 %v3727
    %3778 = vmatmul.bf16.gmra.mxu0 %v3648
    %v3779 = vpop.f32.mrf.mxu0
    %v3780 = vadd.f32 %v3761, %v3779
    %v3781 = vpop.f32.mrf.mxu0
    %v3782 = vadd.f32 %v3763, %v3781
    %3783 = vmatmul.bf16.gmra.mxu0 %v3650
    %v3784 = vpop.f32.mrf.mxu0
    %v3785 = vadd.f32 %v3766, %v3784
    %v3786 = vpop.f32.mrf.mxu0
    %v3787 = vadd.f32 %v3768, %v3786
    %3788 = vdwg.mxu0
    %v3789 = vadd.f32 %v3594, %v3780
    %v3790 = vadd.f32 %v3595, %v3782
    %v3791 = vadd.f32 %v3596, %v3785
    %v3792 = vadd.f32 %v3597, %v3787
    %v3793 = vld [vmem:[#allocation3 + $0x20] sm:$0xff]
    %v3794 = vld [vmem:[#allocation3 + $0x28] sm:$0xff]
    %v3795 = vld [vmem:[#allocation3 + $0x30] sm:$0xff]
    %v3796 = vld [vmem:[#allocation3 + $0x38] sm:$0xff]
    %s3797 = scalar_lea.vmem [#allocation5], 512
    %v3798 = vld [vmem:[%s3797] sm:$0xf]
    %v3799 = vld [vmem:[%s3797 + $0x4] sm:$0xf]
    %v3800 = vld [vmem:[%s3797 + $0x8] sm:$0xf]
    %v3801 = vld [vmem:[%s3797 + $0xc] sm:$0xf]
    %v3802 = vld [vmem:[%s3797 + $0x10] sm:$0xf]
    %v3803 = vld [vmem:[%s3797 + $0x14] sm:$0xf]
    %v3804 = vld [vmem:[%s3797 + $0x18] sm:$0xf]
    %v3805 = vld [vmem:[%s3797 + $0x1c] sm:$0xf]
    %v3806 = vld [vmem:[%s3797 + $0x20] sm:$0xf]
    %v3807 = vld [vmem:[%s3797 + $0x24] sm:$0xf]
    %v3808 = vld [vmem:[%s3797 + $0x28] sm:$0xf]
    %v3809 = vld [vmem:[%s3797 + $0x2c] sm:$0xf]
    %v3810 = vld [vmem:[%s3797 + $0x30] sm:$0xf]
    %v3811 = vld [vmem:[%s3797 + $0x34] sm:$0xf]
    %v3812 = vld [vmem:[%s3797 + $0x38] sm:$0xf]
    %v3813 = vld [vmem:[%s3797 + $0x3c] sm:$0xf]
    %v3814 = vld [vmem:[%s3797 + $0x40] sm:$0xf]
    %v3815 = vld [vmem:[%s3797 + $0x44] sm:$0xf]
    %v3816 = vld [vmem:[%s3797 + $0x48] sm:$0xf]
    %v3817 = vld [vmem:[%s3797 + $0x4c] sm:$0xf]
    %v3818 = vld [vmem:[%s3797 + $0x50] sm:$0xf]
    %v3819 = vld [vmem:[%s3797 + $0x54] sm:$0xf]
    %v3820 = vld [vmem:[%s3797 + $0x58] sm:$0xf]
    %v3821 = vld [vmem:[%s3797 + $0x5c] sm:$0xf]
    %v3822 = vld [vmem:[%s3797 + $0x60] sm:$0xf]
    %v3823 = vld [vmem:[%s3797 + $0x64] sm:$0xf]
    %v3824 = vld [vmem:[%s3797 + $0x68] sm:$0xf]
    %v3825 = vld [vmem:[%s3797 + $0x6c] sm:$0xf]
    %v3826 = vld [vmem:[%s3797 + $0x70] sm:$0xf]
    %v3827 = vld [vmem:[%s3797 + $0x74] sm:$0xf]
    %v3828 = vld [vmem:[%s3797 + $0x78] sm:$0xf]
    %v3829 = vld [vmem:[%s3797 + $0x7c] sm:$0xf]
    %v3834 = vunpack.c.l.b16 %v3793
    %v3835 = vunpack.c.h.b16 %v3793
    %v3836 = vunpack.c.l.b16 %v3794
    %v3837 = vunpack.c.h.b16 %v3794
    %v3838 = vunpack.c.l.b16 %v3795
    %v3839 = vunpack.c.h.b16 %v3795
    %v3840 = vunpack.c.l.b16 %v3796
    %v3841 = vunpack.c.h.b16 %v3796
    %v3842 = vpack.c.b16 %v3836, %v3834
    %v3843 = vpack.c.b16 %v3837, %v3835
    %v3844 = vpack.c.b16 %v3840, %v3838
    %v3845 = vpack.c.b16 %v3841, %v3839
    %v3882 = vunpack.c.l.b16 %v3798
    %v3883 = vunpack.c.l.b16 %v3799
    %v3884 = vunpack.c.l.b16 %v3800
    %v3885 = vunpack.c.l.b16 %v3801
    %v3886 = vunpack.c.l.b16 %v3802
    %v3887 = vunpack.c.l.b16 %v3803
    %v3888 = vunpack.c.l.b16 %v3804
    %v3889 = vunpack.c.l.b16 %v3805
    %v3890 = vunpack.c.l.b16 %v3806
    %v3891 = vunpack.c.l.b16 %v3807
    %v3892 = vunpack.c.l.b16 %v3808
    %v3893 = vunpack.c.l.b16 %v3809
    %v3894 = vunpack.c.l.b16 %v3810
    %v3895 = vunpack.c.l.b16 %v3811
    %v3896 = vunpack.c.l.b16 %v3812
    %v3897 = vunpack.c.l.b16 %v3813
    %v3898 = vunpack.c.l.b16 %v3814
    %v3899 = vunpack.c.l.b16 %v3815
    %v3900 = vunpack.c.l.b16 %v3816
    %v3901 = vunpack.c.l.b16 %v3817
    %v3902 = vunpack.c.l.b16 %v3818
    %v3903 = vunpack.c.l.b16 %v3819
    %v3904 = vunpack.c.l.b16 %v3820
    %v3905 = vunpack.c.l.b16 %v3821
    %v3906 = vunpack.c.l.b16 %v3822
    %v3907 = vunpack.c.l.b16 %v3823
    %v3908 = vunpack.c.l.b16 %v3824
    %v3909 = vunpack.c.l.b16 %v3825
    %v3910 = vunpack.c.l.b16 %v3826
    %v3911 = vunpack.c.l.b16 %v3827
    %v3912 = vunpack.c.l.b16 %v3828
    %v3913 = vunpack.c.l.b16 %v3829
    %v3914 = vpack.c.b16 %v3883, %v3882
    %v3915 = vpack.c.b16 %v3885, %v3884
    %v3916 = vpack.c.b16 %v3887, %v3886
    %v3917 = vpack.c.b16 %v3889, %v3888
    %v3918 = vpack.c.b16 %v3891, %v3890
    %v3919 = vpack.c.b16 %v3893, %v3892
    %v3920 = vpack.c.b16 %v3895, %v3894
    %v3921 = vpack.c.b16 %v3897, %v3896
    %v3922 = vpack.c.b16 %v3899, %v3898
    %v3923 = vpack.c.b16 %v3901, %v3900
    %v3924 = vpack.c.b16 %v3903, %v3902
    %v3925 = vpack.c.b16 %v3905, %v3904
    %v3926 = vpack.c.b16 %v3907, %v3906
    %v3927 = vpack.c.b16 %v3909, %v3908
    %v3928 = vpack.c.b16 %v3911, %v3910
    %v3929 = vpack.c.b16 %v3913, %v3912
    %3946 = vmatpush.bf16.msra.mxu0 %v3921
    %3947 = vmatpush.bf16.msra.mxu0 %v3920
    %3948 = vmatpush.bf16.msra.mxu0 %v3919
    %3949 = vmatpush.bf16.msra.mxu0 %v3918
    %3950 = vmatpush.bf16.msra.mxu0 %v3917
    %3951 = vmatpush.bf16.msra.mxu0 %v3916
    %3952 = vmatpush.bf16.msra.mxu0 %v3915
    %3953 = vmatpush.bf16.msra.mxu0 %v3914
    %3954 = vmatmul.bf16.gmra.mxu0 %v3842
    %v3955 = vpop.f32.mrf.mxu0
    %v3956 = vadd.f32 0.0, %v3955
    %v3957 = vpop.f32.mrf.mxu0
    %v3958 = vadd.f32 0.0, %v3957
    %3959 = vmatmul.bf16.gmra.mxu0 %v3844
    %v3960 = vpop.f32.mrf.mxu0
    %v3961 = vadd.f32 0.0, %v3960
    %v3962 = vpop.f32.mrf.mxu0
    %v3963 = vadd.f32 0.0, %v3962
    %3964 = vdwg.mxu0
    %3965 = vmatpush.bf16.msra.mxu0 %v3929
    %3966 = vmatpush.bf16.msra.mxu0 %v3928
    %3967 = vmatpush.bf16.msra.mxu0 %v3927
    %3968 = vmatpush.bf16.msra.mxu0 %v3926
    %3969 = vmatpush.bf16.msra.mxu0 %v3925
    %3970 = vmatpush.bf16.msra.mxu0 %v3924
    %3971 = vmatpush.bf16.msra.mxu0 %v3923
    %3972 = vmatpush.bf16.msra.mxu0 %v3922
    %3973 = vmatmul.bf16.gmra.mxu0 %v3843
    %v3974 = vpop.f32.mrf.mxu0
    %v3975 = vadd.f32 %v3956, %v3974
    %v3976 = vpop.f32.mrf.mxu0
    %v3977 = vadd.f32 %v3958, %v3976
    %3978 = vmatmul.bf16.gmra.mxu0 %v3845
    %v3979 = vpop.f32.mrf.mxu0
    %v3980 = vadd.f32 %v3961, %v3979
    %v3981 = vpop.f32.mrf.mxu0
    %v3982 = vadd.f32 %v3963, %v3981
    %3983 = vdwg.mxu0
    %v3984 = vadd.f32 %v3789, %v3975
    %v3985 = vadd.f32 %v3790, %v3977
    %v3986 = vadd.f32 %v3791, %v3980
    %v3987 = vadd.f32 %v3792, %v3982
    %v3989 = vperm.slane %v3033, 0
    %v3991 = vadd.f32 %v3984, %v3989
    %v3992 = vadd.f32 %v3985, %v3989
    %v3993 = vadd.f32 %v3986, %v3989
    %v3994 = vadd.f32 %v3987, %v3989
    %vm3995 = vcmp.ge.f32.partialorder %v3991, 0.0
    %vm3996 = vcmp.ge.f32.partialorder %v3992, 0.0
    %vm3997 = vcmp.ge.f32.partialorder %v3993, 0.0
    %vm3998 = vcmp.ge.f32.partialorder %v3994, 0.0
    %v3999 = vmul.f32 %v3991, 0.2
    %v4000 = vmul.f32 %v3992, 0.2
    %v4001 = vmul.f32 %v3993, 0.2
    %v4002 = vmul.f32 %v3994, 0.2
    %v4003 = vsel %vm3995, %v3991, %v3999
    %v4004 = vsel %vm3996, %v3992, %v4000
    %v4005 = vsel %vm3997, %v3993, %v4001
    %v4006 = vsel %vm3998, %v3994, %v4002
    %v4007 = vpack.c.bf16 %v4003, %v4003
    %v4008 = vpack.c.bf16 %v4004, %v4004
    %v4009 = vpack.c.bf16 %v4005, %v4005
    %v4010 = vpack.c.bf16 %v4006, %v4006
    %4011 = vst [vmem:[#allocation4 + $0x14] sm:$0xf] %v4007
    %4012 = vst [vmem:[#allocation4 + $0x18] sm:$0xf] %v4008
    %4013 = vst [vmem:[#allocation4 + $0x1c] sm:$0xf] %v4009
    %4014 = vst [vmem:[#allocation4 + $0x20] sm:$0xf] %v4010
    %v4015 = vld [vmem:[%s7] sm:$0x1]
    %v4016 = vld [vmem:[#allocation4] sm:$0xf]
    %v4017 = vld [vmem:[#allocation4 + $0x4] sm:$0xf]
    %v4018 = vld [vmem:[#allocation4 + $0x8] sm:$0xf]
    %v4019 = vld [vmem:[#allocation4 + $0xc] sm:$0xf]
    %v4020 = vld [vmem:[%s4] sm:$0xf]
    %v4021 = vld [vmem:[%s4 + $0x4] sm:$0xf]
    %v4022 = vld [vmem:[%s4 + $0x8] sm:$0xf]
    %v4023 = vld [vmem:[%s4 + $0xc] sm:$0xf]
    %v4024 = vld [vmem:[%s4 + $0x10] sm:$0xf]
    %v4025 = vld [vmem:[%s4 + $0x14] sm:$0xf]
    %v4026 = vld [vmem:[%s4 + $0x18] sm:$0xf]
    %v4027 = vld [vmem:[%s4 + $0x1c] sm:$0xf]
    %v4028 = vld [vmem:[%s4 + $0x20] sm:$0xf]
    %v4029 = vld [vmem:[%s4 + $0x24] sm:$0xf]
    %v4030 = vld [vmem:[%s4 + $0x28] sm:$0xf]
    %v4031 = vld [vmem:[%s4 + $0x2c] sm:$0xf]
    %v4032 = vld [vmem:[%s4 + $0x30] sm:$0xf]
    %v4033 = vld [vmem:[%s4 + $0x34] sm:$0xf]
    %v4034 = vld [vmem:[%s4 + $0x38] sm:$0xf]
    %v4035 = vld [vmem:[%s4 + $0x3c] sm:$0xf]
    %v4036 = vld [vmem:[#allocation4 + $0x10] sm:$0xf]
    %s4037 = scalar_lea.vmem %s4, 64
    %v4038 = vld [vmem:[%s4037] sm:$0xf]
    %v4039 = vld [vmem:[%s4037 + $0x4] sm:$0xf]
    %v4040 = vld [vmem:[%s4037 + $0x8] sm:$0xf]
    %v4041 = vld [vmem:[%s4037 + $0xc] sm:$0xf]
    %v4042 = vld [vmem:[%s4037 + $0x10] sm:$0xf]
    %v4043 = vld [vmem:[%s4037 + $0x14] sm:$0xf]
    %v4044 = vld [vmem:[%s4037 + $0x18] sm:$0xf]
    %v4045 = vld [vmem:[%s4037 + $0x1c] sm:$0xf]
    %v4046 = vld [vmem:[%s4037 + $0x20] sm:$0xf]
    %v4047 = vld [vmem:[%s4037 + $0x24] sm:$0xf]
    %v4048 = vld [vmem:[%s4037 + $0x28] sm:$0xf]
    %v4049 = vld [vmem:[%s4037 + $0x2c] sm:$0xf]
    %v4050 = vld [vmem:[%s4037 + $0x30] sm:$0xf]
    %v4051 = vld [vmem:[%s4037 + $0x34] sm:$0xf]
    %v4052 = vld [vmem:[%s4037 + $0x38] sm:$0xf]
    %v4053 = vld [vmem:[%s4037 + $0x3c] sm:$0xf]
    %v4058 = vunpack.c.l.b16 %v4017
    %v4059 = vunpack.c.l.b16 %v4018
    %v4060 = vunpack.c.l.b16 %v4019
    %v4061 = vunpack.c.l.b16 %v4036
    %v4062 = vpack.c.b16 %v4059, %v4058
    %v4063 = vpack.c.b16 %v4061, %v4060
    %v4082 = vunpack.c.l.b16 %v4038
    %v4083 = vunpack.c.l.b16 %v4039
    %v4084 = vunpack.c.l.b16 %v4040
    %v4085 = vunpack.c.l.b16 %v4041
    %v4086 = vunpack.c.l.b16 %v4042
    %v4087 = vunpack.c.l.b16 %v4043
    %v4088 = vunpack.c.l.b16 %v4044
    %v4089 = vunpack.c.l.b16 %v4045
    %v4090 = vunpack.c.l.b16 %v4046
    %v4091 = vunpack.c.l.b16 %v4047
    %v4092 = vunpack.c.l.b16 %v4048
    %v4093 = vunpack.c.l.b16 %v4049
    %v4094 = vunpack.c.l.b16 %v4050
    %v4095 = vunpack.c.l.b16 %v4051
    %v4096 = vunpack.c.l.b16 %v4052
    %v4097 = vunpack.c.l.b16 %v4053
    %v4098 = vpack.c.b16 %v4083, %v4082
    %v4099 = vpack.c.b16 %v4085, %v4084
    %v4100 = vpack.c.b16 %v4087, %v4086
    %v4101 = vpack.c.b16 %v4089, %v4088
    %v4102 = vpack.c.b16 %v4091, %v4090
    %v4103 = vpack.c.b16 %v4093, %v4092
    %v4104 = vpack.c.b16 %v4095, %v4094
    %v4105 = vpack.c.b16 %v4097, %v4096
    %4114 = vmatpush.bf16.msra.mxu0 %v4105
    %4115 = vmatpush.bf16.msra.mxu0 %v4104
    %4116 = vmatpush.bf16.msra.mxu0 %v4103
    %4117 = vmatpush.bf16.msra.mxu0 %v4102
    %4118 = vmatpush.bf16.msra.mxu0 %v4101
    %4119 = vmatpush.bf16.msra.mxu0 %v4100
    %4120 = vmatpush.bf16.msra.mxu0 %v4099
    %4121 = vmatpush.bf16.msra.mxu0 %v4098
    %4122 = vmatmul.bf16.gmra.mxu0 %v4062
    %v4123 = vpop.f32.mrf.mxu0
    %v4124 = vadd.f32 0.0, %v4123
    %v4125 = vpop.f32.mrf.mxu0
    %v4126 = vadd.f32 0.0, %v4125
    %4127 = vmatmul.bf16.gmra.mxu0 %v4063
    %v4128 = vpop.f32.mrf.mxu0
    %v4129 = vadd.f32 0.0, %v4128
    %v4130 = vpop.f32.mrf.mxu0
    %v4131 = vadd.f32 0.0, %v4130
    %4132 = vdwg.mxu0
    %v4134 = vunpack.c.l.b16 %v4016
    %v4135 = vpack.c.b16 %v4058, %v4134
    %v4136 = vpack.c.b16 %v4060, %v4059
    %v4155 = vunpack.c.l.b16 %v4020
    %v4156 = vunpack.c.l.b16 %v4021
    %v4157 = vunpack.c.l.b16 %v4022
    %v4158 = vunpack.c.l.b16 %v4023
    %v4159 = vunpack.c.l.b16 %v4024
    %v4160 = vunpack.c.l.b16 %v4025
    %v4161 = vunpack.c.l.b16 %v4026
    %v4162 = vunpack.c.l.b16 %v4027
    %v4163 = vunpack.c.l.b16 %v4028
    %v4164 = vunpack.c.l.b16 %v4029
    %v4165 = vunpack.c.l.b16 %v4030
    %v4166 = vunpack.c.l.b16 %v4031
    %v4167 = vunpack.c.l.b16 %v4032
    %v4168 = vunpack.c.l.b16 %v4033
    %v4169 = vunpack.c.l.b16 %v4034
    %v4170 = vunpack.c.l.b16 %v4035
    %v4171 = vpack.c.b16 %v4156, %v4155
    %v4172 = vpack.c.b16 %v4158, %v4157
    %v4173 = vpack.c.b16 %v4160, %v4159
    %v4174 = vpack.c.b16 %v4162, %v4161
    %v4175 = vpack.c.b16 %v4164, %v4163
    %v4176 = vpack.c.b16 %v4166, %v4165
    %v4177 = vpack.c.b16 %v4168, %v4167
    %v4178 = vpack.c.b16 %v4170, %v4169
    %4187 = vmatpush.bf16.msra.mxu0 %v4178
    %4188 = vmatpush.bf16.msra.mxu0 %v4177
    %4189 = vmatpush.bf16.msra.mxu0 %v4176
    %4190 = vmatpush.bf16.msra.mxu0 %v4175
    %4191 = vmatpush.bf16.msra.mxu0 %v4174
    %4192 = vmatpush.bf16.msra.mxu0 %v4173
    %4193 = vmatpush.bf16.msra.mxu0 %v4172
    %4194 = vmatpush.bf16.msra.mxu0 %v4171
    %4195 = vmatmul.bf16.gmra.mxu0 %v4135
    %v4196 = vpop.f32.mrf.mxu0
    %v4197 = vadd.f32 %v4124, %v4196
    %v4198 = vpop.f32.mrf.mxu0
    %v4199 = vadd.f32 %v4126, %v4198
    %4200 = vmatmul.bf16.gmra.mxu0 %v4136
    %v4201 = vpop.f32.mrf.mxu0
    %v4202 = vadd.f32 %v4129, %v4201
    %v4203 = vpop.f32.mrf.mxu0
    %v4204 = vadd.f32 %v4131, %v4203
    %4205 = vdwg.mxu0
    %v4206 = vld [vmem:[#allocation4 + $0x8] sm:$0xf]
    %v4207 = vld [vmem:[#allocation4 + $0xc] sm:$0xf]
    %v4208 = vld [vmem:[#allocation4 + $0x10] sm:$0xf]
    %v4209 = vld [vmem:[#allocation4 + $0x14] sm:$0xf]
    %s4210 = scalar_lea.vmem %s4, 128
    %v4211 = vld [vmem:[%s4210] sm:$0xf]
    %v4212 = vld [vmem:[%s4210 + $0x4] sm:$0xf]
    %v4213 = vld [vmem:[%s4210 + $0x8] sm:$0xf]
    %v4214 = vld [vmem:[%s4210 + $0xc] sm:$0xf]
    %v4215 = vld [vmem:[%s4210 + $0x10] sm:$0xf]
    %v4216 = vld [vmem:[%s4210 + $0x14] sm:$0xf]
    %v4217 = vld [vmem:[%s4210 + $0x18] sm:$0xf]
    %v4218 = vld [vmem:[%s4210 + $0x1c] sm:$0xf]
    %v4219 = vld [vmem:[%s4210 + $0x20] sm:$0xf]
    %v4220 = vld [vmem:[%s4210 + $0x24] sm:$0xf]
    %v4221 = vld [vmem:[%s4210 + $0x28] sm:$0xf]
    %v4222 = vld [vmem:[%s4210 + $0x2c] sm:$0xf]
    %v4223 = vld [vmem:[%s4210 + $0x30] sm:$0xf]
    %v4224 = vld [vmem:[%s4210 + $0x34] sm:$0xf]
    %v4225 = vld [vmem:[%s4210 + $0x38] sm:$0xf]
    %v4226 = vld [vmem:[%s4210 + $0x3c] sm:$0xf]
    %v4231 = vunpack.c.l.b16 %v4206
    %v4232 = vunpack.c.l.b16 %v4207
    %v4233 = vunpack.c.l.b16 %v4208
    %v4234 = vunpack.c.l.b16 %v4209
    %v4235 = vpack.c.b16 %v4232, %v4231
    %v4236 = vpack.c.b16 %v4234, %v4233
    %v4255 = vunpack.c.l.b16 %v4211
    %v4256 = vunpack.c.l.b16 %v4212
    %v4257 = vunpack.c.l.b16 %v4213
    %v4258 = vunpack.c.l.b16 %v4214
    %v4259 = vunpack.c.l.b16 %v4215
    %v4260 = vunpack.c.l.b16 %v4216
    %v4261 = vunpack.c.l.b16 %v4217
    %v4262 = vunpack.c.l.b16 %v4218
    %v4263 = vunpack.c.l.b16 %v4219
    %v4264 = vunpack.c.l.b16 %v4220
    %v4265 = vunpack.c.l.b16 %v4221
    %v4266 = vunpack.c.l.b16 %v4222
    %v4267 = vunpack.c.l.b16 %v4223
    %v4268 = vunpack.c.l.b16 %v4224
    %v4269 = vunpack.c.l.b16 %v4225
    %v4270 = vunpack.c.l.b16 %v4226
    %v4271 = vpack.c.b16 %v4256, %v4255
    %v4272 = vpack.c.b16 %v4258, %v4257
    %v4273 = vpack.c.b16 %v4260, %v4259
    %v4274 = vpack.c.b16 %v4262, %v4261
    %v4275 = vpack.c.b16 %v4264, %v4263
    %v4276 = vpack.c.b16 %v4266, %v4265
    %v4277 = vpack.c.b16 %v4268, %v4267
    %v4278 = vpack.c.b16 %v4270, %v4269
    %4287 = vmatpush.bf16.msra.mxu0 %v4278
    %4288 = vmatpush.bf16.msra.mxu0 %v4277
    %4289 = vmatpush.bf16.msra.mxu0 %v4276
    %4290 = vmatpush.bf16.msra.mxu0 %v4275
    %4291 = vmatpush.bf16.msra.mxu0 %v4274
    %4292 = vmatpush.bf16.msra.mxu0 %v4273
    %4293 = vmatpush.bf16.msra.mxu0 %v4272
    %4294 = vmatpush.bf16.msra.mxu0 %v4271
    %4295 = vmatmul.bf16.gmra.mxu0 %v4235
    %v4296 = vpop.f32.mrf.mxu0
    %v4297 = vadd.f32 0.0, %v4296
    %v4298 = vpop.f32.mrf.mxu0
    %v4299 = vadd.f32 0.0, %v4298
    %4300 = vmatmul.bf16.gmra.mxu0 %v4236
    %v4301 = vpop.f32.mrf.mxu0
    %v4302 = vadd.f32 0.0, %v4301
    %v4303 = vpop.f32.mrf.mxu0
    %v4304 = vadd.f32 0.0, %v4303
    %4305 = vdwg.mxu0
    %v4306 = vadd.f32 %v4197, %v4297
    %v4307 = vadd.f32 %v4199, %v4299
    %v4308 = vadd.f32 %v4202, %v4302
    %v4309 = vadd.f32 %v4204, %v4304
    %v4310 = vld [vmem:[#allocation4 + $0xc] sm:$0xf]
    %v4311 = vld [vmem:[#allocation4 + $0x10] sm:$0xf]
    %v4312 = vld [vmem:[#allocation4 + $0x14] sm:$0xf]
    %v4313 = vld [vmem:[#allocation4 + $0x18] sm:$0xf]
    %s4314 = scalar_lea.vmem %s4, 192
    %v4315 = vld [vmem:[%s4314] sm:$0xf]
    %v4316 = vld [vmem:[%s4314 + $0x4] sm:$0xf]
    %v4317 = vld [vmem:[%s4314 + $0x8] sm:$0xf]
    %v4318 = vld [vmem:[%s4314 + $0xc] sm:$0xf]
    %v4319 = vld [vmem:[%s4314 + $0x10] sm:$0xf]
    %v4320 = vld [vmem:[%s4314 + $0x14] sm:$0xf]
    %v4321 = vld [vmem:[%s4314 + $0x18] sm:$0xf]
    %v4322 = vld [vmem:[%s4314 + $0x1c] sm:$0xf]
    %v4323 = vld [vmem:[%s4314 + $0x20] sm:$0xf]
    %v4324 = vld [vmem:[%s4314 + $0x24] sm:$0xf]
    %v4325 = vld [vmem:[%s4314 + $0x28] sm:$0xf]
    %v4326 = vld [vmem:[%s4314 + $0x2c] sm:$0xf]
    %v4327 = vld [vmem:[%s4314 + $0x30] sm:$0xf]
    %v4328 = vld [vmem:[%s4314 + $0x34] sm:$0xf]
    %v4329 = vld [vmem:[%s4314 + $0x38] sm:$0xf]
    %v4330 = vld [vmem:[%s4314 + $0x3c] sm:$0xf]
    %v4335 = vunpack.c.l.b16 %v4310
    %v4336 = vunpack.c.l.b16 %v4311
    %v4337 = vunpack.c.l.b16 %v4312
    %v4338 = vunpack.c.l.b16 %v4313
    %v4339 = vpack.c.b16 %v4336, %v4335
    %v4340 = vpack.c.b16 %v4338, %v4337
    %v4359 = vunpack.c.l.b16 %v4315
    %v4360 = vunpack.c.l.b16 %v4316
    %v4361 = vunpack.c.l.b16 %v4317
    %v4362 = vunpack.c.l.b16 %v4318
    %v4363 = vunpack.c.l.b16 %v4319
    %v4364 = vunpack.c.l.b16 %v4320
    %v4365 = vunpack.c.l.b16 %v4321
    %v4366 = vunpack.c.l.b16 %v4322
    %v4367 = vunpack.c.l.b16 %v4323
    %v4368 = vunpack.c.l.b16 %v4324
    %v4369 = vunpack.c.l.b16 %v4325
    %v4370 = vunpack.c.l.b16 %v4326
    %v4371 = vunpack.c.l.b16 %v4327
    %v4372 = vunpack.c.l.b16 %v4328
    %v4373 = vunpack.c.l.b16 %v4329
    %v4374 = vunpack.c.l.b16 %v4330
    %v4375 = vpack.c.b16 %v4360, %v4359
    %v4376 = vpack.c.b16 %v4362, %v4361
    %v4377 = vpack.c.b16 %v4364, %v4363
    %v4378 = vpack.c.b16 %v4366, %v4365
    %v4379 = vpack.c.b16 %v4368, %v4367
    %v4380 = vpack.c.b16 %v4370, %v4369
    %v4381 = vpack.c.b16 %v4372, %v4371
    %v4382 = vpack.c.b16 %v4374, %v4373
    %4391 = vmatpush.bf16.msra.mxu0 %v4382
    %4392 = vmatpush.bf16.msra.mxu0 %v4381
    %4393 = vmatpush.bf16.msra.mxu0 %v4380
    %4394 = vmatpush.bf16.msra.mxu0 %v4379
    %4395 = vmatpush.bf16.msra.mxu0 %v4378
    %4396 = vmatpush.bf16.msra.mxu0 %v4377
    %4397 = vmatpush.bf16.msra.mxu0 %v4376
    %4398 = vmatpush.bf16.msra.mxu0 %v4375
    %4399 = vmatmul.bf16.gmra.mxu0 %v4339
    %v4400 = vpop.f32.mrf.mxu0
    %v4401 = vadd.f32 0.0, %v4400
    %v4402 = vpop.f32.mrf.mxu0
    %v4403 = vadd.f32 0.0, %v4402
    %4404 = vmatmul.bf16.gmra.mxu0 %v4340
    %v4405 = vpop.f32.mrf.mxu0
    %v4406 = vadd.f32 0.0, %v4405
    %v4407 = vpop.f32.mrf.mxu0
    %v4408 = vadd.f32 0.0, %v4407
    %4409 = vdwg.mxu0
    %v4410 = vadd.f32 %v4306, %v4401
    %v4411 = vadd.f32 %v4307, %v4403
    %v4412 = vadd.f32 %v4308, %v4406
    %v4413 = vadd.f32 %v4309, %v4408
    %v4414 = vld [vmem:[#allocation4 + $0x10] sm:$0xf]
    %v4415 = vld [vmem:[#allocation4 + $0x14] sm:$0xf]
    %v4416 = vld [vmem:[#allocation4 + $0x18] sm:$0xf]
    %v4417 = vld [vmem:[#allocation4 + $0x1c] sm:$0xf]
    %s4418 = scalar_lea.vmem %s4, 256
    %v4419 = vld [vmem:[%s4418] sm:$0xf]
    %v4420 = vld [vmem:[%s4418 + $0x4] sm:$0xf]
    %v4421 = vld [vmem:[%s4418 + $0x8] sm:$0xf]
    %v4422 = vld [vmem:[%s4418 + $0xc] sm:$0xf]
    %v4423 = vld [vmem:[%s4418 + $0x10] sm:$0xf]
    %v4424 = vld [vmem:[%s4418 + $0x14] sm:$0xf]
    %v4425 = vld [vmem:[%s4418 + $0x18] sm:$0xf]
    %v4426 = vld [vmem:[%s4418 + $0x1c] sm:$0xf]
    %v4427 = vld [vmem:[%s4418 + $0x20] sm:$0xf]
    %v4428 = vld [vmem:[%s4418 + $0x24] sm:$0xf]
    %v4429 = vld [vmem:[%s4418 + $0x28] sm:$0xf]
    %v4430 = vld [vmem:[%s4418 + $0x2c] sm:$0xf]
    %v4431 = vld [vmem:[%s4418 + $0x30] sm:$0xf]
    %v4432 = vld [vmem:[%s4418 + $0x34] sm:$0xf]
    %v4433 = vld [vmem:[%s4418 + $0x38] sm:$0xf]
    %v4434 = vld [vmem:[%s4418 + $0x3c] sm:$0xf]
    %v4439 = vunpack.c.l.b16 %v4414
    %v4440 = vunpack.c.l.b16 %v4415
    %v4441 = vunpack.c.l.b16 %v4416
    %v4442 = vunpack.c.l.b16 %v4417
    %v4443 = vpack.c.b16 %v4440, %v4439
    %v4444 = vpack.c.b16 %v4442, %v4441
    %v4463 = vunpack.c.l.b16 %v4419
    %v4464 = vunpack.c.l.b16 %v4420
    %v4465 = vunpack.c.l.b16 %v4421
    %v4466 = vunpack.c.l.b16 %v4422
    %v4467 = vunpack.c.l.b16 %v4423
    %v4468 = vunpack.c.l.b16 %v4424
    %v4469 = vunpack.c.l.b16 %v4425
    %v4470 = vunpack.c.l.b16 %v4426
    %v4471 = vunpack.c.l.b16 %v4427
    %v4472 = vunpack.c.l.b16 %v4428
    %v4473 = vunpack.c.l.b16 %v4429
    %v4474 = vunpack.c.l.b16 %v4430
    %v4475 = vunpack.c.l.b16 %v4431
    %v4476 = vunpack.c.l.b16 %v4432
    %v4477 = vunpack.c.l.b16 %v4433
    %v4478 = vunpack.c.l.b16 %v4434
    %v4479 = vpack.c.b16 %v4464, %v4463
    %v4480 = vpack.c.b16 %v4466, %v4465
    %v4481 = vpack.c.b16 %v4468, %v4467
    %v4482 = vpack.c.b16 %v4470, %v4469
    %v4483 = vpack.c.b16 %v4472, %v4471
    %v4484 = vpack.c.b16 %v4474, %v4473
    %v4485 = vpack.c.b16 %v4476, %v4475
    %v4486 = vpack.c.b16 %v4478, %v4477
    %4495 = vmatpush.bf16.msra.mxu0 %v4486
    %4496 = vmatpush.bf16.msra.mxu0 %v4485
    %4497 = vmatpush.bf16.msra.mxu0 %v4484
    %4498 = vmatpush.bf16.msra.mxu0 %v4483
    %4499 = vmatpush.bf16.msra.mxu0 %v4482
    %4500 = vmatpush.bf16.msra.mxu0 %v4481
    %4501 = vmatpush.bf16.msra.mxu0 %v4480
    %4502 = vmatpush.bf16.msra.mxu0 %v4479
    %4503 = vmatmul.bf16.gmra.mxu0 %v4443
    %v4504 = vpop.f32.mrf.mxu0
    %v4505 = vadd.f32 0.0, %v4504
    %v4506 = vpop.f32.mrf.mxu0
    %v4507 = vadd.f32 0.0, %v4506
    %4508 = vmatmul.bf16.gmra.mxu0 %v4444
    %v4509 = vpop.f32.mrf.mxu0
    %v4510 = vadd.f32 0.0, %v4509
    %v4511 = vpop.f32.mrf.mxu0
    %v4512 = vadd.f32 0.0, %v4511
    %4513 = vdwg.mxu0
    %v4514 = vadd.f32 %v4410, %v4505
    %v4515 = vadd.f32 %v4411, %v4507
    %v4516 = vadd.f32 %v4412, %v4510
    %v4517 = vadd.f32 %v4413, %v4512
    %v4518 = vld [vmem:[#allocation4 + $0x14] sm:$0xf]
    %v4519 = vld [vmem:[#allocation4 + $0x18] sm:$0xf]
    %v4520 = vld [vmem:[#allocation4 + $0x1c] sm:$0xf]
    %v4521 = vld [vmem:[#allocation4 + $0x20] sm:$0xf]
    %s4522 = scalar_lea.vmem %s4, 320
    %v4523 = vld [vmem:[%s4522] sm:$0xf]
    %v4524 = vld [vmem:[%s4522 + $0x4] sm:$0xf]
    %v4525 = vld [vmem:[%s4522 + $0x8] sm:$0xf]
    %v4526 = vld [vmem:[%s4522 + $0xc] sm:$0xf]
    %v4527 = vld [vmem:[%s4522 + $0x10] sm:$0xf]
    %v4528 = vld [vmem:[%s4522 + $0x14] sm:$0xf]
    %v4529 = vld [vmem:[%s4522 + $0x18] sm:$0xf]
    %v4530 = vld [vmem:[%s4522 + $0x1c] sm:$0xf]
    %v4531 = vld [vmem:[%s4522 + $0x20] sm:$0xf]
    %v4532 = vld [vmem:[%s4522 + $0x24] sm:$0xf]
    %v4533 = vld [vmem:[%s4522 + $0x28] sm:$0xf]
    %v4534 = vld [vmem:[%s4522 + $0x2c] sm:$0xf]
    %v4535 = vld [vmem:[%s4522 + $0x30] sm:$0xf]
    %v4536 = vld [vmem:[%s4522 + $0x34] sm:$0xf]
    %v4537 = vld [vmem:[%s4522 + $0x38] sm:$0xf]
    %v4538 = vld [vmem:[%s4522 + $0x3c] sm:$0xf]
    %v4543 = vunpack.c.l.b16 %v4518
    %v4544 = vunpack.c.l.b16 %v4519
    %v4545 = vunpack.c.l.b16 %v4520
    %v4546 = vunpack.c.l.b16 %v4521
    %v4547 = vpack.c.b16 %v4544, %v4543
    %v4548 = vpack.c.b16 %v4546, %v4545
    %v4567 = vunpack.c.l.b16 %v4523
    %v4568 = vunpack.c.l.b16 %v4524
    %v4569 = vunpack.c.l.b16 %v4525
    %v4570 = vunpack.c.l.b16 %v4526
    %v4571 = vunpack.c.l.b16 %v4527
    %v4572 = vunpack.c.l.b16 %v4528
    %v4573 = vunpack.c.l.b16 %v4529
    %v4574 = vunpack.c.l.b16 %v4530
    %v4575 = vunpack.c.l.b16 %v4531
    %v4576 = vunpack.c.l.b16 %v4532
    %v4577 = vunpack.c.l.b16 %v4533
    %v4578 = vunpack.c.l.b16 %v4534
    %v4579 = vunpack.c.l.b16 %v4535
    %v4580 = vunpack.c.l.b16 %v4536
    %v4581 = vunpack.c.l.b16 %v4537
    %v4582 = vunpack.c.l.b16 %v4538
    %v4583 = vpack.c.b16 %v4568, %v4567
    %v4584 = vpack.c.b16 %v4570, %v4569
    %v4585 = vpack.c.b16 %v4572, %v4571
    %v4586 = vpack.c.b16 %v4574, %v4573
    %v4587 = vpack.c.b16 %v4576, %v4575
    %v4588 = vpack.c.b16 %v4578, %v4577
    %v4589 = vpack.c.b16 %v4580, %v4579
    %v4590 = vpack.c.b16 %v4582, %v4581
    %4599 = vmatpush.bf16.msra.mxu0 %v4590
    %4600 = vmatpush.bf16.msra.mxu0 %v4589
    %4601 = vmatpush.bf16.msra.mxu0 %v4588
    %4602 = vmatpush.bf16.msra.mxu0 %v4587
    %4603 = vmatpush.bf16.msra.mxu0 %v4586
    %4604 = vmatpush.bf16.msra.mxu0 %v4585
    %4605 = vmatpush.bf16.msra.mxu0 %v4584
    %4606 = vmatpush.bf16.msra.mxu0 %v4583
    %4607 = vmatmul.bf16.gmra.mxu0 %v4547
    %v4608 = vpop.f32.mrf.mxu0
    %v4609 = vadd.f32 0.0, %v4608
    %v4610 = vpop.f32.mrf.mxu0
    %v4611 = vadd.f32 0.0, %v4610
    %4612 = vmatmul.bf16.gmra.mxu0 %v4548
    %v4613 = vpop.f32.mrf.mxu0
    %v4614 = vadd.f32 0.0, %v4613
    %v4615 = vpop.f32.mrf.mxu0
    %v4616 = vadd.f32 0.0, %v4615
    %4617 = vdwg.mxu0
    %v4618 = vadd.f32 %v4514, %v4609
    %v4619 = vadd.f32 %v4515, %v4611
    %v4620 = vadd.f32 %v4516, %v4614
    %v4621 = vadd.f32 %v4517, %v4616
    %v4622 = vld [vmem:[#allocation4 + $0x18] sm:$0xf]
    %v4623 = vld [vmem:[#allocation4 + $0x1c] sm:$0xf]
    %v4624 = vld [vmem:[#allocation4 + $0x20] sm:$0xf]
    %v4625 = vld [vmem:[#allocation4 + $0x24] sm:$0xf]
    %s4626 = scalar_lea.vmem %s4, 384
    %v4627 = vld [vmem:[%s4626] sm:$0xf]
    %v4628 = vld [vmem:[%s4626 + $0x4] sm:$0xf]
    %v4629 = vld [vmem:[%s4626 + $0x8] sm:$0xf]
    %v4630 = vld [vmem:[%s4626 + $0xc] sm:$0xf]
    %v4631 = vld [vmem:[%s4626 + $0x10] sm:$0xf]
    %v4632 = vld [vmem:[%s4626 + $0x14] sm:$0xf]
    %v4633 = vld [vmem:[%s4626 + $0x18] sm:$0xf]
    %v4634 = vld [vmem:[%s4626 + $0x1c] sm:$0xf]
    %v4635 = vld [vmem:[%s4626 + $0x20] sm:$0xf]
    %v4636 = vld [vmem:[%s4626 + $0x24] sm:$0xf]
    %v4637 = vld [vmem:[%s4626 + $0x28] sm:$0xf]
    %v4638 = vld [vmem:[%s4626 + $0x2c] sm:$0xf]
    %v4639 = vld [vmem:[%s4626 + $0x30] sm:$0xf]
    %v4640 = vld [vmem:[%s4626 + $0x34] sm:$0xf]
    %v4641 = vld [vmem:[%s4626 + $0x38] sm:$0xf]
    %v4642 = vld [vmem:[%s4626 + $0x3c] sm:$0xf]
    %v4647 = vunpack.c.l.b16 %v4622
    %v4648 = vunpack.c.l.b16 %v4623
    %v4649 = vunpack.c.l.b16 %v4624
    %v4650 = vunpack.c.l.b16 %v4625
    %v4651 = vpack.c.b16 %v4648, %v4647
    %v4652 = vpack.c.b16 %v4650, %v4649
    %v4671 = vunpack.c.l.b16 %v4627
    %v4672 = vunpack.c.l.b16 %v4628
    %v4673 = vunpack.c.l.b16 %v4629
    %v4674 = vunpack.c.l.b16 %v4630
    %v4675 = vunpack.c.l.b16 %v4631
    %v4676 = vunpack.c.l.b16 %v4632
    %v4677 = vunpack.c.l.b16 %v4633
    %v4678 = vunpack.c.l.b16 %v4634
    %v4679 = vunpack.c.l.b16 %v4635
    %v4680 = vunpack.c.l.b16 %v4636
    %v4681 = vunpack.c.l.b16 %v4637
    %v4682 = vunpack.c.l.b16 %v4638
    %v4683 = vunpack.c.l.b16 %v4639
    %v4684 = vunpack.c.l.b16 %v4640
    %v4685 = vunpack.c.l.b16 %v4641
    %v4686 = vunpack.c.l.b16 %v4642
    %v4687 = vpack.c.b16 %v4672, %v4671
    %v4688 = vpack.c.b16 %v4674, %v4673
    %v4689 = vpack.c.b16 %v4676, %v4675
    %v4690 = vpack.c.b16 %v4678, %v4677
    %v4691 = vpack.c.b16 %v4680, %v4679
    %v4692 = vpack.c.b16 %v4682, %v4681
    %v4693 = vpack.c.b16 %v4684, %v4683
    %v4694 = vpack.c.b16 %v4686, %v4685
    %4703 = vmatpush.bf16.msra.mxu0 %v4694
    %4704 = vmatpush.bf16.msra.mxu0 %v4693
    %4705 = vmatpush.bf16.msra.mxu0 %v4692
    %4706 = vmatpush.bf16.msra.mxu0 %v4691
    %4707 = vmatpush.bf16.msra.mxu0 %v4690
    %4708 = vmatpush.bf16.msra.mxu0 %v4689
    %4709 = vmatpush.bf16.msra.mxu0 %v4688
    %4710 = vmatpush.bf16.msra.mxu0 %v4687
    %4711 = vmatmul.bf16.gmra.mxu0 %v4651
    %v4712 = vpop.f32.mrf.mxu0
    %v4713 = vadd.f32 0.0, %v4712
    %v4714 = vpop.f32.mrf.mxu0
    %v4715 = vadd.f32 0.0, %v4714
    %4716 = vmatmul.bf16.gmra.mxu0 %v4652
    %v4717 = vpop.f32.mrf.mxu0
    %v4718 = vadd.f32 0.0, %v4717
    %v4719 = vpop.f32.mrf.mxu0
    %v4720 = vadd.f32 0.0, %v4719
    %4721 = vdwg.mxu0
    %v4722 = vadd.f32 %v4618, %v4713
    %v4723 = vadd.f32 %v4619, %v4715
    %v4724 = vadd.f32 %v4620, %v4718
    %v4725 = vadd.f32 %v4621, %v4720
    %v4726 = vld [vmem:[#allocation4 + $0x1c] sm:$0xf]
    %v4727 = vld [vmem:[#allocation4 + $0x20] sm:$0xf]
    %v4728 = vld [vmem:[#allocation4 + $0x24] sm:$0xf]
    %v4729 = vld [vmem:[#allocation4 + $0x28] sm:$0xf]
    %s4730 = scalar_lea.vmem %s4, 448
    %v4731 = vld [vmem:[%s4730] sm:$0xf]
    %v4732 = vld [vmem:[%s4730 + $0x4] sm:$0xf]
    %v4733 = vld [vmem:[%s4730 + $0x8] sm:$0xf]
    %v4734 = vld [vmem:[%s4730 + $0xc] sm:$0xf]
    %v4735 = vld [vmem:[%s4730 + $0x10] sm:$0xf]
    %v4736 = vld [vmem:[%s4730 + $0x14] sm:$0xf]
    %v4737 = vld [vmem:[%s4730 + $0x18] sm:$0xf]
    %v4738 = vld [vmem:[%s4730 + $0x1c] sm:$0xf]
    %v4739 = vld [vmem:[%s4730 + $0x20] sm:$0xf]
    %v4740 = vld [vmem:[%s4730 + $0x24] sm:$0xf]
    %v4741 = vld [vmem:[%s4730 + $0x28] sm:$0xf]
    %v4742 = vld [vmem:[%s4730 + $0x2c] sm:$0xf]
    %v4743 = vld [vmem:[%s4730 + $0x30] sm:$0xf]
    %v4744 = vld [vmem:[%s4730 + $0x34] sm:$0xf]
    %v4745 = vld [vmem:[%s4730 + $0x38] sm:$0xf]
    %v4746 = vld [vmem:[%s4730 + $0x3c] sm:$0xf]
    %v4751 = vunpack.c.l.b16 %v4726
    %v4752 = vunpack.c.l.b16 %v4727
    %v4753 = vunpack.c.l.b16 %v4728
    %v4754 = vunpack.c.l.b16 %v4729
    %v4755 = vpack.c.b16 %v4752, %v4751
    %v4756 = vpack.c.b16 %v4754, %v4753
    %v4775 = vunpack.c.l.b16 %v4731
    %v4776 = vunpack.c.l.b16 %v4732
    %v4777 = vunpack.c.l.b16 %v4733
    %v4778 = vunpack.c.l.b16 %v4734
    %v4779 = vunpack.c.l.b16 %v4735
    %v4780 = vunpack.c.l.b16 %v4736
    %v4781 = vunpack.c.l.b16 %v4737
    %v4782 = vunpack.c.l.b16 %v4738
    %v4783 = vunpack.c.l.b16 %v4739
    %v4784 = vunpack.c.l.b16 %v4740
    %v4785 = vunpack.c.l.b16 %v4741
    %v4786 = vunpack.c.l.b16 %v4742
    %v4787 = vunpack.c.l.b16 %v4743
    %v4788 = vunpack.c.l.b16 %v4744
    %v4789 = vunpack.c.l.b16 %v4745
    %v4790 = vunpack.c.l.b16 %v4746
    %v4791 = vpack.c.b16 %v4776, %v4775
    %v4792 = vpack.c.b16 %v4778, %v4777
    %v4793 = vpack.c.b16 %v4780, %v4779
    %v4794 = vpack.c.b16 %v4782, %v4781
    %v4795 = vpack.c.b16 %v4784, %v4783
    %v4796 = vpack.c.b16 %v4786, %v4785
    %v4797 = vpack.c.b16 %v4788, %v4787
    %v4798 = vpack.c.b16 %v4790, %v4789
    %4807 = vmatpush.bf16.msra.mxu0 %v4798
    %4808 = vmatpush.bf16.msra.mxu0 %v4797
    %4809 = vmatpush.bf16.msra.mxu0 %v4796
    %4810 = vmatpush.bf16.msra.mxu0 %v4795
    %4811 = vmatpush.bf16.msra.mxu0 %v4794
    %4812 = vmatpush.bf16.msra.mxu0 %v4793
    %4813 = vmatpush.bf16.msra.mxu0 %v4792
    %4814 = vmatpush.bf16.msra.mxu0 %v4791
    %4815 = vmatmul.bf16.gmra.mxu0 %v4755
    %v4816 = vpop.f32.mrf.mxu0
    %v4817 = vadd.f32 0.0, %v4816
    %v4818 = vpop.f32.mrf.mxu0
    %v4819 = vadd.f32 0.0, %v4818
    %4820 = vmatmul.bf16.gmra.mxu0 %v4756
    %v4821 = vpop.f32.mrf.mxu0
    %v4822 = vadd.f32 0.0, %v4821
    %v4823 = vpop.f32.mrf.mxu0
    %v4824 = vadd.f32 0.0, %v4823
    %4825 = vdwg.mxu0
    %v4826 = vadd.f32 %v4722, %v4817
    %v4827 = vadd.f32 %v4723, %v4819
    %v4828 = vadd.f32 %v4724, %v4822
    %v4829 = vadd.f32 %v4725, %v4824
    %v4830 = vld [vmem:[#allocation4 + $0x20] sm:$0xf]
    %v4831 = vld [vmem:[#allocation4 + $0x24] sm:$0xf]
    %v4832 = vld [vmem:[#allocation4 + $0x28] sm:$0xf]
    %v4833 = vld [vmem:[#allocation4 + $0x2c] sm:$0xf]
    %s4834 = scalar_lea.vmem %s4, 512
    %v4835 = vld [vmem:[%s4834] sm:$0xf]
    %v4836 = vld [vmem:[%s4834 + $0x4] sm:$0xf]
    %v4837 = vld [vmem:[%s4834 + $0x8] sm:$0xf]
    %v4838 = vld [vmem:[%s4834 + $0xc] sm:$0xf]
    %v4839 = vld [vmem:[%s4834 + $0x10] sm:$0xf]
    %v4840 = vld [vmem:[%s4834 + $0x14] sm:$0xf]
    %v4841 = vld [vmem:[%s4834 + $0x18] sm:$0xf]
    %v4842 = vld [vmem:[%s4834 + $0x1c] sm:$0xf]
    %v4843 = vld [vmem:[%s4834 + $0x20] sm:$0xf]
    %v4844 = vld [vmem:[%s4834 + $0x24] sm:$0xf]
    %v4845 = vld [vmem:[%s4834 + $0x28] sm:$0xf]
    %v4846 = vld [vmem:[%s4834 + $0x2c] sm:$0xf]
    %v4847 = vld [vmem:[%s4834 + $0x30] sm:$0xf]
    %v4848 = vld [vmem:[%s4834 + $0x34] sm:$0xf]
    %v4849 = vld [vmem:[%s4834 + $0x38] sm:$0xf]
    %v4850 = vld [vmem:[%s4834 + $0x3c] sm:$0xf]
    %v4855 = vunpack.c.l.b16 %v4830
    %v4856 = vunpack.c.l.b16 %v4831
    %v4857 = vunpack.c.l.b16 %v4832
    %v4858 = vunpack.c.l.b16 %v4833
    %v4859 = vpack.c.b16 %v4856, %v4855
    %v4860 = vpack.c.b16 %v4858, %v4857
    %v4879 = vunpack.c.l.b16 %v4835
    %v4880 = vunpack.c.l.b16 %v4836
    %v4881 = vunpack.c.l.b16 %v4837
    %v4882 = vunpack.c.l.b16 %v4838
    %v4883 = vunpack.c.l.b16 %v4839
    %v4884 = vunpack.c.l.b16 %v4840
    %v4885 = vunpack.c.l.b16 %v4841
    %v4886 = vunpack.c.l.b16 %v4842
    %v4887 = vunpack.c.l.b16 %v4843
    %v4888 = vunpack.c.l.b16 %v4844
    %v4889 = vunpack.c.l.b16 %v4845
    %v4890 = vunpack.c.l.b16 %v4846
    %v4891 = vunpack.c.l.b16 %v4847
    %v4892 = vunpack.c.l.b16 %v4848
    %v4893 = vunpack.c.l.b16 %v4849
    %v4894 = vunpack.c.l.b16 %v4850
    %v4895 = vpack.c.b16 %v4880, %v4879
    %v4896 = vpack.c.b16 %v4882, %v4881
    %v4897 = vpack.c.b16 %v4884, %v4883
    %v4898 = vpack.c.b16 %v4886, %v4885
    %v4899 = vpack.c.b16 %v4888, %v4887
    %v4900 = vpack.c.b16 %v4890, %v4889
    %v4901 = vpack.c.b16 %v4892, %v4891
    %v4902 = vpack.c.b16 %v4894, %v4893
    %4911 = vmatpush.bf16.msra.mxu0 %v4902
    %4912 = vmatpush.bf16.msra.mxu0 %v4901
    %4913 = vmatpush.bf16.msra.mxu0 %v4900
    %4914 = vmatpush.bf16.msra.mxu0 %v4899
    %4915 = vmatpush.bf16.msra.mxu0 %v4898
    %4916 = vmatpush.bf16.msra.mxu0 %v4897
    %4917 = vmatpush.bf16.msra.mxu0 %v4896
    %4918 = vmatpush.bf16.msra.mxu0 %v4895
    %4919 = vmatmul.bf16.gmra.mxu0 %v4859
    %v4920 = vpop.f32.mrf.mxu0
    %v4921 = vadd.f32 0.0, %v4920
    %v4922 = vpop.f32.mrf.mxu0
    %v4923 = vadd.f32 0.0, %v4922
    %4924 = vmatmul.bf16.gmra.mxu0 %v4860
    %v4925 = vpop.f32.mrf.mxu0
    %v4926 = vadd.f32 0.0, %v4925
    %v4927 = vpop.f32.mrf.mxu0
    %v4928 = vadd.f32 0.0, %v4927
    %4929 = vdwg.mxu0
    %v4930 = vadd.f32 %v4826, %v4921
    %v4931 = vadd.f32 %v4827, %v4923
    %v4932 = vadd.f32 %v4828, %v4926
    %v4933 = vadd.f32 %v4829, %v4928
    %v4934 = vld [vmem:[#allocation4 + $0x24] sm:$0xf]
    %v4935 = vld [vmem:[#allocation4 + $0x28] sm:$0xf]
    %v4936 = vld [vmem:[#allocation4 + $0x2c] sm:$0xf]
    %v4937 = vld [vmem:[#allocation4 + $0x30] sm:$0xf]
    %s4938 = scalar_lea.vmem %s4, 576
    %v4939 = vld [vmem:[%s4938] sm:$0xf]
    %v4940 = vld [vmem:[%s4938 + $0x4] sm:$0xf]
    %v4941 = vld [vmem:[%s4938 + $0x8] sm:$0xf]
    %v4942 = vld [vmem:[%s4938 + $0xc] sm:$0xf]
    %v4943 = vld [vmem:[%s4938 + $0x10] sm:$0xf]
    %v4944 = vld [vmem:[%s4938 + $0x14] sm:$0xf]
    %v4945 = vld [vmem:[%s4938 + $0x18] sm:$0xf]
    %v4946 = vld [vmem:[%s4938 + $0x1c] sm:$0xf]
    %v4947 = vld [vmem:[%s4938 + $0x20] sm:$0xf]
    %v4948 = vld [vmem:[%s4938 + $0x24] sm:$0xf]
    %v4949 = vld [vmem:[%s4938 + $0x28] sm:$0xf]
    %v4950 = vld [vmem:[%s4938 + $0x2c] sm:$0xf]
    %v4951 = vld [vmem:[%s4938 + $0x30] sm:$0xf]
    %v4952 = vld [vmem:[%s4938 + $0x34] sm:$0xf]
    %v4953 = vld [vmem:[%s4938 + $0x38] sm:$0xf]
    %v4954 = vld [vmem:[%s4938 + $0x3c] sm:$0xf]
    %v4959 = vunpack.c.l.b16 %v4934
    %v4960 = vunpack.c.l.b16 %v4935
    %v4961 = vunpack.c.l.b16 %v4936
    %v4962 = vunpack.c.l.b16 %v4937
    %v4963 = vpack.c.b16 %v4960, %v4959
    %v4964 = vpack.c.b16 %v4962, %v4961
    %v4983 = vunpack.c.l.b16 %v4939
    %v4984 = vunpack.c.l.b16 %v4940
    %v4985 = vunpack.c.l.b16 %v4941
    %v4986 = vunpack.c.l.b16 %v4942
    %v4987 = vunpack.c.l.b16 %v4943
    %v4988 = vunpack.c.l.b16 %v4944
    %v4989 = vunpack.c.l.b16 %v4945
    %v4990 = vunpack.c.l.b16 %v4946
    %v4991 = vunpack.c.l.b16 %v4947
    %v4992 = vunpack.c.l.b16 %v4948
    %v4993 = vunpack.c.l.b16 %v4949
    %v4994 = vunpack.c.l.b16 %v4950
    %v4995 = vunpack.c.l.b16 %v4951
    %v4996 = vunpack.c.l.b16 %v4952
    %v4997 = vunpack.c.l.b16 %v4953
    %v4998 = vunpack.c.l.b16 %v4954
    %v4999 = vpack.c.b16 %v4984, %v4983
    %v5000 = vpack.c.b16 %v4986, %v4985
    %v5001 = vpack.c.b16 %v4988, %v4987
    %v5002 = vpack.c.b16 %v4990, %v4989
    %v5003 = vpack.c.b16 %v4992, %v4991
    %v5004 = vpack.c.b16 %v4994, %v4993
    %v5005 = vpack.c.b16 %v4996, %v4995
    %v5006 = vpack.c.b16 %v4998, %v4997
    %5015 = vmatpush.bf16.msra.mxu0 %v5006
    %5016 = vmatpush.bf16.msra.mxu0 %v5005
    %5017 = vmatpush.bf16.msra.mxu0 %v5004
    %5018 = vmatpush.bf16.msra.mxu0 %v5003
    %5019 = vmatpush.bf16.msra.mxu0 %v5002
    %5020 = vmatpush.bf16.msra.mxu0 %v5001
    %5021 = vmatpush.bf16.msra.mxu0 %v5000
    %5022 = vmatpush.bf16.msra.mxu0 %v4999
    %5023 = vmatmul.bf16.gmra.mxu0 %v4963
    %v5024 = vpop.f32.mrf.mxu0
    %v5025 = vadd.f32 0.0, %v5024
    %v5026 = vpop.f32.mrf.mxu0
    %v5027 = vadd.f32 0.0, %v5026
    %5028 = vmatmul.bf16.gmra.mxu0 %v4964
    %v5029 = vpop.f32.mrf.mxu0
    %v5030 = vadd.f32 0.0, %v5029
    %v5031 = vpop.f32.mrf.mxu0
    %v5032 = vadd.f32 0.0, %v5031
    %5033 = vdwg.mxu0
    %v5034 = vadd.f32 %v4930, %v5025
    %v5035 = vadd.f32 %v4931, %v5027
    %v5036 = vadd.f32 %v4932, %v5030
    %v5037 = vadd.f32 %v4933, %v5032
    %v5038 = vld [vmem:[#allocation4 + $0x28] sm:$0xf]
    %v5039 = vld [vmem:[#allocation4 + $0x2c] sm:$0xf]
    %v5040 = vld [vmem:[#allocation4 + $0x30] sm:$0xf]
    %v5041 = vld [vmem:[#allocation4 + $0x34] sm:$0xf]
    %s5042 = scalar_lea.vmem %s4, 640
    %v5043 = vld [vmem:[%s5042] sm:$0xf]
    %v5044 = vld [vmem:[%s5042 + $0x4] sm:$0xf]
    %v5045 = vld [vmem:[%s5042 + $0x8] sm:$0xf]
    %v5046 = vld [vmem:[%s5042 + $0xc] sm:$0xf]
    %v5047 = vld [vmem:[%s5042 + $0x10] sm:$0xf]
    %v5048 = vld [vmem:[%s5042 + $0x14] sm:$0xf]
    %v5049 = vld [vmem:[%s5042 + $0x18] sm:$0xf]
    %v5050 = vld [vmem:[%s5042 + $0x1c] sm:$0xf]
    %v5051 = vld [vmem:[%s5042 + $0x20] sm:$0xf]
    %v5052 = vld [vmem:[%s5042 + $0x24] sm:$0xf]
    %v5053 = vld [vmem:[%s5042 + $0x28] sm:$0xf]
    %v5054 = vld [vmem:[%s5042 + $0x2c] sm:$0xf]
    %v5055 = vld [vmem:[%s5042 + $0x30] sm:$0xf]
    %v5056 = vld [vmem:[%s5042 + $0x34] sm:$0xf]
    %v5057 = vld [vmem:[%s5042 + $0x38] sm:$0xf]
    %v5058 = vld [vmem:[%s5042 + $0x3c] sm:$0xf]
    %v5063 = vunpack.c.l.b16 %v5038
    %v5064 = vunpack.c.l.b16 %v5039
    %v5065 = vunpack.c.l.b16 %v5040
    %v5066 = vunpack.c.l.b16 %v5041
    %v5067 = vpack.c.b16 %v5064, %v5063
    %v5068 = vpack.c.b16 %v5066, %v5065
    %v5087 = vunpack.c.l.b16 %v5043
    %v5088 = vunpack.c.l.b16 %v5044
    %v5089 = vunpack.c.l.b16 %v5045
    %v5090 = vunpack.c.l.b16 %v5046
    %v5091 = vunpack.c.l.b16 %v5047
    %v5092 = vunpack.c.l.b16 %v5048
    %v5093 = vunpack.c.l.b16 %v5049
    %v5094 = vunpack.c.l.b16 %v5050
    %v5095 = vunpack.c.l.b16 %v5051
    %v5096 = vunpack.c.l.b16 %v5052
    %v5097 = vunpack.c.l.b16 %v5053
    %v5098 = vunpack.c.l.b16 %v5054
    %v5099 = vunpack.c.l.b16 %v5055
    %v5100 = vunpack.c.l.b16 %v5056
    %v5101 = vunpack.c.l.b16 %v5057
    %v5102 = vunpack.c.l.b16 %v5058
    %v5103 = vpack.c.b16 %v5088, %v5087
    %v5104 = vpack.c.b16 %v5090, %v5089
    %v5105 = vpack.c.b16 %v5092, %v5091
    %v5106 = vpack.c.b16 %v5094, %v5093
    %v5107 = vpack.c.b16 %v5096, %v5095
    %v5108 = vpack.c.b16 %v5098, %v5097
    %v5109 = vpack.c.b16 %v5100, %v5099
    %v5110 = vpack.c.b16 %v5102, %v5101
    %5119 = vmatpush.bf16.msra.mxu0 %v5110
    %5120 = vmatpush.bf16.msra.mxu0 %v5109
    %5121 = vmatpush.bf16.msra.mxu0 %v5108
    %5122 = vmatpush.bf16.msra.mxu0 %v5107
    %5123 = vmatpush.bf16.msra.mxu0 %v5106
    %5124 = vmatpush.bf16.msra.mxu0 %v5105
    %5125 = vmatpush.bf16.msra.mxu0 %v5104
    %5126 = vmatpush.bf16.msra.mxu0 %v5103
    %5127 = vmatmul.bf16.gmra.mxu0 %v5067
    %v5128 = vpop.f32.mrf.mxu0
    %v5129 = vadd.f32 0.0, %v5128
    %v5130 = vpop.f32.mrf.mxu0
    %v5131 = vadd.f32 0.0, %v5130
    %5132 = vmatmul.bf16.gmra.mxu0 %v5068
    %v5133 = vpop.f32.mrf.mxu0
    %v5134 = vadd.f32 0.0, %v5133
    %v5135 = vpop.f32.mrf.mxu0
    %v5136 = vadd.f32 0.0, %v5135
    %5137 = vdwg.mxu0
    %v5138 = vadd.f32 %v5034, %v5129
    %v5139 = vadd.f32 %v5035, %v5131
    %v5140 = vadd.f32 %v5036, %v5134
    %v5141 = vadd.f32 %v5037, %v5136
    %v5143 = vperm.slane %v4015, 0
    %v5145 = vadd.f32 %v5138, %v5143
    %v5146 = vadd.f32 %v5139, %v5143
    %v5147 = vadd.f32 %v5140, %v5143
    %v5148 = vadd.f32 %v5141, %v5143
    %vm5149 = vcmp.ge.f32.partialorder %v5145, 0.0
    %vm5150 = vcmp.ge.f32.partialorder %v5146, 0.0
    %vm5151 = vcmp.ge.f32.partialorder %v5147, 0.0
    %vm5152 = vcmp.ge.f32.partialorder %v5148, 0.0
    %v5153 = vmul.f32 %v5145, 0.2
    %v5154 = vmul.f32 %v5146, 0.2
    %v5155 = vmul.f32 %v5147, 0.2
    %v5156 = vmul.f32 %v5148, 0.2
    %v5157 = vsel %vm5149, %v5145, %v5153
    %v5158 = vsel %vm5150, %v5146, %v5154
    %v5159 = vsel %vm5151, %v5147, %v5155
    %v5160 = vsel %vm5152, %v5148, %v5156
    %5161 = vst [vmem:[%s8] sm:$0xff] %v5157
    %5162 = vst [vmem:[%s8 + $0x8] sm:$0xff] %v5158
    %5163 = vst [vmem:[%s8 + $0x10] sm:$0xff] %v5159
    %5164 = vst [vmem:[%s8 + $0x18] sm:$0xff] %v5160
    // Predicated region
    $region38: #{stage1_d_forward.1} parent=1 // pred_check
      _
    $region39: #{stage1_d_forward.1} parent=1 // pred_check_branch
      %5166 = sbr.rel (0) target = $region41
    $region40: #{stage1_d_forward.1} parent=1 // pred_region
      _
    $region41: #{stage1_d_forward.1} parent=1 // pred_fallthru
      _
    // Predicated region
    $region42: #{stage1_d_forward.1} parent=1 // pred_check
      _
    $region43: #{stage1_d_forward.1} parent=1 // pred_check_branch
      %5168 = sbr.rel (0) target = $region45
    $region44: #{stage1_d_forward.1} parent=1 // pred_region
      _
    $region45: #{stage1_d_forward.1} parent=1 // pred_fallthru
      _
    %5169 = vsyncpa [#allocation6], 1

</llo_original>
